<compile_context>
chip_gen: v7x
topology: tpu7x:2x2x1
jax: 0.10.0
libtpu: 0.0.40
codegen_flags: <defaults>
</compile_context>

<pallas_src>
import math

import jax
import jax.numpy as jnp
from jax.experimental import pallas as pl
from jax.experimental.pallas import tpu as pltpu

# ----------------------------- hyper-parameters ------------------------------
VOCAB_SIZE = 128
EMBED_DIM = 32
NUM_HEADS = 4
HEAD_DIM = EMBED_DIM // NUM_HEADS
FFN_DIM = 64
NUM_LAYERS = 2
MAX_POSITIONS = 16
EPS = 1e-8

BATCH = 2
SEQ = 8

ATTN_SCALE = 1.0 / math.sqrt(HEAD_DIM)


# ------------------------------- fused kernel --------------------------------
def _rms(x, gain):
    ms = jnp.mean(x * x, axis=-1, keepdims=True)
    return x * jax.lax.rsqrt(ms + EPS) * gain


def _seagull_kernel(x_ref, tok_ref, n1_ref, n2_ref,
                    wqkv_ref, bqkv_ref, wo_ref, bo_ref,
                    wbc_ref, bbc_ref, wff_ref, bff_ref, fgain_ref,
                    logits_ref, layers_ref):
    """One grid step = one batch element. All layers run in-register/VMEM."""
    S, D, F = SEQ, EMBED_DIM, FFN_DIM
    x = x_ref[0]                                            # (S, D)

    # causal mask, computed once
    row = jax.lax.broadcasted_iota(jnp.int32, (S, S), 0)
    col = jax.lax.broadcasted_iota(jnp.int32, (S, S), 1)
    causal = col <= row

    for l in range(NUM_LAYERS):
        # ---------------- attention sub-block (pre-norm, residual) ----------
        h = _rms(x, n1_ref[l])                              # (S, D)
        qkv = jnp.dot(h, wqkv_ref[l],
                      preferred_element_type=jnp.float32) + bqkv_ref[l]  # (S, 3D)
        q = qkv[:, 0 * D:1 * D] * ATTN_SCALE                # scale folded into q
        k = qkv[:, 1 * D:2 * D]
        v = qkv[:, 2 * D:3 * D]

        head_outs = []
        for hh in range(NUM_HEADS):                         # heads stay in lanes
            lo = hh * HEAD_DIM
            qh = q[:, lo:lo + HEAD_DIM]
            kh = k[:, lo:lo + HEAD_DIM]
            vh = v[:, lo:lo + HEAD_DIM]
            s = jnp.dot(qh, kh.T, preferred_element_type=jnp.float32)   # (S, S)
            s = jnp.where(causal, s, -1e30)
            m = jnp.max(s, axis=-1, keepdims=True)
            p = jnp.exp(s - m)
            p = p * pl.reciprocal(jnp.sum(p, axis=-1, keepdims=True), approx=True)
            head_outs.append(jnp.dot(p, vh, preferred_element_type=jnp.float32))
        attn = jnp.concatenate(head_outs, axis=-1)          # (S, D)
        attn = jnp.dot(attn, wo_ref[l],
                       preferred_element_type=jnp.float32) + bo_ref[l]
        x = x + attn

        # ---------------- GLU feed-forward sub-block ------------------------
        h2 = _rms(x, n2_ref[l])
        bc = jnp.dot(h2, wbc_ref[l],
                     preferred_element_type=jnp.float32) + bbc_ref[l]   # (S, 2F)
        a = bc[:, :F]
        g = bc[:, F:]
        glu_out = a * jax.nn.sigmoid(g)                     # (S, F)
        ff = jnp.dot(glu_out, wff_ref[l],
                     preferred_element_type=jnp.float32) + bff_ref[l]   # (S, D)
        x = x + ff

        if l < NUM_LAYERS - 1:
            layers_ref[l, 0] = x

    # ---- final RMSNorm + weight-tied LM head (contract tok_emb dim 1) ------
    x_final = _rms(x, fgain_ref[...])                       # (S, D)
    layers_ref[NUM_LAYERS - 1, 0] = x_final
    logits_ref[0] = jax.lax.dot_general(
        x_final, tok_ref[...],
        dimension_numbers=(((1,), (1,)), ((), ())),         # x @ tok_emb.T
        preferred_element_type=jnp.float32)                 # (S, V) lane-dense


# ------------------------------ parameter init --------------------------------
def _xavier_normal(key, fan_in, fan_out, shape):
    std = math.sqrt(2.0 / (fan_in + fan_out))
    return (std * jax.random.normal(key, shape)).astype(jnp.float32)


def init_params(key):
    keys = jax.random.split(key, 2 + NUM_LAYERS)
    D, F = EMBED_DIM, FFN_DIM
    tok_emb = _xavier_normal(keys[0], VOCAB_SIZE, D, (VOCAB_SIZE, D))
    pos_emb = _xavier_normal(keys[1], MAX_POSITIONS, D, (MAX_POSITIONS, D))

    n1, n2, wqkv, bqkv, wo, bo, wbc, bbc, wff, bff = ([] for _ in range(10))
    for layer in range(NUM_LAYERS):
        lk = jax.random.split(keys[2 + layer], 7)
        w_q = _xavier_normal(lk[0], D, D, (D, D))
        w_k = _xavier_normal(lk[1], D, D, (D, D))
        w_v = _xavier_normal(lk[2], D, D, (D, D))
        wqkv.append(jnp.concatenate([w_q, w_k, w_v], axis=1))      # (D, 3D)
        bqkv.append(jnp.zeros((1, 3 * D), jnp.float32))
        wo.append(_xavier_normal(lk[3], D, D, (D, D)))
        bo.append(jnp.zeros((1, D), jnp.float32))
        w_b = _xavier_normal(lk[4], D, F, (D, F))
        w_c = _xavier_normal(lk[5], D, F, (D, F))
        wbc.append(jnp.concatenate([w_b, w_c], axis=1))            # (D, 2F)
        bbc.append(jnp.zeros((1, 2 * F), jnp.float32))
        wff.append(_xavier_normal(lk[6], F, D, (F, D)))
        bff.append(jnp.zeros((1, D), jnp.float32))
        n1.append(jnp.ones((1, D), jnp.float32))
        n2.append(jnp.ones((1, D), jnp.float32))

    return dict(
        tok_emb=tok_emb, pos_emb=pos_emb,
        final_gain=jnp.ones((1, D), jnp.float32),
        norm1_gain=jnp.stack(n1), norm2_gain=jnp.stack(n2),
        w_qkv=jnp.stack(wqkv), b_qkv=jnp.stack(bqkv),
        w_o=jnp.stack(wo), b_o=jnp.stack(bo),
        w_bc=jnp.stack(wbc), b_bc=jnp.stack(bbc),
        w_ff=jnp.stack(wff), b_ff=jnp.stack(bff),
    )


# --------------------------------- forward ------------------------------------
def _full(shape):
    # whole-array block (full-extent blocks are always legal on TPU)
    return pl.BlockSpec(shape, lambda b, _s=shape: (0,) * len(_s))


def seagull_lm_forward(params, input_ids, position_ids=None):
    """Returns (lm_logits, list_of_layer_outputs) like SeagullLM.forward."""
    B, S = input_ids.shape
    if position_ids is None:
        position_ids = jnp.broadcast_to(jnp.arange(S, dtype=jnp.int32), (B, S))

    # Embedding lookup (gather) is glue, done in plain JAX indexing.
    x = (params["tok_emb"][input_ids]
         + params["pos_emb"][position_ids]).astype(jnp.float32)

    D, V, L, F = EMBED_DIM, VOCAB_SIZE, NUM_LAYERS, FFN_DIM

    logits, layer_outs = pl.pallas_call(
        _seagull_kernel,
        grid=(B,),
        in_specs=(
            pl.BlockSpec((1, S, D), lambda b: (b, 0, 0)),    # embedded input
            _full((V, D)),                                   # tok_emb (tied head)
            _full((L, 1, D)), _full((L, 1, D)),              # norm gains
            _full((L, D, 3 * D)), _full((L, 1, 3 * D)),      # fused QKV
            _full((L, D, D)), _full((L, 1, D)),              # out proj
            _full((L, D, 2 * F)), _full((L, 1, 2 * F)),      # fused GLU
            _full((L, F, D)), _full((L, 1, D)),              # FFN out
            _full((1, D)),                                   # final gain
        ),
        out_specs=(
            pl.BlockSpec((1, S, V), lambda b: (b, 0, 0)),    # logits (lane-dense)
            pl.BlockSpec((L, 1, S, D), lambda b: (0, b, 0, 0)),
        ),
        out_shape=(
            jax.ShapeDtypeStruct((B, S, V), jnp.float32),
            jax.ShapeDtypeStruct((L, B, S, D), jnp.float32),
        ),
        compiler_params=pltpu.CompilerParams(
            dimension_semantics=("parallel",)),
    )(x, params["tok_emb"], params["norm1_gain"], params["norm2_gain"],
      params["w_qkv"], params["b_qkv"], params["w_o"], params["b_o"],
      params["w_bc"], params["b_bc"], params["w_ff"], params["b_ff"],
      params["final_gain"])

    layer_outputs = [layer_outs[l] for l in range(L)]
    return logits, layer_outputs


# --------------------------- pure-JAX reference --------------------------------
def _reference_forward(params, input_ids, position_ids=None):
    B, S = input_ids.shape
    if position_ids is None:
        position_ids = jnp.broadcast_to(jnp.arange(S, dtype=jnp.int32), (B, S))
    x = (params["tok_emb"][input_ids]
         + params["pos_emb"][position_ids]).astype(jnp.float32)
    D = EMBED_DIM

    def rms(t, g):
        return t * jax.lax.rsqrt(jnp.mean(t * t, -1, keepdims=True) + EPS) * g

    outs = []
    for l in range(NUM_LAYERS):
        h = rms(x, params["norm1_gain"][l])
        qkv = h @ params["w_qkv"][l] + params["b_qkv"][l]
        q, k, v = jnp.split(qkv, 3, axis=-1)
        q = q * ATTN_SCALE
        qh = q.reshape(B, S, NUM_HEADS, HEAD_DIM).transpose(0, 2, 1, 3)
        kh = k.reshape(B, S, NUM_HEADS, HEAD_DIM).transpose(0, 2, 1, 3)
        vh = v.reshape(B, S, NUM_HEADS, HEAD_DIM).transpose(0, 2, 1, 3)
        s = jnp.einsum("bhqd,bhkd->bhqk", qh, kh)
        mask = jnp.tril(jnp.ones((S, S), bool))
        s = jnp.where(mask, s, -1e30)
        p = jax.nn.softmax(s, axis=-1)
        a = (jnp.einsum("bhqk,bhkd->bhqd", p, vh)
             .transpose(0, 2, 1, 3).reshape(B, S, D))
        x = x + (a @ params["w_o"][l] + params["b_o"][l])
        h2 = rms(x, params["norm2_gain"][l])
        bc = h2 @ params["w_bc"][l] + params["b_bc"][l]
        aa, gg = jnp.split(bc, 2, axis=-1)
        ff = (aa * jax.nn.sigmoid(gg)) @ params["w_ff"][l] + params["b_ff"][l]
        x = x + ff
        outs.append(x)
    xf = rms(x, params["final_gain"])
    outs[-1] = xf
    logits = xf @ params["tok_emb"].T
    return logits, outs


# ----------------------------------- main --------------------------------------
if __name__ == "__main__":
    key = jax.random.PRNGKey(0)
    pkey, dkey = jax.random.split(key)
    params = init_params(pkey)

    input_ids = jax.random.randint(dkey, (BATCH, SEQ), 0, VOCAB_SIZE,
                                   dtype=jnp.int32)

    logits, layer_outputs = seagull_lm_forward(params, input_ids)
    logits = jax.block_until_ready(logits)

    assert logits.shape == (BATCH, SEQ, VOCAB_SIZE)
    assert len(layer_outputs) == NUM_LAYERS
    assert layer_outputs[-1].shape == (BATCH, SEQ, EMBED_DIM)
    assert bool(jnp.all(jnp.isfinite(logits)))

    # sanity check against a pure-JAX reference (loose tol: approx reciprocal)
    ref_logits, ref_layers = _reference_forward(params, input_ids)
    assert float(jnp.max(jnp.abs(logits - ref_logits))) < 1e-1
    assert float(jnp.max(jnp.abs(layer_outputs[-1] - ref_layers[-1]))) < 1e-1

    print("KERNEL_OK")
</pallas_src>

<mosaic_0001>
module attributes {stable_mosaic.version = 11 : i64} {
  func.func @_seagull_kernel(%arg0: i32, %arg1: memref<1x8x32xf32, #tpu.memory_space<vmem>>, %arg2: memref<128x32xf32, #tpu.memory_space<vmem>>, %arg3: memref<2x1x32xf32, #tpu.memory_space<vmem>>, %arg4: memref<2x1x32xf32, #tpu.memory_space<vmem>>, %arg5: memref<2x32x96xf32, #tpu.memory_space<vmem>>, %arg6: memref<2x1x96xf32, #tpu.memory_space<vmem>>, %arg7: memref<2x32x32xf32, #tpu.memory_space<vmem>>, %arg8: memref<2x1x32xf32, #tpu.memory_space<vmem>>, %arg9: memref<2x32x128xf32, #tpu.memory_space<vmem>>, %arg10: memref<2x1x128xf32, #tpu.memory_space<vmem>>, %arg11: memref<2x64x32xf32, #tpu.memory_space<vmem>>, %arg12: memref<2x1x32xf32, #tpu.memory_space<vmem>>, %arg13: memref<1x32xf32, #tpu.memory_space<vmem>>, %arg14: memref<1x8x128xf32, #tpu.memory_space<vmem>>, %arg15: memref<2x1x8x32xf32, #tpu.memory_space<vmem>>) attributes {dimension_semantics = [#tpu.dimension_semantics<parallel>], iteration_bounds = array<i64: 2>, scalar_prefetch = 0 : i64, scratch_operands = 0 : i64, tpu.core_type = #tpu.core_type<tc>, window_params = [{transform_indices = @transform_0, window_bounds = array<i64: 1, 8, 32>}, {pipeline_mode = #tpu.pipeline_mode<synchronous>, transform_indices = @transform_1, window_bounds = array<i64: 128, 32>}, {pipeline_mode = #tpu.pipeline_mode<synchronous>, transform_indices = @transform_2, window_bounds = array<i64: 2, 1, 32>}, {pipeline_mode = #tpu.pipeline_mode<synchronous>, transform_indices = @transform_3, window_bounds = array<i64: 2, 1, 32>}, {pipeline_mode = #tpu.pipeline_mode<synchronous>, transform_indices = @transform_4, window_bounds = array<i64: 2, 32, 96>}, {pipeline_mode = #tpu.pipeline_mode<synchronous>, transform_indices = @transform_5, window_bounds = array<i64: 2, 1, 96>}, {pipeline_mode = #tpu.pipeline_mode<synchronous>, transform_indices = @transform_6, window_bounds = array<i64: 2, 32, 32>}, {pipeline_mode = #tpu.pipeline_mode<synchronous>, transform_indices = @transform_7, window_bounds = array<i64: 2, 1, 32>}, {pipeline_mode = #tpu.pipeline_mode<synchronous>, transform_indices = @transform_8, window_bounds = array<i64: 2, 32, 128>}, {pipeline_mode = #tpu.pipeline_mode<synchronous>, transform_indices = @transform_9, window_bounds = array<i64: 2, 1, 128>}, {pipeline_mode = #tpu.pipeline_mode<synchronous>, transform_indices = @transform_10, window_bounds = array<i64: 2, 64, 32>}, {pipeline_mode = #tpu.pipeline_mode<synchronous>, transform_indices = @transform_11, window_bounds = array<i64: 2, 1, 32>}, {pipeline_mode = #tpu.pipeline_mode<synchronous>, transform_indices = @transform_12, window_bounds = array<i64: 1, 32>}, {transform_indices = @transform_13, window_bounds = array<i64: 1, 8, 128>}, {transform_indices = @transform_14, window_bounds = array<i64: 2, 1, 8, 32>}]} {
    %c0 = arith.constant 0 : index
    %c0_0 = arith.constant 0 : index
    %c0_1 = arith.constant 0 : index
    %0 = vector.load %arg1[%c0, %c0_0, %c0_1] : memref<1x8x32xf32, #tpu.memory_space<vmem>>, vector<1x8x32xf32>
    %1 = vector.shape_cast %0 : vector<1x8x32xf32> to vector<8x32xf32>
    %2 = tpu.iota {dimensions = array<i32: 0>} : vector<8x8xi32>
    %3 = tpu.iota {dimensions = array<i32: 1>} : vector<8x8xi32>
    %4 = arith.cmpi sle, %3, %2 : vector<8x8xi32>
    %c0_2 = arith.constant 0 : index
    %c0_3 = arith.constant 0 : index
    %c0_4 = arith.constant 0 : index
    %5 = vector.load %arg3[%c0_2, %c0_3, %c0_4] : memref<2x1x32xf32, #tpu.memory_space<vmem>>, vector<1x1x32xf32>
    %6 = vector.shape_cast %5 : vector<1x1x32xf32> to vector<1x32xf32>
    %7 = arith.mulf %1, %1 : vector<8x32xf32>
    %cst = arith.constant dense<0.000000e+00> : vector<8xf32>
    %8 = vector.multi_reduction <add>, %7, %cst [1] : vector<8x32xf32> to vector<8xf32>
    %9 = vector.shape_cast %8 : vector<8xf32> to vector<8x1xf32>
    %cst_5 = arith.constant 3.200000e+01 : f32
    %10 = vector.broadcast %cst_5 : f32 to vector<8x1xf32>
    %11 = arith.divf %9, %10 : vector<8x1xf32>
    %cst_6 = arith.constant 9.99999993E-9 : f32
    %12 = vector.broadcast %cst_6 : f32 to vector<8x1xf32>
    %13 = arith.addf %11, %12 : vector<8x1xf32>
    %14 = math.rsqrt %13 : vector<8x1xf32>
    %15 = vector.broadcast %14 : vector<8x1xf32> to vector<8x32xf32>
    %16 = arith.mulf %1, %15 : vector<8x32xf32>
    %17 = vector.broadcast %6 : vector<1x32xf32> to vector<8x32xf32>
    %18 = arith.mulf %16, %17 : vector<8x32xf32>
    %c0_7 = arith.constant 0 : index
    %c0_8 = arith.constant 0 : index
    %c0_9 = arith.constant 0 : index
    %19 = vector.load %arg5[%c0_7, %c0_8, %c0_9] : memref<2x32x96xf32, #tpu.memory_space<vmem>>, vector<1x32x96xf32>
    %20 = vector.shape_cast %19 : vector<1x32x96xf32> to vector<32x96xf32>
    %cst_10 = arith.constant dense<0.000000e+00> : vector<8x96xf32>
    %21 = tpu.matmul %18, %20, %cst_10 {dimension_numbers = #tpu.dot_dimension_numbers<[1], [0], [0], [1], [0, 0, 1, 1], [], []>} : vector<8x32xf32>, vector<32x96xf32>, vector<8x96xf32> -> vector<8x96xf32>
    %c0_11 = arith.constant 0 : index
    %c0_12 = arith.constant 0 : index
    %c0_13 = arith.constant 0 : index
    %22 = vector.load %arg6[%c0_11, %c0_12, %c0_13] : memref<2x1x96xf32, #tpu.memory_space<vmem>>, vector<1x1x96xf32>
    %23 = vector.shape_cast %22 : vector<1x1x96xf32> to vector<1x96xf32>
    %24 = vector.broadcast %23 : vector<1x96xf32> to vector<8x96xf32>
    %25 = arith.addf %21, %24 : vector<8x96xf32>
    %26 = vector.extract_strided_slice %25 {offsets = [0, 0], sizes = [8, 32], strides = [1, 1]} : vector<8x96xf32> to vector<8x32xf32>
    %cst_14 = arith.constant 0.353553385 : f32
    %27 = vector.broadcast %cst_14 : f32 to vector<8x32xf32>
    %28 = arith.mulf %26, %27 : vector<8x32xf32>
    %29 = vector.extract_strided_slice %25 {offsets = [0, 32], sizes = [8, 32], strides = [1, 1]} : vector<8x96xf32> to vector<8x32xf32>
    %30 = vector.extract_strided_slice %25 {offsets = [0, 64], sizes = [8, 32], strides = [1, 1]} : vector<8x96xf32> to vector<8x32xf32>
    %31 = vector.extract_strided_slice %28 {offsets = [0, 0], sizes = [8, 8], strides = [1, 1]} : vector<8x32xf32> to vector<8x8xf32>
    %32 = vector.extract_strided_slice %29 {offsets = [0, 0], sizes = [8, 8], strides = [1, 1]} : vector<8x32xf32> to vector<8x8xf32>
    %33 = vector.extract_strided_slice %30 {offsets = [0, 0], sizes = [8, 8], strides = [1, 1]} : vector<8x32xf32> to vector<8x8xf32>
    %34 = tpu.transpose %32, [1, 0] : vector<8x8xf32> -> vector<8x8xf32>
    %cst_15 = arith.constant dense<0.000000e+00> : vector<8x8xf32>
    %35 = tpu.matmul %31, %34, %cst_15 {dimension_numbers = #tpu.dot_dimension_numbers<[1], [0], [0], [1], [0, 0, 1, 1], [], []>} : vector<8x8xf32>, vector<8x8xf32>, vector<8x8xf32> -> vector<8x8xf32>
    %cst_16 = arith.constant -1.000000e+30 : f32
    %36 = vector.broadcast %cst_16 : f32 to vector<8x8xf32>
    %37 = arith.select %4, %35, %36 : vector<8x8xi1>, vector<8x8xf32>
    %cst_17 = arith.constant dense<0xFF800000> : vector<8xf32>
    %38 = vector.multi_reduction <maximumf>, %37, %cst_17 [1] : vector<8x8xf32> to vector<8xf32>
    %39 = vector.shape_cast %38 : vector<8xf32> to vector<8x1xf32>
    %40 = vector.broadcast %39 : vector<8x1xf32> to vector<8x8xf32>
    %41 = arith.subf %37, %40 : vector<8x8xf32>
    %42 = math.exp %41 : vector<8x8xf32>
    %cst_18 = arith.constant dense<0.000000e+00> : vector<8xf32>
    %43 = vector.multi_reduction <add>, %42, %cst_18 [1] : vector<8x8xf32> to vector<8xf32>
    %44 = vector.shape_cast %43 : vector<8xf32> to vector<8x1xf32>
    %45 = tpu.reciprocal %44 {approx = true} : vector<8x1xf32> -> vector<8x1xf32>
    %46 = vector.broadcast %45 : vector<8x1xf32> to vector<8x8xf32>
    %47 = arith.mulf %42, %46 : vector<8x8xf32>
    %cst_19 = arith.constant dense<0.000000e+00> : vector<8x8xf32>
    %48 = tpu.matmul %47, %33, %cst_19 {dimension_numbers = #tpu.dot_dimension_numbers<[1], [0], [0], [1], [0, 0, 1, 1], [], []>} : vector<8x8xf32>, vector<8x8xf32>, vector<8x8xf32> -> vector<8x8xf32>
    %49 = vector.extract_strided_slice %28 {offsets = [0, 8], sizes = [8, 8], strides = [1, 1]} : vector<8x32xf32> to vector<8x8xf32>
    %50 = vector.extract_strided_slice %29 {offsets = [0, 8], sizes = [8, 8], strides = [1, 1]} : vector<8x32xf32> to vector<8x8xf32>
    %51 = vector.extract_strided_slice %30 {offsets = [0, 8], sizes = [8, 8], strides = [1, 1]} : vector<8x32xf32> to vector<8x8xf32>
    %52 = tpu.transpose %50, [1, 0] : vector<8x8xf32> -> vector<8x8xf32>
    %cst_20 = arith.constant dense<0.000000e+00> : vector<8x8xf32>
    %53 = tpu.matmul %49, %52, %cst_20 {dimension_numbers = #tpu.dot_dimension_numbers<[1], [0], [0], [1], [0, 0, 1, 1], [], []>} : vector<8x8xf32>, vector<8x8xf32>, vector<8x8xf32> -> vector<8x8xf32>
    %cst_21 = arith.constant -1.000000e+30 : f32
    %54 = vector.broadcast %cst_21 : f32 to vector<8x8xf32>
    %55 = arith.select %4, %53, %54 : vector<8x8xi1>, vector<8x8xf32>
    %cst_22 = arith.constant dense<0xFF800000> : vector<8xf32>
    %56 = vector.multi_reduction <maximumf>, %55, %cst_22 [1] : vector<8x8xf32> to vector<8xf32>
    %57 = vector.shape_cast %56 : vector<8xf32> to vector<8x1xf32>
    %58 = vector.broadcast %57 : vector<8x1xf32> to vector<8x8xf32>
    %59 = arith.subf %55, %58 : vector<8x8xf32>
    %60 = math.exp %59 : vector<8x8xf32>
    %cst_23 = arith.constant dense<0.000000e+00> : vector<8xf32>
    %61 = vector.multi_reduction <add>, %60, %cst_23 [1] : vector<8x8xf32> to vector<8xf32>
    %62 = vector.shape_cast %61 : vector<8xf32> to vector<8x1xf32>
    %63 = tpu.reciprocal %62 {approx = true} : vector<8x1xf32> -> vector<8x1xf32>
    %64 = vector.broadcast %63 : vector<8x1xf32> to vector<8x8xf32>
    %65 = arith.mulf %60, %64 : vector<8x8xf32>
    %cst_24 = arith.constant dense<0.000000e+00> : vector<8x8xf32>
    %66 = tpu.matmul %65, %51, %cst_24 {dimension_numbers = #tpu.dot_dimension_numbers<[1], [0], [0], [1], [0, 0, 1, 1], [], []>} : vector<8x8xf32>, vector<8x8xf32>, vector<8x8xf32> -> vector<8x8xf32>
    %67 = vector.extract_strided_slice %28 {offsets = [0, 16], sizes = [8, 8], strides = [1, 1]} : vector<8x32xf32> to vector<8x8xf32>
    %68 = vector.extract_strided_slice %29 {offsets = [0, 16], sizes = [8, 8], strides = [1, 1]} : vector<8x32xf32> to vector<8x8xf32>
    %69 = vector.extract_strided_slice %30 {offsets = [0, 16], sizes = [8, 8], strides = [1, 1]} : vector<8x32xf32> to vector<8x8xf32>
    %70 = tpu.transpose %68, [1, 0] : vector<8x8xf32> -> vector<8x8xf32>
    %cst_25 = arith.constant dense<0.000000e+00> : vector<8x8xf32>
    %71 = tpu.matmul %67, %70, %cst_25 {dimension_numbers = #tpu.dot_dimension_numbers<[1], [0], [0], [1], [0, 0, 1, 1], [], []>} : vector<8x8xf32>, vector<8x8xf32>, vector<8x8xf32> -> vector<8x8xf32>
    %cst_26 = arith.constant -1.000000e+30 : f32
    %72 = vector.broadcast %cst_26 : f32 to vector<8x8xf32>
    %73 = arith.select %4, %71, %72 : vector<8x8xi1>, vector<8x8xf32>
    %cst_27 = arith.constant dense<0xFF800000> : vector<8xf32>
    %74 = vector.multi_reduction <maximumf>, %73, %cst_27 [1] : vector<8x8xf32> to vector<8xf32>
    %75 = vector.shape_cast %74 : vector<8xf32> to vector<8x1xf32>
    %76 = vector.broadcast %75 : vector<8x1xf32> to vector<8x8xf32>
    %77 = arith.subf %73, %76 : vector<8x8xf32>
    %78 = math.exp %77 : vector<8x8xf32>
    %cst_28 = arith.constant dense<0.000000e+00> : vector<8xf32>
    %79 = vector.multi_reduction <add>, %78, %cst_28 [1] : vector<8x8xf32> to vector<8xf32>
    %80 = vector.shape_cast %79 : vector<8xf32> to vector<8x1xf32>
    %81 = tpu.reciprocal %80 {approx = true} : vector<8x1xf32> -> vector<8x1xf32>
    %82 = vector.broadcast %81 : vector<8x1xf32> to vector<8x8xf32>
    %83 = arith.mulf %78, %82 : vector<8x8xf32>
    %cst_29 = arith.constant dense<0.000000e+00> : vector<8x8xf32>
    %84 = tpu.matmul %83, %69, %cst_29 {dimension_numbers = #tpu.dot_dimension_numbers<[1], [0], [0], [1], [0, 0, 1, 1], [], []>} : vector<8x8xf32>, vector<8x8xf32>, vector<8x8xf32> -> vector<8x8xf32>
    %85 = vector.extract_strided_slice %28 {offsets = [0, 24], sizes = [8, 8], strides = [1, 1]} : vector<8x32xf32> to vector<8x8xf32>
    %86 = vector.extract_strided_slice %29 {offsets = [0, 24], sizes = [8, 8], strides = [1, 1]} : vector<8x32xf32> to vector<8x8xf32>
    %87 = vector.extract_strided_slice %30 {offsets = [0, 24], sizes = [8, 8], strides = [1, 1]} : vector<8x32xf32> to vector<8x8xf32>
    %88 = tpu.transpose %86, [1, 0] : vector<8x8xf32> -> vector<8x8xf32>
    %cst_30 = arith.constant dense<0.000000e+00> : vector<8x8xf32>
    %89 = tpu.matmul %85, %88, %cst_30 {dimension_numbers = #tpu.dot_dimension_numbers<[1], [0], [0], [1], [0, 0, 1, 1], [], []>} : vector<8x8xf32>, vector<8x8xf32>, vector<8x8xf32> -> vector<8x8xf32>
    %cst_31 = arith.constant -1.000000e+30 : f32
    %90 = vector.broadcast %cst_31 : f32 to vector<8x8xf32>
    %91 = arith.select %4, %89, %90 : vector<8x8xi1>, vector<8x8xf32>
    %cst_32 = arith.constant dense<0xFF800000> : vector<8xf32>
    %92 = vector.multi_reduction <maximumf>, %91, %cst_32 [1] : vector<8x8xf32> to vector<8xf32>
    %93 = vector.shape_cast %92 : vector<8xf32> to vector<8x1xf32>
    %94 = vector.broadcast %93 : vector<8x1xf32> to vector<8x8xf32>
    %95 = arith.subf %91, %94 : vector<8x8xf32>
    %96 = math.exp %95 : vector<8x8xf32>
    %cst_33 = arith.constant dense<0.000000e+00> : vector<8xf32>
    %97 = vector.multi_reduction <add>, %96, %cst_33 [1] : vector<8x8xf32> to vector<8xf32>
    %98 = vector.shape_cast %97 : vector<8xf32> to vector<8x1xf32>
    %99 = tpu.reciprocal %98 {approx = true} : vector<8x1xf32> -> vector<8x1xf32>
    %100 = vector.broadcast %99 : vector<8x1xf32> to vector<8x8xf32>
    %101 = arith.mulf %96, %100 : vector<8x8xf32>
    %cst_34 = arith.constant dense<0.000000e+00> : vector<8x8xf32>
    %102 = tpu.matmul %101, %87, %cst_34 {dimension_numbers = #tpu.dot_dimension_numbers<[1], [0], [0], [1], [0, 0, 1, 1], [], []>} : vector<8x8xf32>, vector<8x8xf32>, vector<8x8xf32> -> vector<8x8xf32>
    %103 = tpu.concatenate %48, %66, %84, %102 in 1 : vector<8x8xf32>, vector<8x8xf32>, vector<8x8xf32>, vector<8x8xf32> -> vector<8x32xf32>
    %c0_35 = arith.constant 0 : index
    %c0_36 = arith.constant 0 : index
    %c0_37 = arith.constant 0 : index
    %104 = vector.load %arg7[%c0_35, %c0_36, %c0_37] : memref<2x32x32xf32, #tpu.memory_space<vmem>>, vector<1x32x32xf32>
    %105 = vector.shape_cast %104 : vector<1x32x32xf32> to vector<32x32xf32>
    %cst_38 = arith.constant dense<0.000000e+00> : vector<8x32xf32>
    %106 = tpu.matmul %103, %105, %cst_38 {dimension_numbers = #tpu.dot_dimension_numbers<[1], [0], [0], [1], [0, 0, 1, 1], [], []>} : vector<8x32xf32>, vector<32x32xf32>, vector<8x32xf32> -> vector<8x32xf32>
    %c0_39 = arith.constant 0 : index
    %c0_40 = arith.constant 0 : index
    %c0_41 = arith.constant 0 : index
    %107 = vector.load %arg8[%c0_39, %c0_40, %c0_41] : memref<2x1x32xf32, #tpu.memory_space<vmem>>, vector<1x1x32xf32>
    %108 = vector.shape_cast %107 : vector<1x1x32xf32> to vector<1x32xf32>
    %109 = vector.broadcast %108 : vector<1x32xf32> to vector<8x32xf32>
    %110 = arith.addf %106, %109 : vector<8x32xf32>
    %111 = arith.addf %1, %110 : vector<8x32xf32>
    %c0_42 = arith.constant 0 : index
    %c0_43 = arith.constant 0 : index
    %c0_44 = arith.constant 0 : index
    %112 = vector.load %arg4[%c0_42, %c0_43, %c0_44] : memref<2x1x32xf32, #tpu.memory_space<vmem>>, vector<1x1x32xf32>
    %113 = vector.shape_cast %112 : vector<1x1x32xf32> to vector<1x32xf32>
    %114 = arith.mulf %111, %111 : vector<8x32xf32>
    %cst_45 = arith.constant dense<0.000000e+00> : vector<8xf32>
    %115 = vector.multi_reduction <add>, %114, %cst_45 [1] : vector<8x32xf32> to vector<8xf32>
    %116 = vector.shape_cast %115 : vector<8xf32> to vector<8x1xf32>
    %cst_46 = arith.constant 3.200000e+01 : f32
    %117 = vector.broadcast %cst_46 : f32 to vector<8x1xf32>
    %118 = arith.divf %116, %117 : vector<8x1xf32>
    %cst_47 = arith.constant 9.99999993E-9 : f32
    %119 = vector.broadcast %cst_47 : f32 to vector<8x1xf32>
    %120 = arith.addf %118, %119 : vector<8x1xf32>
    %121 = math.rsqrt %120 : vector<8x1xf32>
    %122 = vector.broadcast %121 : vector<8x1xf32> to vector<8x32xf32>
    %123 = arith.mulf %111, %122 : vector<8x32xf32>
    %124 = vector.broadcast %113 : vector<1x32xf32> to vector<8x32xf32>
    %125 = arith.mulf %123, %124 : vector<8x32xf32>
    %c0_48 = arith.constant 0 : index
    %c0_49 = arith.constant 0 : index
    %c0_50 = arith.constant 0 : index
    %126 = vector.load %arg9[%c0_48, %c0_49, %c0_50] : memref<2x32x128xf32, #tpu.memory_space<vmem>>, vector<1x32x128xf32>
    %127 = vector.shape_cast %126 : vector<1x32x128xf32> to vector<32x128xf32>
    %cst_51 = arith.constant dense<0.000000e+00> : vector<8x128xf32>
    %128 = tpu.matmul %125, %127, %cst_51 {dimension_numbers = #tpu.dot_dimension_numbers<[1], [0], [0], [1], [0, 0, 1, 1], [], []>} : vector<8x32xf32>, vector<32x128xf32>, vector<8x128xf32> -> vector<8x128xf32>
    %c0_52 = arith.constant 0 : index
    %c0_53 = arith.constant 0 : index
    %c0_54 = arith.constant 0 : index
    %129 = vector.load %arg10[%c0_52, %c0_53, %c0_54] : memref<2x1x128xf32, #tpu.memory_space<vmem>>, vector<1x1x128xf32>
    %130 = vector.shape_cast %129 : vector<1x1x128xf32> to vector<1x128xf32>
    %131 = vector.broadcast %130 : vector<1x128xf32> to vector<8x128xf32>
    %132 = arith.addf %128, %131 : vector<8x128xf32>
    %133 = vector.extract_strided_slice %132 {offsets = [0, 0], sizes = [8, 64], strides = [1, 1]} : vector<8x128xf32> to vector<8x64xf32>
    %134 = vector.extract_strided_slice %132 {offsets = [0, 64], sizes = [8, 64], strides = [1, 1]} : vector<8x128xf32> to vector<8x64xf32>
    %135 = arith.negf %134 : vector<8x64xf32>
    %136 = math.exp %135 : vector<8x64xf32>
    %cst_55 = arith.constant 1.000000e+00 : f32
    %137 = vector.broadcast %cst_55 : f32 to vector<8x64xf32>
    %138 = arith.addf %137, %136 : vector<8x64xf32>
    %139 = arith.divf %137, %138 : vector<8x64xf32>
    %140 = arith.mulf %133, %139 : vector<8x64xf32>
    %c0_56 = arith.constant 0 : index
    %c0_57 = arith.constant 0 : index
    %c0_58 = arith.constant 0 : index
    %141 = vector.load %arg11[%c0_56, %c0_57, %c0_58] : memref<2x64x32xf32, #tpu.memory_space<vmem>>, vector<1x64x32xf32>
    %142 = vector.shape_cast %141 : vector<1x64x32xf32> to vector<64x32xf32>
    %cst_59 = arith.constant dense<0.000000e+00> : vector<8x32xf32>
    %143 = tpu.matmul %140, %142, %cst_59 {dimension_numbers = #tpu.dot_dimension_numbers<[1], [0], [0], [1], [0, 0, 1, 1], [], []>} : vector<8x64xf32>, vector<64x32xf32>, vector<8x32xf32> -> vector<8x32xf32>
    %c0_60 = arith.constant 0 : index
    %c0_61 = arith.constant 0 : index
    %c0_62 = arith.constant 0 : index
    %144 = vector.load %arg12[%c0_60, %c0_61, %c0_62] : memref<2x1x32xf32, #tpu.memory_space<vmem>>, vector<1x1x32xf32>
    %145 = vector.shape_cast %144 : vector<1x1x32xf32> to vector<1x32xf32>
    %146 = vector.broadcast %145 : vector<1x32xf32> to vector<8x32xf32>
    %147 = arith.addf %143, %146 : vector<8x32xf32>
    %148 = arith.addf %111, %147 : vector<8x32xf32>
    %c0_63 = arith.constant 0 : index
    %c0_64 = arith.constant 0 : index
    %c0_65 = arith.constant 0 : index
    %c0_66 = arith.constant 0 : index
    %149 = vector.load %arg15[%c0_63, %c0_64, %c0_65, %c0_66] : memref<2x1x8x32xf32, #tpu.memory_space<vmem>>, vector<1x1x8x32xf32>
    %150 = vector.shape_cast %149 : vector<1x1x8x32xf32> to vector<8x32xf32>
    %151 = vector.shape_cast %148 : vector<8x32xf32> to vector<1x1x8x32xf32>
    tpu.vector_store %arg15[%c0_63, %c0_64, %c0_65, %c0_66], %151 {strides = array<i32>} : memref<2x1x8x32xf32, #tpu.memory_space<vmem>>, vector<1x1x8x32xf32>,
    %c1 = arith.constant 1 : index
    %c0_67 = arith.constant 0 : index
    %c0_68 = arith.constant 0 : index
    %152 = vector.load %arg3[%c1, %c0_67, %c0_68] : memref<2x1x32xf32, #tpu.memory_space<vmem>>, vector<1x1x32xf32>
    %153 = vector.shape_cast %152 : vector<1x1x32xf32> to vector<1x32xf32>
    %154 = arith.mulf %148, %148 : vector<8x32xf32>
    %cst_69 = arith.constant dense<0.000000e+00> : vector<8xf32>
    %155 = vector.multi_reduction <add>, %154, %cst_69 [1] : vector<8x32xf32> to vector<8xf32>
    %156 = vector.shape_cast %155 : vector<8xf32> to vector<8x1xf32>
    %cst_70 = arith.constant 3.200000e+01 : f32
    %157 = vector.broadcast %cst_70 : f32 to vector<8x1xf32>
    %158 = arith.divf %156, %157 : vector<8x1xf32>
    %cst_71 = arith.constant 9.99999993E-9 : f32
    %159 = vector.broadcast %cst_71 : f32 to vector<8x1xf32>
    %160 = arith.addf %158, %159 : vector<8x1xf32>
    %161 = math.rsqrt %160 : vector<8x1xf32>
    %162 = vector.broadcast %161 : vector<8x1xf32> to vector<8x32xf32>
    %163 = arith.mulf %148, %162 : vector<8x32xf32>
    %164 = vector.broadcast %153 : vector<1x32xf32> to vector<8x32xf32>
    %165 = arith.mulf %163, %164 : vector<8x32xf32>
    %c1_72 = arith.constant 1 : index
    %c0_73 = arith.constant 0 : index
    %c0_74 = arith.constant 0 : index
    %166 = vector.load %arg5[%c1_72, %c0_73, %c0_74] : memref<2x32x96xf32, #tpu.memory_space<vmem>>, vector<1x32x96xf32>
    %167 = vector.shape_cast %166 : vector<1x32x96xf32> to vector<32x96xf32>
    %cst_75 = arith.constant dense<0.000000e+00> : vector<8x96xf32>
    %168 = tpu.matmul %165, %167, %cst_75 {dimension_numbers = #tpu.dot_dimension_numbers<[1], [0], [0], [1], [0, 0, 1, 1], [], []>} : vector<8x32xf32>, vector<32x96xf32>, vector<8x96xf32> -> vector<8x96xf32>
    %c1_76 = arith.constant 1 : index
    %c0_77 = arith.constant 0 : index
    %c0_78 = arith.constant 0 : index
    %169 = vector.load %arg6[%c1_76, %c0_77, %c0_78] : memref<2x1x96xf32, #tpu.memory_space<vmem>>, vector<1x1x96xf32>
    %170 = vector.shape_cast %169 : vector<1x1x96xf32> to vector<1x96xf32>
    %171 = vector.broadcast %170 : vector<1x96xf32> to vector<8x96xf32>
    %172 = arith.addf %168, %171 : vector<8x96xf32>
    %173 = vector.extract_strided_slice %172 {offsets = [0, 0], sizes = [8, 32], strides = [1, 1]} : vector<8x96xf32> to vector<8x32xf32>
    %cst_79 = arith.constant 0.353553385 : f32
    %174 = vector.broadcast %cst_79 : f32 to vector<8x32xf32>
    %175 = arith.mulf %173, %174 : vector<8x32xf32>
    %176 = vector.extract_strided_slice %172 {offsets = [0, 32], sizes = [8, 32], strides = [1, 1]} : vector<8x96xf32> to vector<8x32xf32>
    %177 = vector.extract_strided_slice %172 {offsets = [0, 64], sizes = [8, 32], strides = [1, 1]} : vector<8x96xf32> to vector<8x32xf32>
    %178 = vector.extract_strided_slice %175 {offsets = [0, 0], sizes = [8, 8], strides = [1, 1]} : vector<8x32xf32> to vector<8x8xf32>
    %179 = vector.extract_strided_slice %176 {offsets = [0, 0], sizes = [8, 8], strides = [1, 1]} : vector<8x32xf32> to vector<8x8xf32>
    %180 = vector.extract_strided_slice %177 {offsets = [0, 0], sizes = [8, 8], strides = [1, 1]} : vector<8x32xf32> to vector<8x8xf32>
    %181 = tpu.transpose %179, [1, 0] : vector<8x8xf32> -> vector<8x8xf32>
    %cst_80 = arith.constant dense<0.000000e+00> : vector<8x8xf32>
    %182 = tpu.matmul %178, %181, %cst_80 {dimension_numbers = #tpu.dot_dimension_numbers<[1], [0], [0], [1], [0, 0, 1, 1], [], []>} : vector<8x8xf32>, vector<8x8xf32>, vector<8x8xf32> -> vector<8x8xf32>
    %cst_81 = arith.constant -1.000000e+30 : f32
    %183 = vector.broadcast %cst_81 : f32 to vector<8x8xf32>
    %184 = arith.select %4, %182, %183 : vector<8x8xi1>, vector<8x8xf32>
    %cst_82 = arith.constant dense<0xFF800000> : vector<8xf32>
    %185 = vector.multi_reduction <maximumf>, %184, %cst_82 [1] : vector<8x8xf32> to vector<8xf32>
    %186 = vector.shape_cast %185 : vector<8xf32> to vector<8x1xf32>
    %187 = vector.broadcast %186 : vector<8x1xf32> to vector<8x8xf32>
    %188 = arith.subf %184, %187 : vector<8x8xf32>
    %189 = math.exp %188 : vector<8x8xf32>
    %cst_83 = arith.constant dense<0.000000e+00> : vector<8xf32>
    %190 = vector.multi_reduction <add>, %189, %cst_83 [1] : vector<8x8xf32> to vector<8xf32>
    %191 = vector.shape_cast %190 : vector<8xf32> to vector<8x1xf32>
    %192 = tpu.reciprocal %191 {approx = true} : vector<8x1xf32> -> vector<8x1xf32>
    %193 = vector.broadcast %192 : vector<8x1xf32> to vector<8x8xf32>
    %194 = arith.mulf %189, %193 : vector<8x8xf32>
    %cst_84 = arith.constant dense<0.000000e+00> : vector<8x8xf32>
    %195 = tpu.matmul %194, %180, %cst_84 {dimension_numbers = #tpu.dot_dimension_numbers<[1], [0], [0], [1], [0, 0, 1, 1], [], []>} : vector<8x8xf32>, vector<8x8xf32>, vector<8x8xf32> -> vector<8x8xf32>
    %196 = vector.extract_strided_slice %175 {offsets = [0, 8], sizes = [8, 8], strides = [1, 1]} : vector<8x32xf32> to vector<8x8xf32>
    %197 = vector.extract_strided_slice %176 {offsets = [0, 8], sizes = [8, 8], strides = [1, 1]} : vector<8x32xf32> to vector<8x8xf32>
    %198 = vector.extract_strided_slice %177 {offsets = [0, 8], sizes = [8, 8], strides = [1, 1]} : vector<8x32xf32> to vector<8x8xf32>
    %199 = tpu.transpose %197, [1, 0] : vector<8x8xf32> -> vector<8x8xf32>
    %cst_85 = arith.constant dense<0.000000e+00> : vector<8x8xf32>
    %200 = tpu.matmul %196, %199, %cst_85 {dimension_numbers = #tpu.dot_dimension_numbers<[1], [0], [0], [1], [0, 0, 1, 1], [], []>} : vector<8x8xf32>, vector<8x8xf32>, vector<8x8xf32> -> vector<8x8xf32>
    %cst_86 = arith.constant -1.000000e+30 : f32
    %201 = vector.broadcast %cst_86 : f32 to vector<8x8xf32>
    %202 = arith.select %4, %200, %201 : vector<8x8xi1>, vector<8x8xf32>
    %cst_87 = arith.constant dense<0xFF800000> : vector<8xf32>
    %203 = vector.multi_reduction <maximumf>, %202, %cst_87 [1] : vector<8x8xf32> to vector<8xf32>
    %204 = vector.shape_cast %203 : vector<8xf32> to vector<8x1xf32>
    %205 = vector.broadcast %204 : vector<8x1xf32> to vector<8x8xf32>
    %206 = arith.subf %202, %205 : vector<8x8xf32>
    %207 = math.exp %206 : vector<8x8xf32>
    %cst_88 = arith.constant dense<0.000000e+00> : vector<8xf32>
    %208 = vector.multi_reduction <add>, %207, %cst_88 [1] : vector<8x8xf32> to vector<8xf32>
    %209 = vector.shape_cast %208 : vector<8xf32> to vector<8x1xf32>
    %210 = tpu.reciprocal %209 {approx = true} : vector<8x1xf32> -> vector<8x1xf32>
    %211 = vector.broadcast %210 : vector<8x1xf32> to vector<8x8xf32>
    %212 = arith.mulf %207, %211 : vector<8x8xf32>
    %cst_89 = arith.constant dense<0.000000e+00> : vector<8x8xf32>
    %213 = tpu.matmul %212, %198, %cst_89 {dimension_numbers = #tpu.dot_dimension_numbers<[1], [0], [0], [1], [0, 0, 1, 1], [], []>} : vector<8x8xf32>, vector<8x8xf32>, vector<8x8xf32> -> vector<8x8xf32>
    %214 = vector.extract_strided_slice %175 {offsets = [0, 16], sizes = [8, 8], strides = [1, 1]} : vector<8x32xf32> to vector<8x8xf32>
    %215 = vector.extract_strided_slice %176 {offsets = [0, 16], sizes = [8, 8], strides = [1, 1]} : vector<8x32xf32> to vector<8x8xf32>
    %216 = vector.extract_strided_slice %177 {offsets = [0, 16], sizes = [8, 8], strides = [1, 1]} : vector<8x32xf32> to vector<8x8xf32>
    %217 = tpu.transpose %215, [1, 0] : vector<8x8xf32> -> vector<8x8xf32>
    %cst_90 = arith.constant dense<0.000000e+00> : vector<8x8xf32>
    %218 = tpu.matmul %214, %217, %cst_90 {dimension_numbers = #tpu.dot_dimension_numbers<[1], [0], [0], [1], [0, 0, 1, 1], [], []>} : vector<8x8xf32>, vector<8x8xf32>, vector<8x8xf32> -> vector<8x8xf32>
    %cst_91 = arith.constant -1.000000e+30 : f32
    %219 = vector.broadcast %cst_91 : f32 to vector<8x8xf32>
    %220 = arith.select %4, %218, %219 : vector<8x8xi1>, vector<8x8xf32>
    %cst_92 = arith.constant dense<0xFF800000> : vector<8xf32>
    %221 = vector.multi_reduction <maximumf>, %220, %cst_92 [1] : vector<8x8xf32> to vector<8xf32>
    %222 = vector.shape_cast %221 : vector<8xf32> to vector<8x1xf32>
    %223 = vector.broadcast %222 : vector<8x1xf32> to vector<8x8xf32>
    %224 = arith.subf %220, %223 : vector<8x8xf32>
    %225 = math.exp %224 : vector<8x8xf32>
    %cst_93 = arith.constant dense<0.000000e+00> : vector<8xf32>
    %226 = vector.multi_reduction <add>, %225, %cst_93 [1] : vector<8x8xf32> to vector<8xf32>
    %227 = vector.shape_cast %226 : vector<8xf32> to vector<8x1xf32>
    %228 = tpu.reciprocal %227 {approx = true} : vector<8x1xf32> -> vector<8x1xf32>
    %229 = vector.broadcast %228 : vector<8x1xf32> to vector<8x8xf32>
    %230 = arith.mulf %225, %229 : vector<8x8xf32>
    %cst_94 = arith.constant dense<0.000000e+00> : vector<8x8xf32>
    %231 = tpu.matmul %230, %216, %cst_94 {dimension_numbers = #tpu.dot_dimension_numbers<[1], [0], [0], [1], [0, 0, 1, 1], [], []>} : vector<8x8xf32>, vector<8x8xf32>, vector<8x8xf32> -> vector<8x8xf32>
    %232 = vector.extract_strided_slice %175 {offsets = [0, 24], sizes = [8, 8], strides = [1, 1]} : vector<8x32xf32> to vector<8x8xf32>
    %233 = vector.extract_strided_slice %176 {offsets = [0, 24], sizes = [8, 8], strides = [1, 1]} : vector<8x32xf32> to vector<8x8xf32>
    %234 = vector.extract_strided_slice %177 {offsets = [0, 24], sizes = [8, 8], strides = [1, 1]} : vector<8x32xf32> to vector<8x8xf32>
    %235 = tpu.transpose %233, [1, 0] : vector<8x8xf32> -> vector<8x8xf32>
    %cst_95 = arith.constant dense<0.000000e+00> : vector<8x8xf32>
    %236 = tpu.matmul %232, %235, %cst_95 {dimension_numbers = #tpu.dot_dimension_numbers<[1], [0], [0], [1], [0, 0, 1, 1], [], []>} : vector<8x8xf32>, vector<8x8xf32>, vector<8x8xf32> -> vector<8x8xf32>
    %cst_96 = arith.constant -1.000000e+30 : f32
    %237 = vector.broadcast %cst_96 : f32 to vector<8x8xf32>
    %238 = arith.select %4, %236, %237 : vector<8x8xi1>, vector<8x8xf32>
    %cst_97 = arith.constant dense<0xFF800000> : vector<8xf32>
    %239 = vector.multi_reduction <maximumf>, %238, %cst_97 [1] : vector<8x8xf32> to vector<8xf32>
    %240 = vector.shape_cast %239 : vector<8xf32> to vector<8x1xf32>
    %241 = vector.broadcast %240 : vector<8x1xf32> to vector<8x8xf32>
    %242 = arith.subf %238, %241 : vector<8x8xf32>
    %243 = math.exp %242 : vector<8x8xf32>
    %cst_98 = arith.constant dense<0.000000e+00> : vector<8xf32>
    %244 = vector.multi_reduction <add>, %243, %cst_98 [1] : vector<8x8xf32> to vector<8xf32>
    %245 = vector.shape_cast %244 : vector<8xf32> to vector<8x1xf32>
    %246 = tpu.reciprocal %245 {approx = true} : vector<8x1xf32> -> vector<8x1xf32>
    %247 = vector.broadcast %246 : vector<8x1xf32> to vector<8x8xf32>
    %248 = arith.mulf %243, %247 : vector<8x8xf32>
    %cst_99 = arith.constant dense<0.000000e+00> : vector<8x8xf32>
    %249 = tpu.matmul %248, %234, %cst_99 {dimension_numbers = #tpu.dot_dimension_numbers<[1], [0], [0], [1], [0, 0, 1, 1], [], []>} : vector<8x8xf32>, vector<8x8xf32>, vector<8x8xf32> -> vector<8x8xf32>
    %250 = tpu.concatenate %195, %213, %231, %249 in 1 : vector<8x8xf32>, vector<8x8xf32>, vector<8x8xf32>, vector<8x8xf32> -> vector<8x32xf32>
    %c1_100 = arith.constant 1 : index
    %c0_101 = arith.constant 0 : index
    %c0_102 = arith.constant 0 : index
    %251 = vector.load %arg7[%c1_100, %c0_101, %c0_102] : memref<2x32x32xf32, #tpu.memory_space<vmem>>, vector<1x32x32xf32>
    %252 = vector.shape_cast %251 : vector<1x32x32xf32> to vector<32x32xf32>
    %cst_103 = arith.constant dense<0.000000e+00> : vector<8x32xf32>
    %253 = tpu.matmul %250, %252, %cst_103 {dimension_numbers = #tpu.dot_dimension_numbers<[1], [0], [0], [1], [0, 0, 1, 1], [], []>} : vector<8x32xf32>, vector<32x32xf32>, vector<8x32xf32> -> vector<8x32xf32>
    %c1_104 = arith.constant 1 : index
    %c0_105 = arith.constant 0 : index
    %c0_106 = arith.constant 0 : index
    %254 = vector.load %arg8[%c1_104, %c0_105, %c0_106] : memref<2x1x32xf32, #tpu.memory_space<vmem>>, vector<1x1x32xf32>
    %255 = vector.shape_cast %254 : vector<1x1x32xf32> to vector<1x32xf32>
    %256 = vector.broadcast %255 : vector<1x32xf32> to vector<8x32xf32>
    %257 = arith.addf %253, %256 : vector<8x32xf32>
    %258 = arith.addf %148, %257 : vector<8x32xf32>
    %c1_107 = arith.constant 1 : index
    %c0_108 = arith.constant 0 : index
    %c0_109 = arith.constant 0 : index
    %259 = vector.load %arg4[%c1_107, %c0_108, %c0_109] : memref<2x1x32xf32, #tpu.memory_space<vmem>>, vector<1x1x32xf32>
    %260 = vector.shape_cast %259 : vector<1x1x32xf32> to vector<1x32xf32>
    %261 = arith.mulf %258, %258 : vector<8x32xf32>
    %cst_110 = arith.constant dense<0.000000e+00> : vector<8xf32>
    %262 = vector.multi_reduction <add>, %261, %cst_110 [1] : vector<8x32xf32> to vector<8xf32>
    %263 = vector.shape_cast %262 : vector<8xf32> to vector<8x1xf32>
    %cst_111 = arith.constant 3.200000e+01 : f32
    %264 = vector.broadcast %cst_111 : f32 to vector<8x1xf32>
    %265 = arith.divf %263, %264 : vector<8x1xf32>
    %cst_112 = arith.constant 9.99999993E-9 : f32
    %266 = vector.broadcast %cst_112 : f32 to vector<8x1xf32>
    %267 = arith.addf %265, %266 : vector<8x1xf32>
    %268 = math.rsqrt %267 : vector<8x1xf32>
    %269 = vector.broadcast %268 : vector<8x1xf32> to vector<8x32xf32>
    %270 = arith.mulf %258, %269 : vector<8x32xf32>
    %271 = vector.broadcast %260 : vector<1x32xf32> to vector<8x32xf32>
    %272 = arith.mulf %270, %271 : vector<8x32xf32>
    %c1_113 = arith.constant 1 : index
    %c0_114 = arith.constant 0 : index
    %c0_115 = arith.constant 0 : index
    %273 = vector.load %arg9[%c1_113, %c0_114, %c0_115] : memref<2x32x128xf32, #tpu.memory_space<vmem>>, vector<1x32x128xf32>
    %274 = vector.shape_cast %273 : vector<1x32x128xf32> to vector<32x128xf32>
    %cst_116 = arith.constant dense<0.000000e+00> : vector<8x128xf32>
    %275 = tpu.matmul %272, %274, %cst_116 {dimension_numbers = #tpu.dot_dimension_numbers<[1], [0], [0], [1], [0, 0, 1, 1], [], []>} : vector<8x32xf32>, vector<32x128xf32>, vector<8x128xf32> -> vector<8x128xf32>
    %c1_117 = arith.constant 1 : index
    %c0_118 = arith.constant 0 : index
    %c0_119 = arith.constant 0 : index
    %276 = vector.load %arg10[%c1_117, %c0_118, %c0_119] : memref<2x1x128xf32, #tpu.memory_space<vmem>>, vector<1x1x128xf32>
    %277 = vector.shape_cast %276 : vector<1x1x128xf32> to vector<1x128xf32>
    %278 = vector.broadcast %277 : vector<1x128xf32> to vector<8x128xf32>
    %279 = arith.addf %275, %278 : vector<8x128xf32>
    %280 = vector.extract_strided_slice %279 {offsets = [0, 0], sizes = [8, 64], strides = [1, 1]} : vector<8x128xf32> to vector<8x64xf32>
    %281 = vector.extract_strided_slice %279 {offsets = [0, 64], sizes = [8, 64], strides = [1, 1]} : vector<8x128xf32> to vector<8x64xf32>
    %282 = arith.negf %281 : vector<8x64xf32>
    %283 = math.exp %282 : vector<8x64xf32>
    %cst_120 = arith.constant 1.000000e+00 : f32
    %284 = vector.broadcast %cst_120 : f32 to vector<8x64xf32>
    %285 = arith.addf %284, %283 : vector<8x64xf32>
    %286 = arith.divf %284, %285 : vector<8x64xf32>
    %287 = arith.mulf %280, %286 : vector<8x64xf32>
    %c1_121 = arith.constant 1 : index
    %c0_122 = arith.constant 0 : index
    %c0_123 = arith.constant 0 : index
    %288 = vector.load %arg11[%c1_121, %c0_122, %c0_123] : memref<2x64x32xf32, #tpu.memory_space<vmem>>, vector<1x64x32xf32>
    %289 = vector.shape_cast %288 : vector<1x64x32xf32> to vector<64x32xf32>
    %cst_124 = arith.constant dense<0.000000e+00> : vector<8x32xf32>
    %290 = tpu.matmul %287, %289, %cst_124 {dimension_numbers = #tpu.dot_dimension_numbers<[1], [0], [0], [1], [0, 0, 1, 1], [], []>} : vector<8x64xf32>, vector<64x32xf32>, vector<8x32xf32> -> vector<8x32xf32>
    %c1_125 = arith.constant 1 : index
    %c0_126 = arith.constant 0 : index
    %c0_127 = arith.constant 0 : index
    %291 = vector.load %arg12[%c1_125, %c0_126, %c0_127] : memref<2x1x32xf32, #tpu.memory_space<vmem>>, vector<1x1x32xf32>
    %292 = vector.shape_cast %291 : vector<1x1x32xf32> to vector<1x32xf32>
    %293 = vector.broadcast %292 : vector<1x32xf32> to vector<8x32xf32>
    %294 = arith.addf %290, %293 : vector<8x32xf32>
    %295 = arith.addf %258, %294 : vector<8x32xf32>
    %c0_128 = arith.constant 0 : index
    %c0_129 = arith.constant 0 : index
    %296 = vector.load %arg13[%c0_128, %c0_129] : memref<1x32xf32, #tpu.memory_space<vmem>>, vector<1x32xf32>
    %297 = arith.mulf %295, %295 : vector<8x32xf32>
    %cst_130 = arith.constant dense<0.000000e+00> : vector<8xf32>
    %298 = vector.multi_reduction <add>, %297, %cst_130 [1] : vector<8x32xf32> to vector<8xf32>
    %299 = vector.shape_cast %298 : vector<8xf32> to vector<8x1xf32>
    %cst_131 = arith.constant 3.200000e+01 : f32
    %300 = vector.broadcast %cst_131 : f32 to vector<8x1xf32>
    %301 = arith.divf %299, %300 : vector<8x1xf32>
    %cst_132 = arith.constant 9.99999993E-9 : f32
    %302 = vector.broadcast %cst_132 : f32 to vector<8x1xf32>
    %303 = arith.addf %301, %302 : vector<8x1xf32>
    %304 = math.rsqrt %303 : vector<8x1xf32>
    %305 = vector.broadcast %304 : vector<8x1xf32> to vector<8x32xf32>
    %306 = arith.mulf %295, %305 : vector<8x32xf32>
    %307 = vector.broadcast %296 : vector<1x32xf32> to vector<8x32xf32>
    %308 = arith.mulf %306, %307 : vector<8x32xf32>
    %c1_133 = arith.constant 1 : index
    %c0_134 = arith.constant 0 : index
    %c0_135 = arith.constant 0 : index
    %c0_136 = arith.constant 0 : index
    %309 = vector.load %arg15[%c1_133, %c0_134, %c0_135, %c0_136] : memref<2x1x8x32xf32, #tpu.memory_space<vmem>>, vector<1x1x8x32xf32>
    %310 = vector.shape_cast %309 : vector<1x1x8x32xf32> to vector<8x32xf32>
    %311 = vector.shape_cast %308 : vector<8x32xf32> to vector<1x1x8x32xf32>
    tpu.vector_store %arg15[%c1_133, %c0_134, %c0_135, %c0_136], %311 {strides = array<i32>} : memref<2x1x8x32xf32, #tpu.memory_space<vmem>>, vector<1x1x8x32xf32>,
    %c0_137 = arith.constant 0 : index
    %c0_138 = arith.constant 0 : index
    %312 = vector.load %arg2[%c0_137, %c0_138] : memref<128x32xf32, #tpu.memory_space<vmem>>, vector<128x32xf32>
    %cst_139 = arith.constant dense<0.000000e+00> : vector<8x128xf32>
    %313 = tpu.matmul %308, %312, %cst_139 {dimension_numbers = #tpu.dot_dimension_numbers<[1], [1], [0], [0], [0, 0, 1, 0], [], []>} : vector<8x32xf32>, vector<128x32xf32>, vector<8x128xf32> -> vector<8x128xf32>
    %c0_140 = arith.constant 0 : index
    %c0_141 = arith.constant 0 : index
    %c0_142 = arith.constant 0 : index
    %314 = vector.load %arg14[%c0_140, %c0_141, %c0_142] : memref<1x8x128xf32, #tpu.memory_space<vmem>>, vector<1x8x128xf32>
    %315 = vector.shape_cast %314 : vector<1x8x128xf32> to vector<8x128xf32>
    %316 = vector.shape_cast %313 : vector<8x128xf32> to vector<1x8x128xf32>
    tpu.vector_store %arg14[%c0_140, %c0_141, %c0_142], %316 {strides = array<i32>} : memref<1x8x128xf32, #tpu.memory_space<vmem>>, vector<1x8x128xf32>,
    return
  }
  func.func @transform_0(%arg0: i32) -> (i32, i32, i32) {
    %c0_i32 = arith.constant 0 : i32
    %c0_i32_0 = arith.constant 0 : i32
    %c0_i32_1 = arith.constant 0 : i32
    return %arg0, %c0_i32, %c0_i32_0 : i32, i32, i32
  }
  func.func @transform_1(%arg0: i32) -> (i32, i32) {
    %c0_i32 = arith.constant 0 : i32
    %c0_i32_0 = arith.constant 0 : i32
    %c0_i32_1 = arith.constant 0 : i32
    return %c0_i32, %c0_i32_0 : i32, i32
  }
  func.func @transform_2(%arg0: i32) -> (i32, i32, i32) {
    %c0_i32 = arith.constant 0 : i32
    %c0_i32_0 = arith.constant 0 : i32
    %c0_i32_1 = arith.constant 0 : i32
    %c0_i32_2 = arith.constant 0 : i32
    return %c0_i32, %c0_i32_0, %c0_i32_1 : i32, i32, i32
  }
  func.func @transform_3(%arg0: i32) -> (i32, i32, i32) {
    %c0_i32 = arith.constant 0 : i32
    %c0_i32_0 = arith.constant 0 : i32
    %c0_i32_1 = arith.constant 0 : i32
    %c0_i32_2 = arith.constant 0 : i32
    return %c0_i32, %c0_i32_0, %c0_i32_1 : i32, i32, i32
  }
  func.func @transform_4(%arg0: i32) -> (i32, i32, i32) {
    %c0_i32 = arith.constant 0 : i32
    %c0_i32_0 = arith.constant 0 : i32
    %c0_i32_1 = arith.constant 0 : i32
    %c0_i32_2 = arith.constant 0 : i32
    return %c0_i32, %c0_i32_0, %c0_i32_1 : i32, i32, i32
  }
  func.func @transform_5(%arg0: i32) -> (i32, i32, i32) {
    %c0_i32 = arith.constant 0 : i32
    %c0_i32_0 = arith.constant 0 : i32
    %c0_i32_1 = arith.constant 0 : i32
    %c0_i32_2 = arith.constant 0 : i32
    return %c0_i32, %c0_i32_0, %c0_i32_1 : i32, i32, i32
  }
  func.func @transform_6(%arg0: i32) -> (i32, i32, i32) {
    %c0_i32 = arith.constant 0 : i32
    %c0_i32_0 = arith.constant 0 : i32
    %c0_i32_1 = arith.constant 0 : i32
    %c0_i32_2 = arith.constant 0 : i32
    return %c0_i32, %c0_i32_0, %c0_i32_1 : i32, i32, i32
  }
  func.func @transform_7(%arg0: i32) -> (i32, i32, i32) {
    %c0_i32 = arith.constant 0 : i32
    %c0_i32_0 = arith.constant 0 : i32
    %c0_i32_1 = arith.constant 0 : i32
    %c0_i32_2 = arith.constant 0 : i32
    return %c0_i32, %c0_i32_0, %c0_i32_1 : i32, i32, i32
  }
  func.func @transform_8(%arg0: i32) -> (i32, i32, i32) {
    %c0_i32 = arith.constant 0 : i32
    %c0_i32_0 = arith.constant 0 : i32
    %c0_i32_1 = arith.constant 0 : i32
    %c0_i32_2 = arith.constant 0 : i32
    return %c0_i32, %c0_i32_0, %c0_i32_1 : i32, i32, i32
  }
  func.func @transform_9(%arg0: i32) -> (i32, i32, i32) {
    %c0_i32 = arith.constant 0 : i32
    %c0_i32_0 = arith.constant 0 : i32
    %c0_i32_1 = arith.constant 0 : i32
    %c0_i32_2 = arith.constant 0 : i32
    return %c0_i32, %c0_i32_0, %c0_i32_1 : i32, i32, i32
  }
  func.func @transform_10(%arg0: i32) -> (i32, i32, i32) {
    %c0_i32 = arith.constant 0 : i32
    %c0_i32_0 = arith.constant 0 : i32
    %c0_i32_1 = arith.constant 0 : i32
    %c0_i32_2 = arith.constant 0 : i32
    return %c0_i32, %c0_i32_0, %c0_i32_1 : i32, i32, i32
  }
  func.func @transform_11(%arg0: i32) -> (i32, i32, i32) {
    %c0_i32 = arith.constant 0 : i32
    %c0_i32_0 = arith.constant 0 : i32
    %c0_i32_1 = arith.constant 0 : i32
    %c0_i32_2 = arith.constant 0 : i32
    return %c0_i32, %c0_i32_0, %c0_i32_1 : i32, i32, i32
  }
  func.func @transform_12(%arg0: i32) -> (i32, i32) {
    %c0_i32 = arith.constant 0 : i32
    %c0_i32_0 = arith.constant 0 : i32
    %c0_i32_1 = arith.constant 0 : i32
    return %c0_i32, %c0_i32_0 : i32, i32
  }
  func.func @transform_13(%arg0: i32) -> (i32, i32, i32) {
    %c0_i32 = arith.constant 0 : i32
    %c0_i32_0 = arith.constant 0 : i32
    %c0_i32_1 = arith.constant 0 : i32
    return %arg0, %c0_i32, %c0_i32_0 : i32, i32, i32
  }
  func.func @transform_14(%arg0: i32) -> (i32, i32, i32, i32) {
    %c0_i32 = arith.constant 0 : i32
    %c0_i32_0 = arith.constant 0 : i32
    %c0_i32_1 = arith.constant 0 : i32
    %c0_i32_2 = arith.constant 0 : i32
    return %c0_i32, %arg0, %c0_i32_0, %c0_i32_1 : i32, i32, i32, i32
  }
}

</mosaic_0001>

<llo_original>
// kernel: tpu_custom_call.1
$region0: #{tpu_custom_call.1}
  #allocation0 [shape = 'u32[]', space=smem, size = 0x4, offset = 0x4, fixed_abs, tag = 'smem constant byte address 0x4 - core index']
  #allocation1 [shape = 'u32[144,128]{1,0:T(1,128)}', space=vmem, size = 0x12000, scoped, tag = 'internal scratch']
  %s0 = inlined_call_operand.vmem [shape: f32[2,8,32], index: 0, kind: input, shape index: {}]
  %s1 = inlined_call_operand.vmem [shape: f32[128,32], index: 1, kind: input, shape index: {}]
  %s2 = inlined_call_operand.vmem [shape: f32[2,1,32], index: 2, kind: input, shape index: {}]
  %s3 = inlined_call_operand.vmem [shape: f32[2,1,32], index: 3, kind: input, shape index: {}]
  %s4 = inlined_call_operand.vmem [shape: f32[2,32,96], index: 4, kind: input, shape index: {}]
  %s5 = inlined_call_operand.vmem [shape: f32[2,1,96], index: 5, kind: input, shape index: {}]
  %s6 = inlined_call_operand.vmem [shape: f32[2,32,32], index: 6, kind: input, shape index: {}]
  %s7 = inlined_call_operand.vmem [shape: f32[2,1,32], index: 7, kind: input, shape index: {}]
  %s8 = inlined_call_operand.vmem [shape: f32[2,32,128], index: 8, kind: input, shape index: {}]
  %s9 = inlined_call_operand.vmem [shape: f32[2,1,128], index: 9, kind: input, shape index: {}]
  %s10 = inlined_call_operand.vmem [shape: f32[2,64,32], index: 10, kind: input, shape index: {}]
  %s11 = inlined_call_operand.vmem [shape: f32[2,1,32], index: 11, kind: input, shape index: {}]
  %s12 = inlined_call_operand.vmem [shape: f32[1,32], index: 12, kind: input, shape index: {}]
  %s13 = inlined_call_operand.hbm [shape: f32[2,8,128], index: 13, kind: output, shape index: {0}]
  %s14 = inlined_call_operand.hbm [shape: f32[2,2,8,32], index: 14, kind: output, shape index: {1}]
  %15 = xla_tuple %s13, %s14
  %s16 = sld [smem:[#allocation0]]
  $region93: #{tpu_custom_call.1} parent=0
    _
  %s18 = ssub.s32 1, %s16
  %s19 = scalar_select 0, %s18, %s16
  $region1: #{tpu_custom_call.1} parent=0
    #allocation2 [shape = 'u8[8192]{0}', space=vmem, size = 0x2000, scoped, tag = 'output window, operand 0']
    #allocation3 [shape = 's32[2]{0}', space=sflag, size = 0x8, scoped, tag = 'scoped memory for tpu_custom_call.1']
    #allocation4 [shape = 'u8[16384]{0}', space=vmem, size = 0x4000, scoped, tag = 'output window, operand 1']
    #allocation5 [shape = 's32[2]{0}', space=sflag, size = 0x8, scoped, tag = 'scoped memory for tpu_custom_call.1']
    %20 = vsyncpa [#allocation3], 0
    %s21 = scalar_lea.sflag [#allocation3], 1
    %22 = vsyncpa %s21, 0
    %23 = vsyncpa [#allocation5], 0
    %s24 = scalar_lea.sflag [#allocation5], 1
    %25 = vsyncpa %s24, 0
    loop: start=0, step=1, limit=4
    $region2: #{tpu_custom_call.1} parent=1 // loop_pre_header
      _
    $region3: #{tpu_custom_call.1} parent=1 // loop_header
      %s27 = sphi 0, %s31
      %p28 = scmp.ge.s32.totalorder %s27, 4
      %s37 = sphi 0, %s39
      %s40 = sphi 0, %s37
      %s41 = sphi 0, %s40
      %s57 = sphi 0, %s41
      %s61 = sphi 0, %s61
      %s63 = sphi 0, %s61
      %s64 = sphi 0, %s63
      %s78 = sphi 0, %s64
      %s82 = sphi 0, %s82
      %s84 = sphi 0, %s82
      %s85 = sphi 0, %s84
      %s99 = sphi 0, %s85
      %s103 = sphi 0, %s103
      %s105 = sphi 0, %s103
      %s106 = sphi 0, %s105
      %s120 = sphi 0, %s106
      %s124 = sphi 0, %s124
      %s126 = sphi 0, %s124
      %s127 = sphi 0, %s126
      %s141 = sphi 0, %s127
      %s145 = sphi 0, %s145
      %s147 = sphi 0, %s145
      %s148 = sphi 0, %s147
      %s162 = sphi 0, %s148
      %s166 = sphi 0, %s166
      %s168 = sphi 0, %s166
      %s169 = sphi 0, %s168
      %s183 = sphi 0, %s169
      %s187 = sphi 0, %s187
      %s189 = sphi 0, %s187
      %s190 = sphi 0, %s189
      %s204 = sphi 0, %s190
      %s208 = sphi 0, %s208
      %s210 = sphi 0, %s208
      %s211 = sphi 0, %s210
      %s225 = sphi 0, %s211
      %s229 = sphi 0, %s229
      %s231 = sphi 0, %s229
      %s232 = sphi 0, %s231
      %s246 = sphi 0, %s232
      %s250 = sphi 0, %s250
      %s252 = sphi 0, %s250
      %s253 = sphi 0, %s252
      %s267 = sphi 0, %s253
      %s271 = sphi 0, %s271
      %s273 = sphi 0, %s271
      %s274 = sphi 0, %s273
      %s288 = sphi 0, %s274
      %s292 = sphi 0, %s292
      %s294 = sphi 0, %s292
      %s295 = sphi 0, %s294
      %s309 = sphi 0, %s295
      %s315 = sphi 0, %s317
      %s318 = sphi 0, %s315
      %s319 = sphi 0, %s318
      %s335 = sphi 0, %s319
      %s341 = sphi 0, %s343
      %s344 = sphi 0, %s341
      %s345 = sphi 0, %s344
      %s361 = sphi 0, %s345
    $region4: #{tpu_custom_call.1} parent=1 // loop_header_branch
      %30 = sbr.rel (%p28) target = $region8
    $region5: #{tpu_custom_call.1} parent=1 // loop_body
      %s32 = ssub.s32 %s27, 1
      %s33 = ssub.s32 %s27, 2
      %s34 = sadd.s32 %s27, 1
      %s35 = ssub.s32 %s27, %s34
      %p36 = scmp.eq.s32.totalorder %s35, 0
      %s38 = sadd.s32 %s37, 1
      %s39 = scalar_select %p36, %s37, %s38
      %p42 = pneg %p36
      %p43 = scmp.eq.s32.totalorder %s27, 1
      %p44 = por %p42, %p43
      %p45 = scmp.ne.s32.totalorder %s37, %s40
      %p46 = scmp.eq.s32.totalorder %s27, 0
      %p47 = por %p45, %p46
      %p48 = scmp.ne.s32.totalorder %s37, %s40
      %p49 = scmp.eq.s32.totalorder %s32, 1
      %p50 = por %p48, %p49
      %p51 = scmp.ne.s32.totalorder %s40, %s41
      %p52 = scmp.eq.s32.totalorder %s32, 0
      %p53 = por %p51, %p52
      %p54 = scmp.ne.s32.totalorder %s40, %s41
      %p55 = scmp.eq.s32.totalorder %s33, 1
      %p56 = por %p54, %p55
      %p58 = scmp.ne.s32.totalorder %s41, %s57
      %p59 = scmp.eq.s32.totalorder %s33, 0
      %p60 = por %p58, %p59
      %s62 = sadd.s32 %s61, 1
      %p65 = scmp.eq.s32.totalorder %s27, 1
      %p66 = scmp.ne.s32.totalorder %s61, %s63
      %p67 = scmp.eq.s32.totalorder %s27, 0
      %p68 = por %p66, %p67
      %p69 = scmp.ne.s32.totalorder %s61, %s63
      %p70 = scmp.eq.s32.totalorder %s32, 1
      %p71 = por %p69, %p70
      %p72 = scmp.ne.s32.totalorder %s63, %s64
      %p73 = scmp.eq.s32.totalorder %s32, 0
      %p74 = por %p72, %p73
      %p75 = scmp.ne.s32.totalorder %s63, %s64
      %p76 = scmp.eq.s32.totalorder %s33, 1
      %p77 = por %p75, %p76
      %p79 = scmp.ne.s32.totalorder %s64, %s78
      %p80 = scmp.eq.s32.totalorder %s33, 0
      %p81 = por %p79, %p80
      %s83 = sadd.s32 %s82, 1
      %p86 = scmp.eq.s32.totalorder %s27, 1
      %p87 = scmp.ne.s32.totalorder %s82, %s84
      %p88 = scmp.eq.s32.totalorder %s27, 0
      %p89 = por %p87, %p88
      %p90 = scmp.ne.s32.totalorder %s82, %s84
      %p91 = scmp.eq.s32.totalorder %s32, 1
      %p92 = por %p90, %p91
      %p93 = scmp.ne.s32.totalorder %s84, %s85
      %p94 = scmp.eq.s32.totalorder %s32, 0
      %p95 = por %p93, %p94
      %p96 = scmp.ne.s32.totalorder %s84, %s85
      %p97 = scmp.eq.s32.totalorder %s33, 1
      %p98 = por %p96, %p97
      %p100 = scmp.ne.s32.totalorder %s85, %s99
      %p101 = scmp.eq.s32.totalorder %s33, 0
      %p102 = por %p100, %p101
      %s104 = sadd.s32 %s103, 1
      %p107 = scmp.eq.s32.totalorder %s27, 1
      %p108 = scmp.ne.s32.totalorder %s103, %s105
      %p109 = scmp.eq.s32.totalorder %s27, 0
      %p110 = por %p108, %p109
      %p111 = scmp.ne.s32.totalorder %s103, %s105
      %p112 = scmp.eq.s32.totalorder %s32, 1
      %p113 = por %p111, %p112
      %p114 = scmp.ne.s32.totalorder %s105, %s106
      %p115 = scmp.eq.s32.totalorder %s32, 0
      %p116 = por %p114, %p115
      %p117 = scmp.ne.s32.totalorder %s105, %s106
      %p118 = scmp.eq.s32.totalorder %s33, 1
      %p119 = por %p117, %p118
      %p121 = scmp.ne.s32.totalorder %s106, %s120
      %p122 = scmp.eq.s32.totalorder %s33, 0
      %p123 = por %p121, %p122
      %s125 = sadd.s32 %s124, 1
      %p128 = scmp.eq.s32.totalorder %s27, 1
      %p129 = scmp.ne.s32.totalorder %s124, %s126
      %p130 = scmp.eq.s32.totalorder %s27, 0
      %p131 = por %p129, %p130
      %p132 = scmp.ne.s32.totalorder %s124, %s126
      %p133 = scmp.eq.s32.totalorder %s32, 1
      %p134 = por %p132, %p133
      %p135 = scmp.ne.s32.totalorder %s126, %s127
      %p136 = scmp.eq.s32.totalorder %s32, 0
      %p137 = por %p135, %p136
      %p138 = scmp.ne.s32.totalorder %s126, %s127
      %p139 = scmp.eq.s32.totalorder %s33, 1
      %p140 = por %p138, %p139
      %p142 = scmp.ne.s32.totalorder %s127, %s141
      %p143 = scmp.eq.s32.totalorder %s33, 0
      %p144 = por %p142, %p143
      %s146 = sadd.s32 %s145, 1
      %p149 = scmp.eq.s32.totalorder %s27, 1
      %p150 = scmp.ne.s32.totalorder %s145, %s147
      %p151 = scmp.eq.s32.totalorder %s27, 0
      %p152 = por %p150, %p151
      %p153 = scmp.ne.s32.totalorder %s145, %s147
      %p154 = scmp.eq.s32.totalorder %s32, 1
      %p155 = por %p153, %p154
      %p156 = scmp.ne.s32.totalorder %s147, %s148
      %p157 = scmp.eq.s32.totalorder %s32, 0
      %p158 = por %p156, %p157
      %p159 = scmp.ne.s32.totalorder %s147, %s148
      %p160 = scmp.eq.s32.totalorder %s33, 1
      %p161 = por %p159, %p160
      %p163 = scmp.ne.s32.totalorder %s148, %s162
      %p164 = scmp.eq.s32.totalorder %s33, 0
      %p165 = por %p163, %p164
      %s167 = sadd.s32 %s166, 1
      %p170 = scmp.eq.s32.totalorder %s27, 1
      %p171 = scmp.ne.s32.totalorder %s166, %s168
      %p172 = scmp.eq.s32.totalorder %s27, 0
      %p173 = por %p171, %p172
      %p174 = scmp.ne.s32.totalorder %s166, %s168
      %p175 = scmp.eq.s32.totalorder %s32, 1
      %p176 = por %p174, %p175
      %p177 = scmp.ne.s32.totalorder %s168, %s169
      %p178 = scmp.eq.s32.totalorder %s32, 0
      %p179 = por %p177, %p178
      %p180 = scmp.ne.s32.totalorder %s168, %s169
      %p181 = scmp.eq.s32.totalorder %s33, 1
      %p182 = por %p180, %p181
      %p184 = scmp.ne.s32.totalorder %s169, %s183
      %p185 = scmp.eq.s32.totalorder %s33, 0
      %p186 = por %p184, %p185
      %s188 = sadd.s32 %s187, 1
      %p191 = scmp.eq.s32.totalorder %s27, 1
      %p192 = scmp.ne.s32.totalorder %s187, %s189
      %p193 = scmp.eq.s32.totalorder %s27, 0
      %p194 = por %p192, %p193
      %p195 = scmp.ne.s32.totalorder %s187, %s189
      %p196 = scmp.eq.s32.totalorder %s32, 1
      %p197 = por %p195, %p196
      %p198 = scmp.ne.s32.totalorder %s189, %s190
      %p199 = scmp.eq.s32.totalorder %s32, 0
      %p200 = por %p198, %p199
      %p201 = scmp.ne.s32.totalorder %s189, %s190
      %p202 = scmp.eq.s32.totalorder %s33, 1
      %p203 = por %p201, %p202
      %p205 = scmp.ne.s32.totalorder %s190, %s204
      %p206 = scmp.eq.s32.totalorder %s33, 0
      %p207 = por %p205, %p206
      %s209 = sadd.s32 %s208, 1
      %p212 = scmp.eq.s32.totalorder %s27, 1
      %p213 = scmp.ne.s32.totalorder %s208, %s210
      %p214 = scmp.eq.s32.totalorder %s27, 0
      %p215 = por %p213, %p214
      %p216 = scmp.ne.s32.totalorder %s208, %s210
      %p217 = scmp.eq.s32.totalorder %s32, 1
      %p218 = por %p216, %p217
      %p219 = scmp.ne.s32.totalorder %s210, %s211
      %p220 = scmp.eq.s32.totalorder %s32, 0
      %p221 = por %p219, %p220
      %p222 = scmp.ne.s32.totalorder %s210, %s211
      %p223 = scmp.eq.s32.totalorder %s33, 1
      %p224 = por %p222, %p223
      %p226 = scmp.ne.s32.totalorder %s211, %s225
      %p227 = scmp.eq.s32.totalorder %s33, 0
      %p228 = por %p226, %p227
      %s230 = sadd.s32 %s229, 1
      %p233 = scmp.eq.s32.totalorder %s27, 1
      %p234 = scmp.ne.s32.totalorder %s229, %s231
      %p235 = scmp.eq.s32.totalorder %s27, 0
      %p236 = por %p234, %p235
      %p237 = scmp.ne.s32.totalorder %s229, %s231
      %p238 = scmp.eq.s32.totalorder %s32, 1
      %p239 = por %p237, %p238
      %p240 = scmp.ne.s32.totalorder %s231, %s232
      %p241 = scmp.eq.s32.totalorder %s32, 0
      %p242 = por %p240, %p241
      %p243 = scmp.ne.s32.totalorder %s231, %s232
      %p244 = scmp.eq.s32.totalorder %s33, 1
      %p245 = por %p243, %p244
      %p247 = scmp.ne.s32.totalorder %s232, %s246
      %p248 = scmp.eq.s32.totalorder %s33, 0
      %p249 = por %p247, %p248
      %s251 = sadd.s32 %s250, 1
      %p254 = scmp.eq.s32.totalorder %s27, 1
      %p255 = scmp.ne.s32.totalorder %s250, %s252
      %p256 = scmp.eq.s32.totalorder %s27, 0
      %p257 = por %p255, %p256
      %p258 = scmp.ne.s32.totalorder %s250, %s252
      %p259 = scmp.eq.s32.totalorder %s32, 1
      %p260 = por %p258, %p259
      %p261 = scmp.ne.s32.totalorder %s252, %s253
      %p262 = scmp.eq.s32.totalorder %s32, 0
      %p263 = por %p261, %p262
      %p264 = scmp.ne.s32.totalorder %s252, %s253
      %p265 = scmp.eq.s32.totalorder %s33, 1
      %p266 = por %p264, %p265
      %p268 = scmp.ne.s32.totalorder %s253, %s267
      %p269 = scmp.eq.s32.totalorder %s33, 0
      %p270 = por %p268, %p269
      %s272 = sadd.s32 %s271, 1
      %p275 = scmp.eq.s32.totalorder %s27, 1
      %p276 = scmp.ne.s32.totalorder %s271, %s273
      %p277 = scmp.eq.s32.totalorder %s27, 0
      %p278 = por %p276, %p277
      %p279 = scmp.ne.s32.totalorder %s271, %s273
      %p280 = scmp.eq.s32.totalorder %s32, 1
      %p281 = por %p279, %p280
      %p282 = scmp.ne.s32.totalorder %s273, %s274
      %p283 = scmp.eq.s32.totalorder %s32, 0
      %p284 = por %p282, %p283
      %p285 = scmp.ne.s32.totalorder %s273, %s274
      %p286 = scmp.eq.s32.totalorder %s33, 1
      %p287 = por %p285, %p286
      %p289 = scmp.ne.s32.totalorder %s274, %s288
      %p290 = scmp.eq.s32.totalorder %s33, 0
      %p291 = por %p289, %p290
      %s293 = sadd.s32 %s292, 1
      %p296 = scmp.eq.s32.totalorder %s27, 1
      %p297 = scmp.ne.s32.totalorder %s292, %s294
      %p298 = scmp.eq.s32.totalorder %s27, 0
      %p299 = por %p297, %p298
      %p300 = scmp.ne.s32.totalorder %s292, %s294
      %p301 = scmp.eq.s32.totalorder %s32, 1
      %p302 = por %p300, %p301
      %p303 = scmp.ne.s32.totalorder %s294, %s295
      %p304 = scmp.eq.s32.totalorder %s32, 0
      %p305 = por %p303, %p304
      %p306 = scmp.ne.s32.totalorder %s294, %s295
      %p307 = scmp.eq.s32.totalorder %s33, 1
      %p308 = por %p306, %p307
      %p310 = scmp.ne.s32.totalorder %s295, %s309
      %p311 = scmp.eq.s32.totalorder %s33, 0
      %p312 = por %p310, %p311
      %s313 = ssub.s32 %s27, %s34
      %p314 = scmp.eq.s32.totalorder %s313, 0
      %s316 = sadd.s32 %s315, 1
      %s317 = scalar_select %p314, %s315, %s316
      %p320 = pneg %p314
      %p321 = scmp.eq.s32.totalorder %s27, 1
      %p322 = por %p320, %p321
      %p323 = scmp.ne.s32.totalorder %s315, %s318
      %p324 = scmp.eq.s32.totalorder %s27, 0
      %p325 = por %p323, %p324
      %p326 = scmp.ne.s32.totalorder %s315, %s318
      %p327 = scmp.eq.s32.totalorder %s32, 1
      %p328 = por %p326, %p327
      %p329 = scmp.ne.s32.totalorder %s318, %s319
      %p330 = scmp.eq.s32.totalorder %s32, 0
      %p331 = por %p329, %p330
      %p332 = scmp.ne.s32.totalorder %s318, %s319
      %p333 = scmp.eq.s32.totalorder %s33, 1
      %p334 = por %p332, %p333
      %p336 = scmp.ne.s32.totalorder %s319, %s335
      %p337 = scmp.eq.s32.totalorder %s33, 0
      %p338 = por %p336, %p337
      %s339 = ssub.s32 %s27, %s34
      %p340 = scmp.eq.s32.totalorder %s339, 0
      %s342 = sadd.s32 %s341, 1
      %s343 = scalar_select %p340, %s341, %s342
      %p346 = pneg %p340
      %p347 = scmp.eq.s32.totalorder %s27, 1
      %p348 = por %p346, %p347
      %p349 = scmp.ne.s32.totalorder %s341, %s344
      %p350 = scmp.eq.s32.totalorder %s27, 0
      %p351 = por %p349, %p350
      %p352 = scmp.ne.s32.totalorder %s341, %s344
      %p353 = scmp.eq.s32.totalorder %s32, 1
      %p354 = por %p352, %p353
      %p355 = scmp.ne.s32.totalorder %s344, %s345
      %p356 = scmp.eq.s32.totalorder %s32, 0
      %p357 = por %p355, %p356
      %p358 = scmp.ne.s32.totalorder %s344, %s345
      %p359 = scmp.eq.s32.totalorder %s33, 1
      %p360 = por %p358, %p359
      %p362 = scmp.ne.s32.totalorder %s345, %s361
      %p363 = scmp.eq.s32.totalorder %s33, 0
      %p364 = por %p362, %p363
      %p365 = scmp.le.s32.totalorder 1, %s27
      %p366 = scmp.lt.s32.totalorder %s27, 3
      %p367 = pnand %p365, %p366
      %p368 = pneg %p367
      // Predicated region
      $region9: #{tpu_custom_call.1} parent=5 // pred_check
        _
      $region10: #{tpu_custom_call.1} parent=5 // pred_check_branch
        %370 = sbr.rel (%p367) target = $region12
      $region11: #{tpu_custom_call.1} parent=5 // pred_region
        %s371 = ssub.s32 %s27, 1
        // Predicated region
        $region13: #{tpu_custom_call.1} parent=11 // pred_check
          %p372 = pneg %p74
        $region14: #{tpu_custom_call.1} parent=11 // pred_check_branch
          %374 = sbr.rel (%p372) target = $region16
        $region15: #{tpu_custom_call.1} parent=11 // pred_region
          _
        $region16: #{tpu_custom_call.1} parent=11 // pred_fallthru
          _
        // Predicated region
        $region17: #{tpu_custom_call.1} parent=11 // pred_check
          %p375 = pneg %p95
        $region18: #{tpu_custom_call.1} parent=11 // pred_check_branch
          %377 = sbr.rel (%p375) target = $region20
        $region19: #{tpu_custom_call.1} parent=11 // pred_region
          _
        $region20: #{tpu_custom_call.1} parent=11 // pred_fallthru
          _
        // Predicated region
        $region21: #{tpu_custom_call.1} parent=11 // pred_check
          %p378 = pneg %p116
        $region22: #{tpu_custom_call.1} parent=11 // pred_check_branch
          %380 = sbr.rel (%p378) target = $region24
        $region23: #{tpu_custom_call.1} parent=11 // pred_region
          _
        $region24: #{tpu_custom_call.1} parent=11 // pred_fallthru
          _
        // Predicated region
        $region25: #{tpu_custom_call.1} parent=11 // pred_check
          %p381 = pneg %p137
        $region26: #{tpu_custom_call.1} parent=11 // pred_check_branch
          %383 = sbr.rel (%p381) target = $region28
        $region27: #{tpu_custom_call.1} parent=11 // pred_region
          _
        $region28: #{tpu_custom_call.1} parent=11 // pred_fallthru
          _
        // Predicated region
        $region29: #{tpu_custom_call.1} parent=11 // pred_check
          %p384 = pneg %p158
        $region30: #{tpu_custom_call.1} parent=11 // pred_check_branch
          %386 = sbr.rel (%p384) target = $region32
        $region31: #{tpu_custom_call.1} parent=11 // pred_region
          _
        $region32: #{tpu_custom_call.1} parent=11 // pred_fallthru
          _
        // Predicated region
        $region33: #{tpu_custom_call.1} parent=11 // pred_check
          %p387 = pneg %p179
        $region34: #{tpu_custom_call.1} parent=11 // pred_check_branch
          %389 = sbr.rel (%p387) target = $region36
        $region35: #{tpu_custom_call.1} parent=11 // pred_region
          _
        $region36: #{tpu_custom_call.1} parent=11 // pred_fallthru
          _
        // Predicated region
        $region37: #{tpu_custom_call.1} parent=11 // pred_check
          %p390 = pneg %p200
        $region38: #{tpu_custom_call.1} parent=11 // pred_check_branch
          %392 = sbr.rel (%p390) target = $region40
        $region39: #{tpu_custom_call.1} parent=11 // pred_region
          _
        $region40: #{tpu_custom_call.1} parent=11 // pred_fallthru
          _
        // Predicated region
        $region41: #{tpu_custom_call.1} parent=11 // pred_check
          %p393 = pneg %p221
        $region42: #{tpu_custom_call.1} parent=11 // pred_check_branch
          %395 = sbr.rel (%p393) target = $region44
        $region43: #{tpu_custom_call.1} parent=11 // pred_region
          _
        $region44: #{tpu_custom_call.1} parent=11 // pred_fallthru
          _
        // Predicated region
        $region45: #{tpu_custom_call.1} parent=11 // pred_check
          %p396 = pneg %p242
        $region46: #{tpu_custom_call.1} parent=11 // pred_check_branch
          %398 = sbr.rel (%p396) target = $region48
        $region47: #{tpu_custom_call.1} parent=11 // pred_region
          _
        $region48: #{tpu_custom_call.1} parent=11 // pred_fallthru
          _
        // Predicated region
        $region49: #{tpu_custom_call.1} parent=11 // pred_check
          %p399 = pneg %p263
        $region50: #{tpu_custom_call.1} parent=11 // pred_check_branch
          %401 = sbr.rel (%p399) target = $region52
        $region51: #{tpu_custom_call.1} parent=11 // pred_region
          _
        $region52: #{tpu_custom_call.1} parent=11 // pred_fallthru
          _
        // Predicated region
        $region53: #{tpu_custom_call.1} parent=11 // pred_check
          %p402 = pneg %p284
        $region54: #{tpu_custom_call.1} parent=11 // pred_check_branch
          %404 = sbr.rel (%p402) target = $region56
        $region55: #{tpu_custom_call.1} parent=11 // pred_region
          _
        $region56: #{tpu_custom_call.1} parent=11 // pred_fallthru
          _
        // Predicated region
        $region57: #{tpu_custom_call.1} parent=11 // pred_check
          %p405 = pneg %p305
        $region58: #{tpu_custom_call.1} parent=11 // pred_check_branch
          %407 = sbr.rel (%p405) target = $region60
        $region59: #{tpu_custom_call.1} parent=11 // pred_region
          _
        $region60: #{tpu_custom_call.1} parent=11 // pred_fallthru
          _
      $region12: #{tpu_custom_call.1} parent=5 // pred_fallthru
        _
      %p408 = scmp.lt.s32.totalorder %s27, 2
      // Predicated region
      $region61: #{tpu_custom_call.1} parent=5 // pred_check
        %p409 = pneg %p408
      $region62: #{tpu_custom_call.1} parent=5 // pred_check_branch
        %411 = sbr.rel (%p409) target = $region64
      $region63: #{tpu_custom_call.1} parent=5 // pred_region
        // Predicated region
        $region65: #{tpu_custom_call.1} parent=63 // pred_check
          %p412 = pneg %p47
        $region66: #{tpu_custom_call.1} parent=63 // pred_check_branch
          %414 = sbr.rel (%p412) target = $region68
        $region67: #{tpu_custom_call.1} parent=63 // pred_region
          %p415 = scmp.lt.s32.totalorder %s27, 1
          %s416 = scalar_select %p415, %s27, 1
          %s417 = smul.addr %s416, 8
          %s418 = scalar_lea.vmem %s0, %s417
        $region68: #{tpu_custom_call.1} parent=63 // pred_fallthru
          _
      $region64: #{tpu_custom_call.1} parent=5 // pred_fallthru
        _
      %p419 = scmp.le.s32.totalorder 1, %s27
      %p420 = scmp.lt.s32.totalorder %s27, 3
      %p421 = pnand %p419, %p420
      %p422 = pneg %p421
      // Predicated region
      $region69: #{tpu_custom_call.1} parent=5 // pred_check
        _
      $region70: #{tpu_custom_call.1} parent=5 // pred_check_branch
        %424 = sbr.rel (%p421) target = $region72
      $region71: #{tpu_custom_call.1} parent=5 // pred_region
        %s425 = ssub.s32 %s27, 1
        %p426 = scmp.lt.s32.totalorder %s32, 1
        %s427 = scalar_select %p426, %s32, 1
        %s428 = smul.addr %s427, 8
        %s429 = scalar_lea.vmem %s0, %s428
        %p430 = pneg %p53
        %p431 = pneg %p50
        %p432 = pneg %p74
        %p433 = pneg %p71
        %p434 = pneg %p95
        %p435 = pneg %p92
        %p436 = pneg %p116
        %p437 = pneg %p113
        %p438 = pneg %p137
        %p439 = pneg %p134
        %p440 = pneg %p158
        %p441 = pneg %p155
        %p442 = pneg %p179
        %p443 = pneg %p176
        %p444 = pneg %p200
        %p445 = pneg %p197
        %p446 = pneg %p221
        %p447 = pneg %p218
        %p448 = pneg %p242
        %p449 = pneg %p239
        %p450 = pneg %p263
        %p451 = pneg %p260
        %p452 = pneg %p284
        %p453 = pneg %p281
        %p454 = pneg %p305
        %p455 = pneg %p302
        %p456 = pneg %p331
        %p457 = pneg %p328
        %s458 = sand.u32 %s318, 1
        %s459 = scalar_lea.sflag [#allocation3], %s458
        %s460 = sand.u32 %s318, 1
        %s461 = smul.addr %s460, 8
        %s462 = scalar_lea.vmem [#allocation2], %s461
        %p463 = pneg %p357
        %p464 = pneg %p354
        %s465 = sand.u32 %s344, 1
        %s466 = scalar_lea.sflag [#allocation5], %s465
        %s467 = sand.u32 %s344, 1
        %s468 = smul.addr %s467, 16
        %s469 = scalar_lea.vmem [#allocation4], %s468
        %p470 = scmp.lt.s32.totalorder %s32, 1
        %s471 = scalar_select %p470, %s32, 1
        %s472 = smul.addr %s471, 8
        %s473 = scalar_lea.vmem %s0, %s472
        %v474 = vld [vmem:[%s473] sm:$0xff]
        %v475 = vlaneseq
        %v476 = vshrl.u32 %v475, 7
        %v477 = vlaneseq
        %v478 = vand.u32 %v477, 127
        %vm479 = vcmp.le.s32.totalorder %v478, %v476
        %v480 = vld [vmem:[%s2] sm:$0x1]
        %v481 = vmul.f32 %v474, %v474
        %vm482 = vcmask 261120
        %v483 = vsel %vm482, %v481, 0.0
        %484 = vadd.xlane.f32.xlu0 %v483
        %v485 = vpop.xlane.xlu0 %484
        %v486 = vrcp.pop 32.0
        %v487 = vmul.f32 %v485, %v486
        %v488 = vadd.f32 %v487, 1e-08
        %v489 = vrsqrt.pop %v488
        %v490 = vmul.f32 %v474, %v489
        %v492 = vlaneseq
        %v493 = vshrl.u32 %v492, 7
        %v494 = vsub.s32 0, %v493
        %v495 = vrot.slane %v480, %v494
        %v497 = vmul.f32 %v490, %v495
        %v498 = vld [vmem:[%s4] sm:$0xff]
        %v499 = vld [vmem:[%s4 + $0x8] sm:$0xff]
        %v500 = vld [vmem:[%s4 + $0x10] sm:$0xff]
        %v501 = vld [vmem:[%s4 + $0x18] sm:$0xff]
        %v502 = vld [vmem:[%s5] sm:$0x1]
        %v504 = vlaneseq
        %v505 = vshrl.u32 %v504, 7
        %v506 = vsub.s32 0, %v505
        %v507 = vrot.slane %v502, %v506
        %v510 = vsel %vm482, %v497, 0
        %512 = vmatprep.subr.mxu0 0.0
        %513 = vmatpush1.msra.mxu0 %v498
        %514 = vmatprep.subr.mxu0 0.0
        %515 = vmatpush1.msra.mxu0 %v499
        %516 = vmatprep.subr.mxu0 0.0
        %517 = vmatpush1.msra.mxu0 %v500
        %518 = vmatprep.subr.mxu0 0.0
        %519 = vmatpush1.msra.mxu0 %v501
        %520 = vmatprep.subr.mxu0 0.0
        %521 = vmatpush1.msra.mxu0 0.0
        %522 = vmatprep.subr.mxu0 0.0
        %523 = vmatpush1.msra.mxu0 0.0
        %524 = vmatprep.subr.mxu0 0.0
        %525 = vmatpush1.msra.mxu0 0.0
        %526 = vmatprep.subr.mxu0 0.0
        %527 = vmatpush1.msra.mxu0 0.0
        %528 = vmatprep.subr.mxu0 0.0
        %529 = vmatpush1.msra.mxu0 0.0
        %530 = vmatprep.subr.mxu0 0.0
        %531 = vmatpush1.msra.mxu0 0.0
        %532 = vmatprep.subr.mxu0 0.0
        %533 = vmatpush1.msra.mxu0 0.0
        %534 = vmatprep.subr.mxu0 0.0
        %535 = vmatpush1.msra.mxu0 0.0
        %536 = vmatprep.subr.mxu0 0.0
        %537 = vmatpush1.msra.mxu0 0.0
        %538 = vmatprep.subr.mxu0 0.0
        %539 = vmatpush1.msra.mxu0 0.0
        %540 = vmatprep.subr.mxu0 0.0
        %541 = vmatpush1.msra.mxu0 0.0
        %542 = vmatprep.subr.mxu0 0.0
        %543 = vmatpush1.msra.mxu0 0.0
        %544 = vmatprep.subr.mxu0 0.0
        %545 = vmatpush1.msra.mxu0 0.0
        %546 = vmatprep.subr.mxu0 0.0
        %547 = vmatpush1.msra.mxu0 0.0
        %548 = vmatprep.subr.mxu0 0.0
        %549 = vmatpush1.msra.mxu0 0.0
        %550 = vmatprep.subr.mxu0 0.0
        %551 = vmatpush1.msra.mxu0 0.0
        %552 = vmatprep.subr.mxu0 0.0
        %553 = vmatpush1.msra.mxu0 0.0
        %554 = vmatprep.subr.mxu0 0.0
        %555 = vmatpush1.msra.mxu0 0.0
        %556 = vmatprep.subr.mxu0 0.0
        %557 = vmatpush1.msra.mxu0 0.0
        %558 = vmatprep.subr.mxu0 0.0
        %559 = vmatpush1.msra.mxu0 0.0
        %560 = vmatprep.subr.mxu0 0.0
        %561 = vmatpush1.msra.mxu0 0.0
        %562 = vmatprep.subr.mxu0 0.0
        %563 = vmatpush1.msra.mxu0 0.0
        %564 = vmatprep.subr.mxu0 0.0
        %565 = vmatpush1.msra.mxu0 0.0
        %566 = vmatprep.subr.mxu0 0.0
        %567 = vmatpush1.msra.mxu0 0.0
        %568 = vmatprep.subr.mxu0 0.0
        %569 = vmatpush1.msra.mxu0 0.0
        %570 = vmatprep.subr.mxu0 0.0
        %571 = vmatpush1.msra.mxu0 0.0
        %572 = vmatprep.subr.mxu0 0.0
        %573 = vmatpush1.msra.mxu0 0.0
        %574 = vmatprep.subr.mxu0 0.0
        %575 = vmatpush1.msra.mxu0 0.0
        %576 = vmatprep.mubr.f32.mxu0 0.0
        %577 = vmatmul.mubr.f32.gmra.mrb[0].mxu0 %v510
        %v578 = vpop.f32.mrb[0].mxu0
        %v579 = vadd.f32 %v507, %v578
        %v580 = vpop.f32.mrb[0].mxu0
        %581 = vdwg.mxu0
        %v582 = vmul.f32 %v579, 0.35355338
        %584 = vrot.lane.b32.xlu0 %v579, 96
        %v585 = vpop.permute.xlu0 %584
        %vm586 = vcmask 64512
        %v588 = vsel %vm586, %v582, 0
        %v590 = vsel %vm586, %v585, 0
        %592 = vmatprep.subr.mxu0 0.0
        %593 = vmatpush1.xpose.msra.mxu0 %v590
        %594 = vmatprep.subr.mxu0 0.0
        %595 = vmatpush1.xpose.msra.mxu0 0.0
        %596 = vmatprep.subr.mxu0 0.0
        %597 = vmatpush1.xpose.msra.mxu0 0.0
        %598 = vmatprep.subr.mxu0 0.0
        %599 = vmatpush1.xpose.msra.mxu0 0.0
        %600 = vmatprep.subr.mxu0 0.0
        %601 = vmatpush1.xpose.msra.mxu0 0.0
        %602 = vmatprep.subr.mxu0 0.0
        %603 = vmatpush1.xpose.msra.mxu0 0.0
        %604 = vmatprep.subr.mxu0 0.0
        %605 = vmatpush1.xpose.msra.mxu0 0.0
        %606 = vmatprep.subr.mxu0 0.0
        %607 = vmatpush1.xpose.msra.mxu0 0.0
        %608 = vmatprep.subr.mxu0 0.0
        %609 = vmatpush1.xpose.msra.mxu0 0.0
        %610 = vmatprep.subr.mxu0 0.0
        %611 = vmatpush1.xpose.msra.mxu0 0.0
        %612 = vmatprep.subr.mxu0 0.0
        %613 = vmatpush1.xpose.msra.mxu0 0.0
        %614 = vmatprep.subr.mxu0 0.0
        %615 = vmatpush1.xpose.msra.mxu0 0.0
        %616 = vmatprep.subr.mxu0 0.0
        %617 = vmatpush1.xpose.msra.mxu0 0.0
        %618 = vmatprep.subr.mxu0 0.0
        %619 = vmatpush1.xpose.msra.mxu0 0.0
        %620 = vmatprep.subr.mxu0 0.0
        %621 = vmatpush1.xpose.msra.mxu0 0.0
        %622 = vmatprep.subr.mxu0 0.0
        %623 = vmatpush1.xpose.msra.mxu0 0.0
        %624 = vmatprep.subr.mxu0 0.0
        %625 = vmatpush1.xpose.msra.mxu0 0.0
        %626 = vmatprep.subr.mxu0 0.0
        %627 = vmatpush1.xpose.msra.mxu0 0.0
        %628 = vmatprep.subr.mxu0 0.0
        %629 = vmatpush1.xpose.msra.mxu0 0.0
        %630 = vmatprep.subr.mxu0 0.0
        %631 = vmatpush1.xpose.msra.mxu0 0.0
        %632 = vmatprep.subr.mxu0 0.0
        %633 = vmatpush1.xpose.msra.mxu0 0.0
        %634 = vmatprep.subr.mxu0 0.0
        %635 = vmatpush1.xpose.msra.mxu0 0.0
        %636 = vmatprep.subr.mxu0 0.0
        %637 = vmatpush1.xpose.msra.mxu0 0.0
        %638 = vmatprep.subr.mxu0 0.0
        %639 = vmatpush1.xpose.msra.mxu0 0.0
        %640 = vmatprep.subr.mxu0 0.0
        %641 = vmatpush1.xpose.msra.mxu0 0.0
        %642 = vmatprep.subr.mxu0 0.0
        %643 = vmatpush1.xpose.msra.mxu0 0.0
        %644 = vmatprep.subr.mxu0 0.0
        %645 = vmatpush1.xpose.msra.mxu0 0.0
        %646 = vmatprep.subr.mxu0 0.0
        %647 = vmatpush1.xpose.msra.mxu0 0.0
        %648 = vmatprep.subr.mxu0 0.0
        %649 = vmatpush1.xpose.msra.mxu0 0.0
        %650 = vmatprep.subr.mxu0 0.0
        %651 = vmatpush1.xpose.msra.mxu0 0.0
        %652 = vmatprep.subr.mxu0 0.0
        %653 = vmatpush1.xpose.msra.mxu0 0.0
        %654 = vmatprep.subr.mxu0 0.0
        %655 = vmatpush1.xpose.msra.mxu0 0.0
        %656 = vmatprep.mubr.f32.mxu0 0.0
        %657 = vmatmul.mubr.f32.gmra.mrb[0].mxu0 %v588
        %v658 = vpop.f32.mrb[0].mxu0
        %v659 = vadd.f32 0.0, %v658
        %v660 = vpop.f32.mrb[0].mxu0
        %661 = vdwg.mxu0
        %v662 = vsel %vm479, %v659, -1e+30
        %v663 = vsel %vm586, %v662, -inf
        %664 = vmax.xlane.f32.xlu0 %v663
        %v665 = vpop.xlane.xlu0 %664
        %v666 = vsub.f32 %v662, %v665
        %v667 = vmul.f32 %v666, 1.442695
        %v668 = vpow.pop %v667
        %v669 = vsel %vm586, %v668, 0.0
        %670 = vadd.xlane.f32.xlu0 %v669
        %v671 = vpop.xlane.xlu0 %670
        %v672 = vrcp.pop %v671
        %v673 = vmul.f32 %v668, %v672
        %674 = vrot.lane.b32.xlu0 %v579, 64
        %v675 = vpop.permute.xlu0 %674
        %v678 = vsel %vm586, %v673, 0
        %680 = vmatprep.subr.mxu0 0.0
        %681 = vmatpush1.msra.mxu0 %v675
        %682 = vmatprep.subr.mxu0 0.0
        %683 = vmatpush1.msra.mxu0 0.0
        %684 = vmatprep.subr.mxu0 0.0
        %685 = vmatpush1.msra.mxu0 0.0
        %686 = vmatprep.subr.mxu0 0.0
        %687 = vmatpush1.msra.mxu0 0.0
        %688 = vmatprep.subr.mxu0 0.0
        %689 = vmatpush1.msra.mxu0 0.0
        %690 = vmatprep.subr.mxu0 0.0
        %691 = vmatpush1.msra.mxu0 0.0
        %692 = vmatprep.subr.mxu0 0.0
        %693 = vmatpush1.msra.mxu0 0.0
        %694 = vmatprep.subr.mxu0 0.0
        %695 = vmatpush1.msra.mxu0 0.0
        %696 = vmatprep.subr.mxu0 0.0
        %697 = vmatpush1.msra.mxu0 0.0
        %698 = vmatprep.subr.mxu0 0.0
        %699 = vmatpush1.msra.mxu0 0.0
        %700 = vmatprep.subr.mxu0 0.0
        %701 = vmatpush1.msra.mxu0 0.0
        %702 = vmatprep.subr.mxu0 0.0
        %703 = vmatpush1.msra.mxu0 0.0
        %704 = vmatprep.subr.mxu0 0.0
        %705 = vmatpush1.msra.mxu0 0.0
        %706 = vmatprep.subr.mxu0 0.0
        %707 = vmatpush1.msra.mxu0 0.0
        %708 = vmatprep.subr.mxu0 0.0
        %709 = vmatpush1.msra.mxu0 0.0
        %710 = vmatprep.subr.mxu0 0.0
        %711 = vmatpush1.msra.mxu0 0.0
        %712 = vmatprep.subr.mxu0 0.0
        %713 = vmatpush1.msra.mxu0 0.0
        %714 = vmatprep.subr.mxu0 0.0
        %715 = vmatpush1.msra.mxu0 0.0
        %716 = vmatprep.subr.mxu0 0.0
        %717 = vmatpush1.msra.mxu0 0.0
        %718 = vmatprep.subr.mxu0 0.0
        %719 = vmatpush1.msra.mxu0 0.0
        %720 = vmatprep.subr.mxu0 0.0
        %721 = vmatpush1.msra.mxu0 0.0
        %722 = vmatprep.subr.mxu0 0.0
        %723 = vmatpush1.msra.mxu0 0.0
        %724 = vmatprep.subr.mxu0 0.0
        %725 = vmatpush1.msra.mxu0 0.0
        %726 = vmatprep.subr.mxu0 0.0
        %727 = vmatpush1.msra.mxu0 0.0
        %728 = vmatprep.subr.mxu0 0.0
        %729 = vmatpush1.msra.mxu0 0.0
        %730 = vmatprep.subr.mxu0 0.0
        %731 = vmatpush1.msra.mxu0 0.0
        %732 = vmatprep.subr.mxu0 0.0
        %733 = vmatpush1.msra.mxu0 0.0
        %734 = vmatprep.subr.mxu0 0.0
        %735 = vmatpush1.msra.mxu0 0.0
        %736 = vmatprep.subr.mxu0 0.0
        %737 = vmatpush1.msra.mxu0 0.0
        %738 = vmatprep.subr.mxu0 0.0
        %739 = vmatpush1.msra.mxu0 0.0
        %740 = vmatprep.subr.mxu0 0.0
        %741 = vmatpush1.msra.mxu0 0.0
        %742 = vmatprep.subr.mxu0 0.0
        %743 = vmatpush1.msra.mxu0 0.0
        %744 = vmatprep.mubr.f32.mxu0 0.0
        %745 = vmatmul.mubr.f32.gmra.mrb[0].mxu0 %v678
        %v746 = vpop.f32.mrb[0].mxu0
        %v747 = vadd.f32 0.0, %v746
        %v748 = vpop.f32.mrb[0].mxu0
        %749 = vdwg.mxu0
        %750 = vrot.lane.b32.xlu0 %v582, 120
        %v751 = vpop.permute.xlu0 %750
        %752 = vrot.lane.b32.xlu0 %v579, 88
        %v753 = vpop.permute.xlu0 %752
        %v754 = vsel %vm586, %v751, 0
        %v756 = vsel %vm586, %v753, 0
        %758 = vmatprep.subr.mxu0 0.0
        %759 = vmatpush1.xpose.msra.mxu0 %v756
        %760 = vmatprep.subr.mxu0 0.0
        %761 = vmatpush1.xpose.msra.mxu0 0.0
        %762 = vmatprep.subr.mxu0 0.0
        %763 = vmatpush1.xpose.msra.mxu0 0.0
        %764 = vmatprep.subr.mxu0 0.0
        %765 = vmatpush1.xpose.msra.mxu0 0.0
        %766 = vmatprep.subr.mxu0 0.0
        %767 = vmatpush1.xpose.msra.mxu0 0.0
        %768 = vmatprep.subr.mxu0 0.0
        %769 = vmatpush1.xpose.msra.mxu0 0.0
        %770 = vmatprep.subr.mxu0 0.0
        %771 = vmatpush1.xpose.msra.mxu0 0.0
        %772 = vmatprep.subr.mxu0 0.0
        %773 = vmatpush1.xpose.msra.mxu0 0.0
        %774 = vmatprep.subr.mxu0 0.0
        %775 = vmatpush1.xpose.msra.mxu0 0.0
        %776 = vmatprep.subr.mxu0 0.0
        %777 = vmatpush1.xpose.msra.mxu0 0.0
        %778 = vmatprep.subr.mxu0 0.0
        %779 = vmatpush1.xpose.msra.mxu0 0.0
        %780 = vmatprep.subr.mxu0 0.0
        %781 = vmatpush1.xpose.msra.mxu0 0.0
        %782 = vmatprep.subr.mxu0 0.0
        %783 = vmatpush1.xpose.msra.mxu0 0.0
        %784 = vmatprep.subr.mxu0 0.0
        %785 = vmatpush1.xpose.msra.mxu0 0.0
        %786 = vmatprep.subr.mxu0 0.0
        %787 = vmatpush1.xpose.msra.mxu0 0.0
        %788 = vmatprep.subr.mxu0 0.0
        %789 = vmatpush1.xpose.msra.mxu0 0.0
        %790 = vmatprep.subr.mxu0 0.0
        %791 = vmatpush1.xpose.msra.mxu0 0.0
        %792 = vmatprep.subr.mxu0 0.0
        %793 = vmatpush1.xpose.msra.mxu0 0.0
        %794 = vmatprep.subr.mxu0 0.0
        %795 = vmatpush1.xpose.msra.mxu0 0.0
        %796 = vmatprep.subr.mxu0 0.0
        %797 = vmatpush1.xpose.msra.mxu0 0.0
        %798 = vmatprep.subr.mxu0 0.0
        %799 = vmatpush1.xpose.msra.mxu0 0.0
        %800 = vmatprep.subr.mxu0 0.0
        %801 = vmatpush1.xpose.msra.mxu0 0.0
        %802 = vmatprep.subr.mxu0 0.0
        %803 = vmatpush1.xpose.msra.mxu0 0.0
        %804 = vmatprep.subr.mxu0 0.0
        %805 = vmatpush1.xpose.msra.mxu0 0.0
        %806 = vmatprep.subr.mxu0 0.0
        %807 = vmatpush1.xpose.msra.mxu0 0.0
        %808 = vmatprep.subr.mxu0 0.0
        %809 = vmatpush1.xpose.msra.mxu0 0.0
        %810 = vmatprep.subr.mxu0 0.0
        %811 = vmatpush1.xpose.msra.mxu0 0.0
        %812 = vmatprep.subr.mxu0 0.0
        %813 = vmatpush1.xpose.msra.mxu0 0.0
        %814 = vmatprep.subr.mxu0 0.0
        %815 = vmatpush1.xpose.msra.mxu0 0.0
        %816 = vmatprep.subr.mxu0 0.0
        %817 = vmatpush1.xpose.msra.mxu0 0.0
        %818 = vmatprep.subr.mxu0 0.0
        %819 = vmatpush1.xpose.msra.mxu0 0.0
        %820 = vmatprep.subr.mxu0 0.0
        %821 = vmatpush1.xpose.msra.mxu0 0.0
        %822 = vmatprep.mubr.f32.mxu0 0.0
        %823 = vmatmul.mubr.f32.gmra.mrb[0].mxu0 %v754
        %v824 = vpop.f32.mrb[0].mxu0
        %v825 = vadd.f32 0.0, %v824
        %v826 = vpop.f32.mrb[0].mxu0
        %827 = vdwg.mxu0
        %v828 = vsel %vm479, %v825, -1e+30
        %v829 = vsel %vm586, %v828, -inf
        %830 = vmax.xlane.f32.xlu0 %v829
        %v831 = vpop.xlane.xlu0 %830
        %v832 = vsub.f32 %v828, %v831
        %v833 = vmul.f32 %v832, 1.442695
        %v834 = vpow.pop %v833
        %v835 = vsel %vm586, %v834, 0.0
        %836 = vadd.xlane.f32.xlu0 %v835
        %v837 = vpop.xlane.xlu0 %836
        %v838 = vrcp.pop %v837
        %v839 = vmul.f32 %v834, %v838
        %840 = vrot.lane.b32.xlu0 %v579, 56
        %v841 = vpop.permute.xlu0 %840
        %v844 = vsel %vm586, %v839, 0
        %846 = vmatprep.subr.mxu0 0.0
        %847 = vmatpush1.msra.mxu0 %v841
        %848 = vmatprep.subr.mxu0 0.0
        %849 = vmatpush1.msra.mxu0 0.0
        %850 = vmatprep.subr.mxu0 0.0
        %851 = vmatpush1.msra.mxu0 0.0
        %852 = vmatprep.subr.mxu0 0.0
        %853 = vmatpush1.msra.mxu0 0.0
        %854 = vmatprep.subr.mxu0 0.0
        %855 = vmatpush1.msra.mxu0 0.0
        %856 = vmatprep.subr.mxu0 0.0
        %857 = vmatpush1.msra.mxu0 0.0
        %858 = vmatprep.subr.mxu0 0.0
        %859 = vmatpush1.msra.mxu0 0.0
        %860 = vmatprep.subr.mxu0 0.0
        %861 = vmatpush1.msra.mxu0 0.0
        %862 = vmatprep.subr.mxu0 0.0
        %863 = vmatpush1.msra.mxu0 0.0
        %864 = vmatprep.subr.mxu0 0.0
        %865 = vmatpush1.msra.mxu0 0.0
        %866 = vmatprep.subr.mxu0 0.0
        %867 = vmatpush1.msra.mxu0 0.0
        %868 = vmatprep.subr.mxu0 0.0
        %869 = vmatpush1.msra.mxu0 0.0
        %870 = vmatprep.subr.mxu0 0.0
        %871 = vmatpush1.msra.mxu0 0.0
        %872 = vmatprep.subr.mxu0 0.0
        %873 = vmatpush1.msra.mxu0 0.0
        %874 = vmatprep.subr.mxu0 0.0
        %875 = vmatpush1.msra.mxu0 0.0
        %876 = vmatprep.subr.mxu0 0.0
        %877 = vmatpush1.msra.mxu0 0.0
        %878 = vmatprep.subr.mxu0 0.0
        %879 = vmatpush1.msra.mxu0 0.0
        %880 = vmatprep.subr.mxu0 0.0
        %881 = vmatpush1.msra.mxu0 0.0
        %882 = vmatprep.subr.mxu0 0.0
        %883 = vmatpush1.msra.mxu0 0.0
        %884 = vmatprep.subr.mxu0 0.0
        %885 = vmatpush1.msra.mxu0 0.0
        %886 = vmatprep.subr.mxu0 0.0
        %887 = vmatpush1.msra.mxu0 0.0
        %888 = vmatprep.subr.mxu0 0.0
        %889 = vmatpush1.msra.mxu0 0.0
        %890 = vmatprep.subr.mxu0 0.0
        %891 = vmatpush1.msra.mxu0 0.0
        %892 = vmatprep.subr.mxu0 0.0
        %893 = vmatpush1.msra.mxu0 0.0
        %894 = vmatprep.subr.mxu0 0.0
        %895 = vmatpush1.msra.mxu0 0.0
        %896 = vmatprep.subr.mxu0 0.0
        %897 = vmatpush1.msra.mxu0 0.0
        %898 = vmatprep.subr.mxu0 0.0
        %899 = vmatpush1.msra.mxu0 0.0
        %900 = vmatprep.subr.mxu0 0.0
        %901 = vmatpush1.msra.mxu0 0.0
        %902 = vmatprep.subr.mxu0 0.0
        %903 = vmatpush1.msra.mxu0 0.0
        %904 = vmatprep.subr.mxu0 0.0
        %905 = vmatpush1.msra.mxu0 0.0
        %906 = vmatprep.subr.mxu0 0.0
        %907 = vmatpush1.msra.mxu0 0.0
        %908 = vmatprep.subr.mxu0 0.0
        %909 = vmatpush1.msra.mxu0 0.0
        %910 = vmatprep.mubr.f32.mxu0 0.0
        %911 = vmatmul.mubr.f32.gmra.mrb[0].mxu0 %v844
        %v912 = vpop.f32.mrb[0].mxu0
        %v913 = vadd.f32 0.0, %v912
        %v914 = vpop.f32.mrb[0].mxu0
        %915 = vdwg.mxu0
        %916 = vrot.lane.b32.xlu0 %v582, 112
        %v917 = vpop.permute.xlu0 %916
        %918 = vrot.lane.b32.xlu0 %v579, 80
        %v919 = vpop.permute.xlu0 %918
        %v920 = vsel %vm586, %v917, 0
        %v922 = vsel %vm586, %v919, 0
        %924 = vmatprep.subr.mxu0 0.0
        %925 = vmatpush1.xpose.msra.mxu0 %v922
        %926 = vmatprep.subr.mxu0 0.0
        %927 = vmatpush1.xpose.msra.mxu0 0.0
        %928 = vmatprep.subr.mxu0 0.0
        %929 = vmatpush1.xpose.msra.mxu0 0.0
        %930 = vmatprep.subr.mxu0 0.0
        %931 = vmatpush1.xpose.msra.mxu0 0.0
        %932 = vmatprep.subr.mxu0 0.0
        %933 = vmatpush1.xpose.msra.mxu0 0.0
        %934 = vmatprep.subr.mxu0 0.0
        %935 = vmatpush1.xpose.msra.mxu0 0.0
        %936 = vmatprep.subr.mxu0 0.0
        %937 = vmatpush1.xpose.msra.mxu0 0.0
        %938 = vmatprep.subr.mxu0 0.0
        %939 = vmatpush1.xpose.msra.mxu0 0.0
        %940 = vmatprep.subr.mxu0 0.0
        %941 = vmatpush1.xpose.msra.mxu0 0.0
        %942 = vmatprep.subr.mxu0 0.0
        %943 = vmatpush1.xpose.msra.mxu0 0.0
        %944 = vmatprep.subr.mxu0 0.0
        %945 = vmatpush1.xpose.msra.mxu0 0.0
        %946 = vmatprep.subr.mxu0 0.0
        %947 = vmatpush1.xpose.msra.mxu0 0.0
        %948 = vmatprep.subr.mxu0 0.0
        %949 = vmatpush1.xpose.msra.mxu0 0.0
        %950 = vmatprep.subr.mxu0 0.0
        %951 = vmatpush1.xpose.msra.mxu0 0.0
        %952 = vmatprep.subr.mxu0 0.0
        %953 = vmatpush1.xpose.msra.mxu0 0.0
        %954 = vmatprep.subr.mxu0 0.0
        %955 = vmatpush1.xpose.msra.mxu0 0.0
        %956 = vmatprep.subr.mxu0 0.0
        %957 = vmatpush1.xpose.msra.mxu0 0.0
        %958 = vmatprep.subr.mxu0 0.0
        %959 = vmatpush1.xpose.msra.mxu0 0.0
        %960 = vmatprep.subr.mxu0 0.0
        %961 = vmatpush1.xpose.msra.mxu0 0.0
        %962 = vmatprep.subr.mxu0 0.0
        %963 = vmatpush1.xpose.msra.mxu0 0.0
        %964 = vmatprep.subr.mxu0 0.0
        %965 = vmatpush1.xpose.msra.mxu0 0.0
        %966 = vmatprep.subr.mxu0 0.0
        %967 = vmatpush1.xpose.msra.mxu0 0.0
        %968 = vmatprep.subr.mxu0 0.0
        %969 = vmatpush1.xpose.msra.mxu0 0.0
        %970 = vmatprep.subr.mxu0 0.0
        %971 = vmatpush1.xpose.msra.mxu0 0.0
        %972 = vmatprep.subr.mxu0 0.0
        %973 = vmatpush1.xpose.msra.mxu0 0.0
        %974 = vmatprep.subr.mxu0 0.0
        %975 = vmatpush1.xpose.msra.mxu0 0.0
        %976 = vmatprep.subr.mxu0 0.0
        %977 = vmatpush1.xpose.msra.mxu0 0.0
        %978 = vmatprep.subr.mxu0 0.0
        %979 = vmatpush1.xpose.msra.mxu0 0.0
        %980 = vmatprep.subr.mxu0 0.0
        %981 = vmatpush1.xpose.msra.mxu0 0.0
        %982 = vmatprep.subr.mxu0 0.0
        %983 = vmatpush1.xpose.msra.mxu0 0.0
        %984 = vmatprep.subr.mxu0 0.0
        %985 = vmatpush1.xpose.msra.mxu0 0.0
        %986 = vmatprep.subr.mxu0 0.0
        %987 = vmatpush1.xpose.msra.mxu0 0.0
        %988 = vmatprep.mubr.f32.mxu0 0.0
        %989 = vmatmul.mubr.f32.gmra.mrb[0].mxu0 %v920
        %v990 = vpop.f32.mrb[0].mxu0
        %v991 = vadd.f32 0.0, %v990
        %v992 = vpop.f32.mrb[0].mxu0
        %993 = vdwg.mxu0
        %v994 = vsel %vm479, %v991, -1e+30
        %v995 = vsel %vm586, %v994, -inf
        %996 = vmax.xlane.f32.xlu0 %v995
        %v997 = vpop.xlane.xlu0 %996
        %v998 = vsub.f32 %v994, %v997
        %v999 = vmul.f32 %v998, 1.442695
        %v1000 = vpow.pop %v999
        %v1001 = vsel %vm586, %v1000, 0.0
        %1002 = vadd.xlane.f32.xlu0 %v1001
        %v1003 = vpop.xlane.xlu0 %1002
        %v1004 = vrcp.pop %v1003
        %v1005 = vmul.f32 %v1000, %v1004
        %1006 = vrot.lane.b32.xlu0 %v579, 48
        %v1007 = vpop.permute.xlu0 %1006
        %v1010 = vsel %vm586, %v1005, 0
        %1012 = vmatprep.subr.mxu0 0.0
        %1013 = vmatpush1.msra.mxu0 %v1007
        %1014 = vmatprep.subr.mxu0 0.0
        %1015 = vmatpush1.msra.mxu0 0.0
        %1016 = vmatprep.subr.mxu0 0.0
        %1017 = vmatpush1.msra.mxu0 0.0
        %1018 = vmatprep.subr.mxu0 0.0
        %1019 = vmatpush1.msra.mxu0 0.0
        %1020 = vmatprep.subr.mxu0 0.0
        %1021 = vmatpush1.msra.mxu0 0.0
        %1022 = vmatprep.subr.mxu0 0.0
        %1023 = vmatpush1.msra.mxu0 0.0
        %1024 = vmatprep.subr.mxu0 0.0
        %1025 = vmatpush1.msra.mxu0 0.0
        %1026 = vmatprep.subr.mxu0 0.0
        %1027 = vmatpush1.msra.mxu0 0.0
        %1028 = vmatprep.subr.mxu0 0.0
        %1029 = vmatpush1.msra.mxu0 0.0
        %1030 = vmatprep.subr.mxu0 0.0
        %1031 = vmatpush1.msra.mxu0 0.0
        %1032 = vmatprep.subr.mxu0 0.0
        %1033 = vmatpush1.msra.mxu0 0.0
        %1034 = vmatprep.subr.mxu0 0.0
        %1035 = vmatpush1.msra.mxu0 0.0
        %1036 = vmatprep.subr.mxu0 0.0
        %1037 = vmatpush1.msra.mxu0 0.0
        %1038 = vmatprep.subr.mxu0 0.0
        %1039 = vmatpush1.msra.mxu0 0.0
        %1040 = vmatprep.subr.mxu0 0.0
        %1041 = vmatpush1.msra.mxu0 0.0
        %1042 = vmatprep.subr.mxu0 0.0
        %1043 = vmatpush1.msra.mxu0 0.0
        %1044 = vmatprep.subr.mxu0 0.0
        %1045 = vmatpush1.msra.mxu0 0.0
        %1046 = vmatprep.subr.mxu0 0.0
        %1047 = vmatpush1.msra.mxu0 0.0
        %1048 = vmatprep.subr.mxu0 0.0
        %1049 = vmatpush1.msra.mxu0 0.0
        %1050 = vmatprep.subr.mxu0 0.0
        %1051 = vmatpush1.msra.mxu0 0.0
        %1052 = vmatprep.subr.mxu0 0.0
        %1053 = vmatpush1.msra.mxu0 0.0
        %1054 = vmatprep.subr.mxu0 0.0
        %1055 = vmatpush1.msra.mxu0 0.0
        %1056 = vmatprep.subr.mxu0 0.0
        %1057 = vmatpush1.msra.mxu0 0.0
        %1058 = vmatprep.subr.mxu0 0.0
        %1059 = vmatpush1.msra.mxu0 0.0
        %1060 = vmatprep.subr.mxu0 0.0
        %1061 = vmatpush1.msra.mxu0 0.0
        %1062 = vmatprep.subr.mxu0 0.0
        %1063 = vmatpush1.msra.mxu0 0.0
        %1064 = vmatprep.subr.mxu0 0.0
        %1065 = vmatpush1.msra.mxu0 0.0
        %1066 = vmatprep.subr.mxu0 0.0
        %1067 = vmatpush1.msra.mxu0 0.0
        %1068 = vmatprep.subr.mxu0 0.0
        %1069 = vmatpush1.msra.mxu0 0.0
        %1070 = vmatprep.subr.mxu0 0.0
        %1071 = vmatpush1.msra.mxu0 0.0
        %1072 = vmatprep.subr.mxu0 0.0
        %1073 = vmatpush1.msra.mxu0 0.0
        %1074 = vmatprep.subr.mxu0 0.0
        %1075 = vmatpush1.msra.mxu0 0.0
        %1076 = vmatprep.mubr.f32.mxu0 0.0
        %1077 = vmatmul.mubr.f32.gmra.mrb[0].mxu0 %v1010
        %v1078 = vpop.f32.mrb[0].mxu0
        %v1079 = vadd.f32 0.0, %v1078
        %v1080 = vpop.f32.mrb[0].mxu0
        %1081 = vdwg.mxu0
        %1082 = vrot.lane.b32.xlu0 %v582, 104
        %v1083 = vpop.permute.xlu0 %1082
        %1084 = vrot.lane.b32.xlu0 %v579, 72
        %v1085 = vpop.permute.xlu0 %1084
        %v1086 = vsel %vm586, %v1083, 0
        %v1088 = vsel %vm586, %v1085, 0
        %1090 = vmatprep.subr.mxu0 0.0
        %1091 = vmatpush1.xpose.msra.mxu0 %v1088
        %1092 = vmatprep.subr.mxu0 0.0
        %1093 = vmatpush1.xpose.msra.mxu0 0.0
        %1094 = vmatprep.subr.mxu0 0.0
        %1095 = vmatpush1.xpose.msra.mxu0 0.0
        %1096 = vmatprep.subr.mxu0 0.0
        %1097 = vmatpush1.xpose.msra.mxu0 0.0
        %1098 = vmatprep.subr.mxu0 0.0
        %1099 = vmatpush1.xpose.msra.mxu0 0.0
        %1100 = vmatprep.subr.mxu0 0.0
        %1101 = vmatpush1.xpose.msra.mxu0 0.0
        %1102 = vmatprep.subr.mxu0 0.0
        %1103 = vmatpush1.xpose.msra.mxu0 0.0
        %1104 = vmatprep.subr.mxu0 0.0
        %1105 = vmatpush1.xpose.msra.mxu0 0.0
        %1106 = vmatprep.subr.mxu0 0.0
        %1107 = vmatpush1.xpose.msra.mxu0 0.0
        %1108 = vmatprep.subr.mxu0 0.0
        %1109 = vmatpush1.xpose.msra.mxu0 0.0
        %1110 = vmatprep.subr.mxu0 0.0
        %1111 = vmatpush1.xpose.msra.mxu0 0.0
        %1112 = vmatprep.subr.mxu0 0.0
        %1113 = vmatpush1.xpose.msra.mxu0 0.0
        %1114 = vmatprep.subr.mxu0 0.0
        %1115 = vmatpush1.xpose.msra.mxu0 0.0
        %1116 = vmatprep.subr.mxu0 0.0
        %1117 = vmatpush1.xpose.msra.mxu0 0.0
        %1118 = vmatprep.subr.mxu0 0.0
        %1119 = vmatpush1.xpose.msra.mxu0 0.0
        %1120 = vmatprep.subr.mxu0 0.0
        %1121 = vmatpush1.xpose.msra.mxu0 0.0
        %1122 = vmatprep.subr.mxu0 0.0
        %1123 = vmatpush1.xpose.msra.mxu0 0.0
        %1124 = vmatprep.subr.mxu0 0.0
        %1125 = vmatpush1.xpose.msra.mxu0 0.0
        %1126 = vmatprep.subr.mxu0 0.0
        %1127 = vmatpush1.xpose.msra.mxu0 0.0
        %1128 = vmatprep.subr.mxu0 0.0
        %1129 = vmatpush1.xpose.msra.mxu0 0.0
        %1130 = vmatprep.subr.mxu0 0.0
        %1131 = vmatpush1.xpose.msra.mxu0 0.0
        %1132 = vmatprep.subr.mxu0 0.0
        %1133 = vmatpush1.xpose.msra.mxu0 0.0
        %1134 = vmatprep.subr.mxu0 0.0
        %1135 = vmatpush1.xpose.msra.mxu0 0.0
        %1136 = vmatprep.subr.mxu0 0.0
        %1137 = vmatpush1.xpose.msra.mxu0 0.0
        %1138 = vmatprep.subr.mxu0 0.0
        %1139 = vmatpush1.xpose.msra.mxu0 0.0
        %1140 = vmatprep.subr.mxu0 0.0
        %1141 = vmatpush1.xpose.msra.mxu0 0.0
        %1142 = vmatprep.subr.mxu0 0.0
        %1143 = vmatpush1.xpose.msra.mxu0 0.0
        %1144 = vmatprep.subr.mxu0 0.0
        %1145 = vmatpush1.xpose.msra.mxu0 0.0
        %1146 = vmatprep.subr.mxu0 0.0
        %1147 = vmatpush1.xpose.msra.mxu0 0.0
        %1148 = vmatprep.subr.mxu0 0.0
        %1149 = vmatpush1.xpose.msra.mxu0 0.0
        %1150 = vmatprep.subr.mxu0 0.0
        %1151 = vmatpush1.xpose.msra.mxu0 0.0
        %1152 = vmatprep.subr.mxu0 0.0
        %1153 = vmatpush1.xpose.msra.mxu0 0.0
        %1154 = vmatprep.mubr.f32.mxu0 0.0
        %1155 = vmatmul.mubr.f32.gmra.mrb[0].mxu0 %v1086
        %v1156 = vpop.f32.mrb[0].mxu0
        %v1157 = vadd.f32 0.0, %v1156
        %v1158 = vpop.f32.mrb[0].mxu0
        %1159 = vdwg.mxu0
        %v1160 = vsel %vm479, %v1157, -1e+30
        %v1161 = vsel %vm586, %v1160, -inf
        %1162 = vmax.xlane.f32.xlu0 %v1161
        %v1163 = vpop.xlane.xlu0 %1162
        %v1164 = vsub.f32 %v1160, %v1163
        %v1165 = vmul.f32 %v1164, 1.442695
        %v1166 = vpow.pop %v1165
        %v1167 = vsel %vm586, %v1166, 0.0
        %1168 = vadd.xlane.f32.xlu0 %v1167
        %v1169 = vpop.xlane.xlu0 %1168
        %v1170 = vrcp.pop %v1169
        %v1171 = vmul.f32 %v1166, %v1170
        %1172 = vrot.lane.b32.xlu0 %v579, 40
        %v1173 = vpop.permute.xlu0 %1172
        %v1176 = vsel %vm586, %v1171, 0
        %1178 = vmatprep.subr.mxu0 0.0
        %1179 = vmatpush1.msra.mxu0 %v1173
        %1180 = vmatprep.subr.mxu0 0.0
        %1181 = vmatpush1.msra.mxu0 0.0
        %1182 = vmatprep.subr.mxu0 0.0
        %1183 = vmatpush1.msra.mxu0 0.0
        %1184 = vmatprep.subr.mxu0 0.0
        %1185 = vmatpush1.msra.mxu0 0.0
        %1186 = vmatprep.subr.mxu0 0.0
        %1187 = vmatpush1.msra.mxu0 0.0
        %1188 = vmatprep.subr.mxu0 0.0
        %1189 = vmatpush1.msra.mxu0 0.0
        %1190 = vmatprep.subr.mxu0 0.0
        %1191 = vmatpush1.msra.mxu0 0.0
        %1192 = vmatprep.subr.mxu0 0.0
        %1193 = vmatpush1.msra.mxu0 0.0
        %1194 = vmatprep.subr.mxu0 0.0
        %1195 = vmatpush1.msra.mxu0 0.0
        %1196 = vmatprep.subr.mxu0 0.0
        %1197 = vmatpush1.msra.mxu0 0.0
        %1198 = vmatprep.subr.mxu0 0.0
        %1199 = vmatpush1.msra.mxu0 0.0
        %1200 = vmatprep.subr.mxu0 0.0
        %1201 = vmatpush1.msra.mxu0 0.0
        %1202 = vmatprep.subr.mxu0 0.0
        %1203 = vmatpush1.msra.mxu0 0.0
        %1204 = vmatprep.subr.mxu0 0.0
        %1205 = vmatpush1.msra.mxu0 0.0
        %1206 = vmatprep.subr.mxu0 0.0
        %1207 = vmatpush1.msra.mxu0 0.0
        %1208 = vmatprep.subr.mxu0 0.0
        %1209 = vmatpush1.msra.mxu0 0.0
        %1210 = vmatprep.subr.mxu0 0.0
        %1211 = vmatpush1.msra.mxu0 0.0
        %1212 = vmatprep.subr.mxu0 0.0
        %1213 = vmatpush1.msra.mxu0 0.0
        %1214 = vmatprep.subr.mxu0 0.0
        %1215 = vmatpush1.msra.mxu0 0.0
        %1216 = vmatprep.subr.mxu0 0.0
        %1217 = vmatpush1.msra.mxu0 0.0
        %1218 = vmatprep.subr.mxu0 0.0
        %1219 = vmatpush1.msra.mxu0 0.0
        %1220 = vmatprep.subr.mxu0 0.0
        %1221 = vmatpush1.msra.mxu0 0.0
        %1222 = vmatprep.subr.mxu0 0.0
        %1223 = vmatpush1.msra.mxu0 0.0
        %1224 = vmatprep.subr.mxu0 0.0
        %1225 = vmatpush1.msra.mxu0 0.0
        %1226 = vmatprep.subr.mxu0 0.0
        %1227 = vmatpush1.msra.mxu0 0.0
        %1228 = vmatprep.subr.mxu0 0.0
        %1229 = vmatpush1.msra.mxu0 0.0
        %1230 = vmatprep.subr.mxu0 0.0
        %1231 = vmatpush1.msra.mxu0 0.0
        %1232 = vmatprep.subr.mxu0 0.0
        %1233 = vmatpush1.msra.mxu0 0.0
        %1234 = vmatprep.subr.mxu0 0.0
        %1235 = vmatpush1.msra.mxu0 0.0
        %1236 = vmatprep.subr.mxu0 0.0
        %1237 = vmatpush1.msra.mxu0 0.0
        %1238 = vmatprep.subr.mxu0 0.0
        %1239 = vmatpush1.msra.mxu0 0.0
        %1240 = vmatprep.subr.mxu0 0.0
        %1241 = vmatpush1.msra.mxu0 0.0
        %1242 = vmatprep.mubr.f32.mxu0 0.0
        %1243 = vmatmul.mubr.f32.gmra.mrb[0].mxu0 %v1176
        %v1244 = vpop.f32.mrb[0].mxu0
        %v1245 = vadd.f32 0.0, %v1244
        %v1246 = vpop.f32.mrb[0].mxu0
        %1247 = vdwg.mxu0
        %1249 = vrot.lane.b32.xlu0 %v913, 8
        %v1250 = vpop.permute.xlu0 %1249
        %1253 = vrot.lane.b32.xlu0 %v1079, 16
        %v1254 = vpop.permute.xlu0 %1253
        %1257 = vrot.lane.b32.xlu0 %v1245, 24
        %v1258 = vpop.permute.xlu0 %1257
        %v1260 = vsel %vm586, %v747, %v1250
        %vm1261 = vcmask 130048
        %v1262 = vsel %vm1261, %v1260, %v1254
        %vm1263 = vcmask 195584
        %v1264 = vsel %vm1263, %v1262, %v1258
        %v1265 = vld [vmem:[%s6] sm:$0xff]
        %v1266 = vld [vmem:[%s6 + $0x8] sm:$0xff]
        %v1267 = vld [vmem:[%s6 + $0x10] sm:$0xff]
        %v1268 = vld [vmem:[%s6 + $0x18] sm:$0xff]
        %v1269 = vld [vmem:[%s7] sm:$0x1]
        %v1271 = vlaneseq
        %v1272 = vshrl.u32 %v1271, 7
        %v1273 = vsub.s32 0, %v1272
        %v1274 = vrot.slane %v1269, %v1273
        %v1277 = vsel %vm482, %v1264, 0
        %1279 = vmatprep.subr.mxu0 0.0
        %1280 = vmatpush1.msra.mxu0 %v1265
        %1281 = vmatprep.subr.mxu0 0.0
        %1282 = vmatpush1.msra.mxu0 %v1266
        %1283 = vmatprep.subr.mxu0 0.0
        %1284 = vmatpush1.msra.mxu0 %v1267
        %1285 = vmatprep.subr.mxu0 0.0
        %1286 = vmatpush1.msra.mxu0 %v1268
        %1287 = vmatprep.subr.mxu0 0.0
        %1288 = vmatpush1.msra.mxu0 0.0
        %1289 = vmatprep.subr.mxu0 0.0
        %1290 = vmatpush1.msra.mxu0 0.0
        %1291 = vmatprep.subr.mxu0 0.0
        %1292 = vmatpush1.msra.mxu0 0.0
        %1293 = vmatprep.subr.mxu0 0.0
        %1294 = vmatpush1.msra.mxu0 0.0
        %1295 = vmatprep.subr.mxu0 0.0
        %1296 = vmatpush1.msra.mxu0 0.0
        %1297 = vmatprep.subr.mxu0 0.0
        %1298 = vmatpush1.msra.mxu0 0.0
        %1299 = vmatprep.subr.mxu0 0.0
        %1300 = vmatpush1.msra.mxu0 0.0
        %1301 = vmatprep.subr.mxu0 0.0
        %1302 = vmatpush1.msra.mxu0 0.0
        %1303 = vmatprep.subr.mxu0 0.0
        %1304 = vmatpush1.msra.mxu0 0.0
        %1305 = vmatprep.subr.mxu0 0.0
        %1306 = vmatpush1.msra.mxu0 0.0
        %1307 = vmatprep.subr.mxu0 0.0
        %1308 = vmatpush1.msra.mxu0 0.0
        %1309 = vmatprep.subr.mxu0 0.0
        %1310 = vmatpush1.msra.mxu0 0.0
        %1311 = vmatprep.subr.mxu0 0.0
        %1312 = vmatpush1.msra.mxu0 0.0
        %1313 = vmatprep.subr.mxu0 0.0
        %1314 = vmatpush1.msra.mxu0 0.0
        %1315 = vmatprep.subr.mxu0 0.0
        %1316 = vmatpush1.msra.mxu0 0.0
        %1317 = vmatprep.subr.mxu0 0.0
        %1318 = vmatpush1.msra.mxu0 0.0
        %1319 = vmatprep.subr.mxu0 0.0
        %1320 = vmatpush1.msra.mxu0 0.0
        %1321 = vmatprep.subr.mxu0 0.0
        %1322 = vmatpush1.msra.mxu0 0.0
        %1323 = vmatprep.subr.mxu0 0.0
        %1324 = vmatpush1.msra.mxu0 0.0
        %1325 = vmatprep.subr.mxu0 0.0
        %1326 = vmatpush1.msra.mxu0 0.0
        %1327 = vmatprep.subr.mxu0 0.0
        %1328 = vmatpush1.msra.mxu0 0.0
        %1329 = vmatprep.subr.mxu0 0.0
        %1330 = vmatpush1.msra.mxu0 0.0
        %1331 = vmatprep.subr.mxu0 0.0
        %1332 = vmatpush1.msra.mxu0 0.0
        %1333 = vmatprep.subr.mxu0 0.0
        %1334 = vmatpush1.msra.mxu0 0.0
        %1335 = vmatprep.subr.mxu0 0.0
        %1336 = vmatpush1.msra.mxu0 0.0
        %1337 = vmatprep.subr.mxu0 0.0
        %1338 = vmatpush1.msra.mxu0 0.0
        %1339 = vmatprep.subr.mxu0 0.0
        %1340 = vmatpush1.msra.mxu0 0.0
        %1341 = vmatprep.subr.mxu0 0.0
        %1342 = vmatpush1.msra.mxu0 0.0
        %1343 = vmatprep.mubr.f32.mxu0 0.0
        %1344 = vmatmul.mubr.f32.gmra.mrb[0].mxu0 %v1277
        %v1345 = vpop.f32.mrb[0].mxu0
        %v1346 = vadd.f32 %v1274, %v1345
        %v1347 = vpop.f32.mrb[0].mxu0
        %1348 = vdwg.mxu0
        %v1349 = vadd.f32 %v474, %v1346
        %v1350 = vld [vmem:[%s3] sm:$0x1]
        %v1351 = vmul.f32 %v1349, %v1349
        %v1352 = vsel %vm482, %v1351, 0.0
        %1353 = vadd.xlane.f32.xlu0 %v1352
        %v1354 = vpop.xlane.xlu0 %1353
        %v1355 = vmul.f32 %v1354, %v486
        %v1356 = vadd.f32 %v1355, 1e-08
        %v1357 = vrsqrt.pop %v1356
        %v1358 = vmul.f32 %v1349, %v1357
        %v1360 = vlaneseq
        %v1361 = vshrl.u32 %v1360, 7
        %v1362 = vsub.s32 0, %v1361
        %v1363 = vrot.slane %v1350, %v1362
        %v1365 = vmul.f32 %v1358, %v1363
        %v1366 = vld [vmem:[%s8] sm:$0xff]
        %v1367 = vld [vmem:[%s8 + $0x8] sm:$0xff]
        %v1368 = vld [vmem:[%s8 + $0x10] sm:$0xff]
        %v1369 = vld [vmem:[%s8 + $0x18] sm:$0xff]
        %v1370 = vld [vmem:[%s9] sm:$0x1]
        %v1372 = vlaneseq
        %v1373 = vshrl.u32 %v1372, 7
        %v1374 = vsub.s32 0, %v1373
        %v1375 = vrot.slane %v1370, %v1374
        %v1378 = vsel %vm482, %v1365, 0
        %1380 = vmatprep.subr.mxu0 0.0
        %1381 = vmatpush1.msra.mxu0 %v1366
        %1382 = vmatprep.subr.mxu0 0.0
        %1383 = vmatpush1.msra.mxu0 %v1367
        %1384 = vmatprep.subr.mxu0 0.0
        %1385 = vmatpush1.msra.mxu0 %v1368
        %1386 = vmatprep.subr.mxu0 0.0
        %1387 = vmatpush1.msra.mxu0 %v1369
        %1388 = vmatprep.subr.mxu0 0.0
        %1389 = vmatpush1.msra.mxu0 0.0
        %1390 = vmatprep.subr.mxu0 0.0
        %1391 = vmatpush1.msra.mxu0 0.0
        %1392 = vmatprep.subr.mxu0 0.0
        %1393 = vmatpush1.msra.mxu0 0.0
        %1394 = vmatprep.subr.mxu0 0.0
        %1395 = vmatpush1.msra.mxu0 0.0
        %1396 = vmatprep.subr.mxu0 0.0
        %1397 = vmatpush1.msra.mxu0 0.0
        %1398 = vmatprep.subr.mxu0 0.0
        %1399 = vmatpush1.msra.mxu0 0.0
        %1400 = vmatprep.subr.mxu0 0.0
        %1401 = vmatpush1.msra.mxu0 0.0
        %1402 = vmatprep.subr.mxu0 0.0
        %1403 = vmatpush1.msra.mxu0 0.0
        %1404 = vmatprep.subr.mxu0 0.0
        %1405 = vmatpush1.msra.mxu0 0.0
        %1406 = vmatprep.subr.mxu0 0.0
        %1407 = vmatpush1.msra.mxu0 0.0
        %1408 = vmatprep.subr.mxu0 0.0
        %1409 = vmatpush1.msra.mxu0 0.0
        %1410 = vmatprep.subr.mxu0 0.0
        %1411 = vmatpush1.msra.mxu0 0.0
        %1412 = vmatprep.subr.mxu0 0.0
        %1413 = vmatpush1.msra.mxu0 0.0
        %1414 = vmatprep.subr.mxu0 0.0
        %1415 = vmatpush1.msra.mxu0 0.0
        %1416 = vmatprep.subr.mxu0 0.0
        %1417 = vmatpush1.msra.mxu0 0.0
        %1418 = vmatprep.subr.mxu0 0.0
        %1419 = vmatpush1.msra.mxu0 0.0
        %1420 = vmatprep.subr.mxu0 0.0
        %1421 = vmatpush1.msra.mxu0 0.0
        %1422 = vmatprep.subr.mxu0 0.0
        %1423 = vmatpush1.msra.mxu0 0.0
        %1424 = vmatprep.subr.mxu0 0.0
        %1425 = vmatpush1.msra.mxu0 0.0
        %1426 = vmatprep.subr.mxu0 0.0
        %1427 = vmatpush1.msra.mxu0 0.0
        %1428 = vmatprep.subr.mxu0 0.0
        %1429 = vmatpush1.msra.mxu0 0.0
        %1430 = vmatprep.subr.mxu0 0.0
        %1431 = vmatpush1.msra.mxu0 0.0
        %1432 = vmatprep.subr.mxu0 0.0
        %1433 = vmatpush1.msra.mxu0 0.0
        %1434 = vmatprep.subr.mxu0 0.0
        %1435 = vmatpush1.msra.mxu0 0.0
        %1436 = vmatprep.subr.mxu0 0.0
        %1437 = vmatpush1.msra.mxu0 0.0
        %1438 = vmatprep.subr.mxu0 0.0
        %1439 = vmatpush1.msra.mxu0 0.0
        %1440 = vmatprep.subr.mxu0 0.0
        %1441 = vmatpush1.msra.mxu0 0.0
        %1442 = vmatprep.subr.mxu0 0.0
        %1443 = vmatpush1.msra.mxu0 0.0
        %1444 = vmatprep.mubr.f32.mxu0 0.0
        %1445 = vmatmul.mubr.f32.gmra.mrb[0].mxu0 %v1378
        %v1446 = vpop.f32.mrb[0].mxu0
        %v1447 = vadd.f32 %v1375, %v1446
        %v1448 = vpop.f32.mrb[0].mxu0
        %1449 = vdwg.mxu0
        %v1450 = vxor.u32 %v1447, 2147483648
        %v1451 = vmul.f32 %v1450, 1.442695
        %v1452 = vpow.pop %v1451
        %v1453 = vadd.f32 %v1452, 1.0
        %v1454 = vrcp.pop %v1453
        %v1455 = vmul.f32 1.0, %v1454
        %1457 = vrot.lane.b32.xlu0 %v1455, 64
        %v1458 = vpop.permute.xlu0 %1457
        %v1460 = vmul.f32 %v1447, %v1458
        %v1461 = vld [vmem:[%s10] sm:$0xff]
        %v1462 = vld [vmem:[%s10 + $0x8] sm:$0xff]
        %v1463 = vld [vmem:[%s10 + $0x10] sm:$0xff]
        %v1464 = vld [vmem:[%s10 + $0x18] sm:$0xff]
        %v1465 = vld [vmem:[%s10 + $0x20] sm:$0xff]
        %v1466 = vld [vmem:[%s10 + $0x28] sm:$0xff]
        %v1467 = vld [vmem:[%s10 + $0x30] sm:$0xff]
        %v1468 = vld [vmem:[%s10 + $0x38] sm:$0xff]
        %v1469 = vld [vmem:[%s11] sm:$0x1]
        %v1471 = vlaneseq
        %v1472 = vshrl.u32 %v1471, 7
        %v1473 = vsub.s32 0, %v1472
        %v1474 = vrot.slane %v1469, %v1473
        %vm1476 = vcmask 523264
        %v1478 = vsel %vm1476, %v1460, 0
        %1480 = vmatprep.subr.mxu0 0.0
        %1481 = vmatpush1.msra.mxu0 %v1461
        %1482 = vmatprep.subr.mxu0 0.0
        %1483 = vmatpush1.msra.mxu0 %v1462
        %1484 = vmatprep.subr.mxu0 0.0
        %1485 = vmatpush1.msra.mxu0 %v1463
        %1486 = vmatprep.subr.mxu0 0.0
        %1487 = vmatpush1.msra.mxu0 %v1464
        %1488 = vmatprep.subr.mxu0 0.0
        %1489 = vmatpush1.msra.mxu0 %v1465
        %1490 = vmatprep.subr.mxu0 0.0
        %1491 = vmatpush1.msra.mxu0 %v1466
        %1492 = vmatprep.subr.mxu0 0.0
        %1493 = vmatpush1.msra.mxu0 %v1467
        %1494 = vmatprep.subr.mxu0 0.0
        %1495 = vmatpush1.msra.mxu0 %v1468
        %1496 = vmatprep.subr.mxu0 0.0
        %1497 = vmatpush1.msra.mxu0 0.0
        %1498 = vmatprep.subr.mxu0 0.0
        %1499 = vmatpush1.msra.mxu0 0.0
        %1500 = vmatprep.subr.mxu0 0.0
        %1501 = vmatpush1.msra.mxu0 0.0
        %1502 = vmatprep.subr.mxu0 0.0
        %1503 = vmatpush1.msra.mxu0 0.0
        %1504 = vmatprep.subr.mxu0 0.0
        %1505 = vmatpush1.msra.mxu0 0.0
        %1506 = vmatprep.subr.mxu0 0.0
        %1507 = vmatpush1.msra.mxu0 0.0
        %1508 = vmatprep.subr.mxu0 0.0
        %1509 = vmatpush1.msra.mxu0 0.0
        %1510 = vmatprep.subr.mxu0 0.0
        %1511 = vmatpush1.msra.mxu0 0.0
        %1512 = vmatprep.subr.mxu0 0.0
        %1513 = vmatpush1.msra.mxu0 0.0
        %1514 = vmatprep.subr.mxu0 0.0
        %1515 = vmatpush1.msra.mxu0 0.0
        %1516 = vmatprep.subr.mxu0 0.0
        %1517 = vmatpush1.msra.mxu0 0.0
        %1518 = vmatprep.subr.mxu0 0.0
        %1519 = vmatpush1.msra.mxu0 0.0
        %1520 = vmatprep.subr.mxu0 0.0
        %1521 = vmatpush1.msra.mxu0 0.0
        %1522 = vmatprep.subr.mxu0 0.0
        %1523 = vmatpush1.msra.mxu0 0.0
        %1524 = vmatprep.subr.mxu0 0.0
        %1525 = vmatpush1.msra.mxu0 0.0
        %1526 = vmatprep.subr.mxu0 0.0
        %1527 = vmatpush1.msra.mxu0 0.0
        %1528 = vmatprep.subr.mxu0 0.0
        %1529 = vmatpush1.msra.mxu0 0.0
        %1530 = vmatprep.subr.mxu0 0.0
        %1531 = vmatpush1.msra.mxu0 0.0
        %1532 = vmatprep.subr.mxu0 0.0
        %1533 = vmatpush1.msra.mxu0 0.0
        %1534 = vmatprep.subr.mxu0 0.0
        %1535 = vmatpush1.msra.mxu0 0.0
        %1536 = vmatprep.subr.mxu0 0.0
        %1537 = vmatpush1.msra.mxu0 0.0
        %1538 = vmatprep.subr.mxu0 0.0
        %1539 = vmatpush1.msra.mxu0 0.0
        %1540 = vmatprep.subr.mxu0 0.0
        %1541 = vmatpush1.msra.mxu0 0.0
        %1542 = vmatprep.subr.mxu0 0.0
        %1543 = vmatpush1.msra.mxu0 0.0
        %1544 = vmatprep.mubr.f32.mxu0 0.0
        %1545 = vmatmul.mubr.f32.gmra.mrb[0].mxu0 %v1478
        %v1546 = vpop.f32.mrb[0].mxu0
        %v1547 = vadd.f32 %v1474, %v1546
        %v1548 = vpop.f32.mrb[0].mxu0
        %1549 = vdwg.mxu0
        %v1550 = vadd.f32 %v1349, %v1547
        %1551 = vst.msk [vmem:[%s469] sm:$0xff] %vm482, %v1550
        %s1552 = scalar_lea.vmem %s2, 1
        %v1553 = vld [vmem:[%s1552] sm:$0x1]
        %v1554 = vmul.f32 %v1550, %v1550
        %v1555 = vsel %vm482, %v1554, 0.0
        %1556 = vadd.xlane.f32.xlu0 %v1555
        %v1557 = vpop.xlane.xlu0 %1556
        %v1558 = vmul.f32 %v1557, %v486
        %v1559 = vadd.f32 %v1558, 1e-08
        %v1560 = vrsqrt.pop %v1559
        %v1561 = vmul.f32 %v1550, %v1560
        %v1563 = vlaneseq
        %v1564 = vshrl.u32 %v1563, 7
        %v1565 = vsub.s32 0, %v1564
        %v1566 = vrot.slane %v1553, %v1565
        %v1568 = vmul.f32 %v1561, %v1566
        %s1569 = scalar_lea.vmem %s4, 32
        %v1570 = vld [vmem:[%s1569] sm:$0xff]
        %v1571 = vld [vmem:[%s1569 + $0x8] sm:$0xff]
        %v1572 = vld [vmem:[%s1569 + $0x10] sm:$0xff]
        %v1573 = vld [vmem:[%s1569 + $0x18] sm:$0xff]
        %s1574 = scalar_lea.vmem %s5, 1
        %v1575 = vld [vmem:[%s1574] sm:$0x1]
        %v1577 = vlaneseq
        %v1578 = vshrl.u32 %v1577, 7
        %v1579 = vsub.s32 0, %v1578
        %v1580 = vrot.slane %v1575, %v1579
        %v1583 = vsel %vm482, %v1568, 0
        %1585 = vmatprep.subr.mxu0 0.0
        %1586 = vmatpush1.msra.mxu0 %v1570
        %1587 = vmatprep.subr.mxu0 0.0
        %1588 = vmatpush1.msra.mxu0 %v1571
        %1589 = vmatprep.subr.mxu0 0.0
        %1590 = vmatpush1.msra.mxu0 %v1572
        %1591 = vmatprep.subr.mxu0 0.0
        %1592 = vmatpush1.msra.mxu0 %v1573
        %1593 = vmatprep.subr.mxu0 0.0
        %1594 = vmatpush1.msra.mxu0 0.0
        %1595 = vmatprep.subr.mxu0 0.0
        %1596 = vmatpush1.msra.mxu0 0.0
        %1597 = vmatprep.subr.mxu0 0.0
        %1598 = vmatpush1.msra.mxu0 0.0
        %1599 = vmatprep.subr.mxu0 0.0
        %1600 = vmatpush1.msra.mxu0 0.0
        %1601 = vmatprep.subr.mxu0 0.0
        %1602 = vmatpush1.msra.mxu0 0.0
        %1603 = vmatprep.subr.mxu0 0.0
        %1604 = vmatpush1.msra.mxu0 0.0
        %1605 = vmatprep.subr.mxu0 0.0
        %1606 = vmatpush1.msra.mxu0 0.0
        %1607 = vmatprep.subr.mxu0 0.0
        %1608 = vmatpush1.msra.mxu0 0.0
        %1609 = vmatprep.subr.mxu0 0.0
        %1610 = vmatpush1.msra.mxu0 0.0
        %1611 = vmatprep.subr.mxu0 0.0
        %1612 = vmatpush1.msra.mxu0 0.0
        %1613 = vmatprep.subr.mxu0 0.0
        %1614 = vmatpush1.msra.mxu0 0.0
        %1615 = vmatprep.subr.mxu0 0.0
        %1616 = vmatpush1.msra.mxu0 0.0
        %1617 = vmatprep.subr.mxu0 0.0
        %1618 = vmatpush1.msra.mxu0 0.0
        %1619 = vmatprep.subr.mxu0 0.0
        %1620 = vmatpush1.msra.mxu0 0.0
        %1621 = vmatprep.subr.mxu0 0.0
        %1622 = vmatpush1.msra.mxu0 0.0
        %1623 = vmatprep.subr.mxu0 0.0
        %1624 = vmatpush1.msra.mxu0 0.0
        %1625 = vmatprep.subr.mxu0 0.0
        %1626 = vmatpush1.msra.mxu0 0.0
        %1627 = vmatprep.subr.mxu0 0.0
        %1628 = vmatpush1.msra.mxu0 0.0
        %1629 = vmatprep.subr.mxu0 0.0
        %1630 = vmatpush1.msra.mxu0 0.0
        %1631 = vmatprep.subr.mxu0 0.0
        %1632 = vmatpush1.msra.mxu0 0.0
        %1633 = vmatprep.subr.mxu0 0.0
        %1634 = vmatpush1.msra.mxu0 0.0
        %1635 = vmatprep.subr.mxu0 0.0
        %1636 = vmatpush1.msra.mxu0 0.0
        %1637 = vmatprep.subr.mxu0 0.0
        %1638 = vmatpush1.msra.mxu0 0.0
        %1639 = vmatprep.subr.mxu0 0.0
        %1640 = vmatpush1.msra.mxu0 0.0
        %1641 = vmatprep.subr.mxu0 0.0
        %1642 = vmatpush1.msra.mxu0 0.0
        %1643 = vmatprep.subr.mxu0 0.0
        %1644 = vmatpush1.msra.mxu0 0.0
        %1645 = vmatprep.subr.mxu0 0.0
        %1646 = vmatpush1.msra.mxu0 0.0
        %1647 = vmatprep.subr.mxu0 0.0
        %1648 = vmatpush1.msra.mxu0 0.0
        %1649 = vmatprep.mubr.f32.mxu0 0.0
        %1650 = vmatmul.mubr.f32.gmra.mrb[0].mxu0 %v1583
        %v1651 = vpop.f32.mrb[0].mxu0
        %v1652 = vadd.f32 %v1580, %v1651
        %v1653 = vpop.f32.mrb[0].mxu0
        %1654 = vdwg.mxu0
        %v1655 = vmul.f32 %v1652, 0.35355338
        %1657 = vrot.lane.b32.xlu0 %v1652, 96
        %v1658 = vpop.permute.xlu0 %1657
        %v1660 = vsel %vm586, %v1655, 0
        %v1662 = vsel %vm586, %v1658, 0
        %1664 = vmatprep.subr.mxu0 0.0
        %1665 = vmatpush1.xpose.msra.mxu0 %v1662
        %1666 = vmatprep.subr.mxu0 0.0
        %1667 = vmatpush1.xpose.msra.mxu0 0.0
        %1668 = vmatprep.subr.mxu0 0.0
        %1669 = vmatpush1.xpose.msra.mxu0 0.0
        %1670 = vmatprep.subr.mxu0 0.0
        %1671 = vmatpush1.xpose.msra.mxu0 0.0
        %1672 = vmatprep.subr.mxu0 0.0
        %1673 = vmatpush1.xpose.msra.mxu0 0.0
        %1674 = vmatprep.subr.mxu0 0.0
        %1675 = vmatpush1.xpose.msra.mxu0 0.0
        %1676 = vmatprep.subr.mxu0 0.0
        %1677 = vmatpush1.xpose.msra.mxu0 0.0
        %1678 = vmatprep.subr.mxu0 0.0
        %1679 = vmatpush1.xpose.msra.mxu0 0.0
        %1680 = vmatprep.subr.mxu0 0.0
        %1681 = vmatpush1.xpose.msra.mxu0 0.0
        %1682 = vmatprep.subr.mxu0 0.0
        %1683 = vmatpush1.xpose.msra.mxu0 0.0
        %1684 = vmatprep.subr.mxu0 0.0
        %1685 = vmatpush1.xpose.msra.mxu0 0.0
        %1686 = vmatprep.subr.mxu0 0.0
        %1687 = vmatpush1.xpose.msra.mxu0 0.0
        %1688 = vmatprep.subr.mxu0 0.0
        %1689 = vmatpush1.xpose.msra.mxu0 0.0
        %1690 = vmatprep.subr.mxu0 0.0
        %1691 = vmatpush1.xpose.msra.mxu0 0.0
        %1692 = vmatprep.subr.mxu0 0.0
        %1693 = vmatpush1.xpose.msra.mxu0 0.0
        %1694 = vmatprep.subr.mxu0 0.0
        %1695 = vmatpush1.xpose.msra.mxu0 0.0
        %1696 = vmatprep.subr.mxu0 0.0
        %1697 = vmatpush1.xpose.msra.mxu0 0.0
        %1698 = vmatprep.subr.mxu0 0.0
        %1699 = vmatpush1.xpose.msra.mxu0 0.0
        %1700 = vmatprep.subr.mxu0 0.0
        %1701 = vmatpush1.xpose.msra.mxu0 0.0
        %1702 = vmatprep.subr.mxu0 0.0
        %1703 = vmatpush1.xpose.msra.mxu0 0.0
        %1704 = vmatprep.subr.mxu0 0.0
        %1705 = vmatpush1.xpose.msra.mxu0 0.0
        %1706 = vmatprep.subr.mxu0 0.0
        %1707 = vmatpush1.xpose.msra.mxu0 0.0
        %1708 = vmatprep.subr.mxu0 0.0
        %1709 = vmatpush1.xpose.msra.mxu0 0.0
        %1710 = vmatprep.subr.mxu0 0.0
        %1711 = vmatpush1.xpose.msra.mxu0 0.0
        %1712 = vmatprep.subr.mxu0 0.0
        %1713 = vmatpush1.xpose.msra.mxu0 0.0
        %1714 = vmatprep.subr.mxu0 0.0
        %1715 = vmatpush1.xpose.msra.mxu0 0.0
        %1716 = vmatprep.subr.mxu0 0.0
        %1717 = vmatpush1.xpose.msra.mxu0 0.0
        %1718 = vmatprep.subr.mxu0 0.0
        %1719 = vmatpush1.xpose.msra.mxu0 0.0
        %1720 = vmatprep.subr.mxu0 0.0
        %1721 = vmatpush1.xpose.msra.mxu0 0.0
        %1722 = vmatprep.subr.mxu0 0.0
        %1723 = vmatpush1.xpose.msra.mxu0 0.0
        %1724 = vmatprep.subr.mxu0 0.0
        %1725 = vmatpush1.xpose.msra.mxu0 0.0
        %1726 = vmatprep.subr.mxu0 0.0
        %1727 = vmatpush1.xpose.msra.mxu0 0.0
        %1728 = vmatprep.mubr.f32.mxu0 0.0
        %1729 = vmatmul.mubr.f32.gmra.mrb[0].mxu0 %v1660
        %v1730 = vpop.f32.mrb[0].mxu0
        %v1731 = vadd.f32 0.0, %v1730
        %v1732 = vpop.f32.mrb[0].mxu0
        %1733 = vdwg.mxu0
        %v1734 = vsel %vm479, %v1731, -1e+30
        %v1735 = vsel %vm586, %v1734, -inf
        %1736 = vmax.xlane.f32.xlu0 %v1735
        %v1737 = vpop.xlane.xlu0 %1736
        %v1738 = vsub.f32 %v1734, %v1737
        %v1739 = vmul.f32 %v1738, 1.442695
        %v1740 = vpow.pop %v1739
        %v1741 = vsel %vm586, %v1740, 0.0
        %1742 = vadd.xlane.f32.xlu0 %v1741
        %v1743 = vpop.xlane.xlu0 %1742
        %v1744 = vrcp.pop %v1743
        %v1745 = vmul.f32 %v1740, %v1744
        %1746 = vrot.lane.b32.xlu0 %v1652, 64
        %v1747 = vpop.permute.xlu0 %1746
        %v1750 = vsel %vm586, %v1745, 0
        %1752 = vmatprep.subr.mxu0 0.0
        %1753 = vmatpush1.msra.mxu0 %v1747
        %1754 = vmatprep.subr.mxu0 0.0
        %1755 = vmatpush1.msra.mxu0 0.0
        %1756 = vmatprep.subr.mxu0 0.0
        %1757 = vmatpush1.msra.mxu0 0.0
        %1758 = vmatprep.subr.mxu0 0.0
        %1759 = vmatpush1.msra.mxu0 0.0
        %1760 = vmatprep.subr.mxu0 0.0
        %1761 = vmatpush1.msra.mxu0 0.0
        %1762 = vmatprep.subr.mxu0 0.0
        %1763 = vmatpush1.msra.mxu0 0.0
        %1764 = vmatprep.subr.mxu0 0.0
        %1765 = vmatpush1.msra.mxu0 0.0
        %1766 = vmatprep.subr.mxu0 0.0
        %1767 = vmatpush1.msra.mxu0 0.0
        %1768 = vmatprep.subr.mxu0 0.0
        %1769 = vmatpush1.msra.mxu0 0.0
        %1770 = vmatprep.subr.mxu0 0.0
        %1771 = vmatpush1.msra.mxu0 0.0
        %1772 = vmatprep.subr.mxu0 0.0
        %1773 = vmatpush1.msra.mxu0 0.0
        %1774 = vmatprep.subr.mxu0 0.0
        %1775 = vmatpush1.msra.mxu0 0.0
        %1776 = vmatprep.subr.mxu0 0.0
        %1777 = vmatpush1.msra.mxu0 0.0
        %1778 = vmatprep.subr.mxu0 0.0
        %1779 = vmatpush1.msra.mxu0 0.0
        %1780 = vmatprep.subr.mxu0 0.0
        %1781 = vmatpush1.msra.mxu0 0.0
        %1782 = vmatprep.subr.mxu0 0.0
        %1783 = vmatpush1.msra.mxu0 0.0
        %1784 = vmatprep.subr.mxu0 0.0
        %1785 = vmatpush1.msra.mxu0 0.0
        %1786 = vmatprep.subr.mxu0 0.0
        %1787 = vmatpush1.msra.mxu0 0.0
        %1788 = vmatprep.subr.mxu0 0.0
        %1789 = vmatpush1.msra.mxu0 0.0
        %1790 = vmatprep.subr.mxu0 0.0
        %1791 = vmatpush1.msra.mxu0 0.0
        %1792 = vmatprep.subr.mxu0 0.0
        %1793 = vmatpush1.msra.mxu0 0.0
        %1794 = vmatprep.subr.mxu0 0.0
        %1795 = vmatpush1.msra.mxu0 0.0
        %1796 = vmatprep.subr.mxu0 0.0
        %1797 = vmatpush1.msra.mxu0 0.0
        %1798 = vmatprep.subr.mxu0 0.0
        %1799 = vmatpush1.msra.mxu0 0.0
        %1800 = vmatprep.subr.mxu0 0.0
        %1801 = vmatpush1.msra.mxu0 0.0
        %1802 = vmatprep.subr.mxu0 0.0
        %1803 = vmatpush1.msra.mxu0 0.0
        %1804 = vmatprep.subr.mxu0 0.0
        %1805 = vmatpush1.msra.mxu0 0.0
        %1806 = vmatprep.subr.mxu0 0.0
        %1807 = vmatpush1.msra.mxu0 0.0
        %1808 = vmatprep.subr.mxu0 0.0
        %1809 = vmatpush1.msra.mxu0 0.0
        %1810 = vmatprep.subr.mxu0 0.0
        %1811 = vmatpush1.msra.mxu0 0.0
        %1812 = vmatprep.subr.mxu0 0.0
        %1813 = vmatpush1.msra.mxu0 0.0
        %1814 = vmatprep.subr.mxu0 0.0
        %1815 = vmatpush1.msra.mxu0 0.0
        %1816 = vmatprep.mubr.f32.mxu0 0.0
        %1817 = vmatmul.mubr.f32.gmra.mrb[0].mxu0 %v1750
        %v1818 = vpop.f32.mrb[0].mxu0
        %v1819 = vadd.f32 0.0, %v1818
        %v1820 = vpop.f32.mrb[0].mxu0
        %1821 = vdwg.mxu0
        %1822 = vrot.lane.b32.xlu0 %v1655, 120
        %v1823 = vpop.permute.xlu0 %1822
        %1824 = vrot.lane.b32.xlu0 %v1652, 88
        %v1825 = vpop.permute.xlu0 %1824
        %v1826 = vsel %vm586, %v1823, 0
        %v1828 = vsel %vm586, %v1825, 0
        %1830 = vmatprep.subr.mxu0 0.0
        %1831 = vmatpush1.xpose.msra.mxu0 %v1828
        %1832 = vmatprep.subr.mxu0 0.0
        %1833 = vmatpush1.xpose.msra.mxu0 0.0
        %1834 = vmatprep.subr.mxu0 0.0
        %1835 = vmatpush1.xpose.msra.mxu0 0.0
        %1836 = vmatprep.subr.mxu0 0.0
        %1837 = vmatpush1.xpose.msra.mxu0 0.0
        %1838 = vmatprep.subr.mxu0 0.0
        %1839 = vmatpush1.xpose.msra.mxu0 0.0
        %1840 = vmatprep.subr.mxu0 0.0
        %1841 = vmatpush1.xpose.msra.mxu0 0.0
        %1842 = vmatprep.subr.mxu0 0.0
        %1843 = vmatpush1.xpose.msra.mxu0 0.0
        %1844 = vmatprep.subr.mxu0 0.0
        %1845 = vmatpush1.xpose.msra.mxu0 0.0
        %1846 = vmatprep.subr.mxu0 0.0
        %1847 = vmatpush1.xpose.msra.mxu0 0.0
        %1848 = vmatprep.subr.mxu0 0.0
        %1849 = vmatpush1.xpose.msra.mxu0 0.0
        %1850 = vmatprep.subr.mxu0 0.0
        %1851 = vmatpush1.xpose.msra.mxu0 0.0
        %1852 = vmatprep.subr.mxu0 0.0
        %1853 = vmatpush1.xpose.msra.mxu0 0.0
        %1854 = vmatprep.subr.mxu0 0.0
        %1855 = vmatpush1.xpose.msra.mxu0 0.0
        %1856 = vmatprep.subr.mxu0 0.0
        %1857 = vmatpush1.xpose.msra.mxu0 0.0
        %1858 = vmatprep.subr.mxu0 0.0
        %1859 = vmatpush1.xpose.msra.mxu0 0.0
        %1860 = vmatprep.subr.mxu0 0.0
        %1861 = vmatpush1.xpose.msra.mxu0 0.0
        %1862 = vmatprep.subr.mxu0 0.0
        %1863 = vmatpush1.xpose.msra.mxu0 0.0
        %1864 = vmatprep.subr.mxu0 0.0
        %1865 = vmatpush1.xpose.msra.mxu0 0.0
        %1866 = vmatprep.subr.mxu0 0.0
        %1867 = vmatpush1.xpose.msra.mxu0 0.0
        %1868 = vmatprep.subr.mxu0 0.0
        %1869 = vmatpush1.xpose.msra.mxu0 0.0
        %1870 = vmatprep.subr.mxu0 0.0
        %1871 = vmatpush1.xpose.msra.mxu0 0.0
        %1872 = vmatprep.subr.mxu0 0.0
        %1873 = vmatpush1.xpose.msra.mxu0 0.0
        %1874 = vmatprep.subr.mxu0 0.0
        %1875 = vmatpush1.xpose.msra.mxu0 0.0
        %1876 = vmatprep.subr.mxu0 0.0
        %1877 = vmatpush1.xpose.msra.mxu0 0.0
        %1878 = vmatprep.subr.mxu0 0.0
        %1879 = vmatpush1.xpose.msra.mxu0 0.0
        %1880 = vmatprep.subr.mxu0 0.0
        %1881 = vmatpush1.xpose.msra.mxu0 0.0
        %1882 = vmatprep.subr.mxu0 0.0
        %1883 = vmatpush1.xpose.msra.mxu0 0.0
        %1884 = vmatprep.subr.mxu0 0.0
        %1885 = vmatpush1.xpose.msra.mxu0 0.0
        %1886 = vmatprep.subr.mxu0 0.0
        %1887 = vmatpush1.xpose.msra.mxu0 0.0
        %1888 = vmatprep.subr.mxu0 0.0
        %1889 = vmatpush1.xpose.msra.mxu0 0.0
        %1890 = vmatprep.subr.mxu0 0.0
        %1891 = vmatpush1.xpose.msra.mxu0 0.0
        %1892 = vmatprep.subr.mxu0 0.0
        %1893 = vmatpush1.xpose.msra.mxu0 0.0
        %1894 = vmatprep.mubr.f32.mxu0 0.0
        %1895 = vmatmul.mubr.f32.gmra.mrb[0].mxu0 %v1826
        %v1896 = vpop.f32.mrb[0].mxu0
        %v1897 = vadd.f32 0.0, %v1896
        %v1898 = vpop.f32.mrb[0].mxu0
        %1899 = vdwg.mxu0
        %v1900 = vsel %vm479, %v1897, -1e+30
        %v1901 = vsel %vm586, %v1900, -inf
        %1902 = vmax.xlane.f32.xlu0 %v1901
        %v1903 = vpop.xlane.xlu0 %1902
        %v1904 = vsub.f32 %v1900, %v1903
        %v1905 = vmul.f32 %v1904, 1.442695
        %v1906 = vpow.pop %v1905
        %v1907 = vsel %vm586, %v1906, 0.0
        %1908 = vadd.xlane.f32.xlu0 %v1907
        %v1909 = vpop.xlane.xlu0 %1908
        %v1910 = vrcp.pop %v1909
        %v1911 = vmul.f32 %v1906, %v1910
        %1912 = vrot.lane.b32.xlu0 %v1652, 56
        %v1913 = vpop.permute.xlu0 %1912
        %v1916 = vsel %vm586, %v1911, 0
        %1918 = vmatprep.subr.mxu0 0.0
        %1919 = vmatpush1.msra.mxu0 %v1913
        %1920 = vmatprep.subr.mxu0 0.0
        %1921 = vmatpush1.msra.mxu0 0.0
        %1922 = vmatprep.subr.mxu0 0.0
        %1923 = vmatpush1.msra.mxu0 0.0
        %1924 = vmatprep.subr.mxu0 0.0
        %1925 = vmatpush1.msra.mxu0 0.0
        %1926 = vmatprep.subr.mxu0 0.0
        %1927 = vmatpush1.msra.mxu0 0.0
        %1928 = vmatprep.subr.mxu0 0.0
        %1929 = vmatpush1.msra.mxu0 0.0
        %1930 = vmatprep.subr.mxu0 0.0
        %1931 = vmatpush1.msra.mxu0 0.0
        %1932 = vmatprep.subr.mxu0 0.0
        %1933 = vmatpush1.msra.mxu0 0.0
        %1934 = vmatprep.subr.mxu0 0.0
        %1935 = vmatpush1.msra.mxu0 0.0
        %1936 = vmatprep.subr.mxu0 0.0
        %1937 = vmatpush1.msra.mxu0 0.0
        %1938 = vmatprep.subr.mxu0 0.0
        %1939 = vmatpush1.msra.mxu0 0.0
        %1940 = vmatprep.subr.mxu0 0.0
        %1941 = vmatpush1.msra.mxu0 0.0
        %1942 = vmatprep.subr.mxu0 0.0
        %1943 = vmatpush1.msra.mxu0 0.0
        %1944 = vmatprep.subr.mxu0 0.0
        %1945 = vmatpush1.msra.mxu0 0.0
        %1946 = vmatprep.subr.mxu0 0.0
        %1947 = vmatpush1.msra.mxu0 0.0
        %1948 = vmatprep.subr.mxu0 0.0
        %1949 = vmatpush1.msra.mxu0 0.0
        %1950 = vmatprep.subr.mxu0 0.0
        %1951 = vmatpush1.msra.mxu0 0.0
        %1952 = vmatprep.subr.mxu0 0.0
        %1953 = vmatpush1.msra.mxu0 0.0
        %1954 = vmatprep.subr.mxu0 0.0
        %1955 = vmatpush1.msra.mxu0 0.0
        %1956 = vmatprep.subr.mxu0 0.0
        %1957 = vmatpush1.msra.mxu0 0.0
        %1958 = vmatprep.subr.mxu0 0.0
        %1959 = vmatpush1.msra.mxu0 0.0
        %1960 = vmatprep.subr.mxu0 0.0
        %1961 = vmatpush1.msra.mxu0 0.0
        %1962 = vmatprep.subr.mxu0 0.0
        %1963 = vmatpush1.msra.mxu0 0.0
        %1964 = vmatprep.subr.mxu0 0.0
        %1965 = vmatpush1.msra.mxu0 0.0
        %1966 = vmatprep.subr.mxu0 0.0
        %1967 = vmatpush1.msra.mxu0 0.0
        %1968 = vmatprep.subr.mxu0 0.0
        %1969 = vmatpush1.msra.mxu0 0.0
        %1970 = vmatprep.subr.mxu0 0.0
        %1971 = vmatpush1.msra.mxu0 0.0
        %1972 = vmatprep.subr.mxu0 0.0
        %1973 = vmatpush1.msra.mxu0 0.0
        %1974 = vmatprep.subr.mxu0 0.0
        %1975 = vmatpush1.msra.mxu0 0.0
        %1976 = vmatprep.subr.mxu0 0.0
        %1977 = vmatpush1.msra.mxu0 0.0
        %1978 = vmatprep.subr.mxu0 0.0
        %1979 = vmatpush1.msra.mxu0 0.0
        %1980 = vmatprep.subr.mxu0 0.0
        %1981 = vmatpush1.msra.mxu0 0.0
        %1982 = vmatprep.mubr.f32.mxu0 0.0
        %1983 = vmatmul.mubr.f32.gmra.mrb[0].mxu0 %v1916
        %v1984 = vpop.f32.mrb[0].mxu0
        %v1985 = vadd.f32 0.0, %v1984
        %v1986 = vpop.f32.mrb[0].mxu0
        %1987 = vdwg.mxu0
        %1988 = vrot.lane.b32.xlu0 %v1655, 112
        %v1989 = vpop.permute.xlu0 %1988
        %1990 = vrot.lane.b32.xlu0 %v1652, 80
        %v1991 = vpop.permute.xlu0 %1990
        %v1992 = vsel %vm586, %v1989, 0
        %v1994 = vsel %vm586, %v1991, 0
        %1996 = vmatprep.subr.mxu0 0.0
        %1997 = vmatpush1.xpose.msra.mxu0 %v1994
        %1998 = vmatprep.subr.mxu0 0.0
        %1999 = vmatpush1.xpose.msra.mxu0 0.0
        %2000 = vmatprep.subr.mxu0 0.0
        %2001 = vmatpush1.xpose.msra.mxu0 0.0
        %2002 = vmatprep.subr.mxu0 0.0
        %2003 = vmatpush1.xpose.msra.mxu0 0.0
        %2004 = vmatprep.subr.mxu0 0.0
        %2005 = vmatpush1.xpose.msra.mxu0 0.0
        %2006 = vmatprep.subr.mxu0 0.0
        %2007 = vmatpush1.xpose.msra.mxu0 0.0
        %2008 = vmatprep.subr.mxu0 0.0
        %2009 = vmatpush1.xpose.msra.mxu0 0.0
        %2010 = vmatprep.subr.mxu0 0.0
        %2011 = vmatpush1.xpose.msra.mxu0 0.0
        %2012 = vmatprep.subr.mxu0 0.0
        %2013 = vmatpush1.xpose.msra.mxu0 0.0
        %2014 = vmatprep.subr.mxu0 0.0
        %2015 = vmatpush1.xpose.msra.mxu0 0.0
        %2016 = vmatprep.subr.mxu0 0.0
        %2017 = vmatpush1.xpose.msra.mxu0 0.0
        %2018 = vmatprep.subr.mxu0 0.0
        %2019 = vmatpush1.xpose.msra.mxu0 0.0
        %2020 = vmatprep.subr.mxu0 0.0
        %2021 = vmatpush1.xpose.msra.mxu0 0.0
        %2022 = vmatprep.subr.mxu0 0.0
        %2023 = vmatpush1.xpose.msra.mxu0 0.0
        %2024 = vmatprep.subr.mxu0 0.0
        %2025 = vmatpush1.xpose.msra.mxu0 0.0
        %2026 = vmatprep.subr.mxu0 0.0
        %2027 = vmatpush1.xpose.msra.mxu0 0.0
        %2028 = vmatprep.subr.mxu0 0.0
        %2029 = vmatpush1.xpose.msra.mxu0 0.0
        %2030 = vmatprep.subr.mxu0 0.0
        %2031 = vmatpush1.xpose.msra.mxu0 0.0
        %2032 = vmatprep.subr.mxu0 0.0
        %2033 = vmatpush1.xpose.msra.mxu0 0.0
        %2034 = vmatprep.subr.mxu0 0.0
        %2035 = vmatpush1.xpose.msra.mxu0 0.0
        %2036 = vmatprep.subr.mxu0 0.0
        %2037 = vmatpush1.xpose.msra.mxu0 0.0
        %2038 = vmatprep.subr.mxu0 0.0
        %2039 = vmatpush1.xpose.msra.mxu0 0.0
        %2040 = vmatprep.subr.mxu0 0.0
        %2041 = vmatpush1.xpose.msra.mxu0 0.0
        %2042 = vmatprep.subr.mxu0 0.0
        %2043 = vmatpush1.xpose.msra.mxu0 0.0
        %2044 = vmatprep.subr.mxu0 0.0
        %2045 = vmatpush1.xpose.msra.mxu0 0.0
        %2046 = vmatprep.subr.mxu0 0.0
        %2047 = vmatpush1.xpose.msra.mxu0 0.0
        %2048 = vmatprep.subr.mxu0 0.0
        %2049 = vmatpush1.xpose.msra.mxu0 0.0
        %2050 = vmatprep.subr.mxu0 0.0
        %2051 = vmatpush1.xpose.msra.mxu0 0.0
        %2052 = vmatprep.subr.mxu0 0.0
        %2053 = vmatpush1.xpose.msra.mxu0 0.0
        %2054 = vmatprep.subr.mxu0 0.0
        %2055 = vmatpush1.xpose.msra.mxu0 0.0
        %2056 = vmatprep.subr.mxu0 0.0
        %2057 = vmatpush1.xpose.msra.mxu0 0.0
        %2058 = vmatprep.subr.mxu0 0.0
        %2059 = vmatpush1.xpose.msra.mxu0 0.0
        %2060 = vmatprep.mubr.f32.mxu0 0.0
        %2061 = vmatmul.mubr.f32.gmra.mrb[0].mxu0 %v1992
        %v2062 = vpop.f32.mrb[0].mxu0
        %v2063 = vadd.f32 0.0, %v2062
        %v2064 = vpop.f32.mrb[0].mxu0
        %2065 = vdwg.mxu0
        %v2066 = vsel %vm479, %v2063, -1e+30
        %v2067 = vsel %vm586, %v2066, -inf
        %2068 = vmax.xlane.f32.xlu0 %v2067
        %v2069 = vpop.xlane.xlu0 %2068
        %v2070 = vsub.f32 %v2066, %v2069
        %v2071 = vmul.f32 %v2070, 1.442695
        %v2072 = vpow.pop %v2071
        %v2073 = vsel %vm586, %v2072, 0.0
        %2074 = vadd.xlane.f32.xlu0 %v2073
        %v2075 = vpop.xlane.xlu0 %2074
        %v2076 = vrcp.pop %v2075
        %v2077 = vmul.f32 %v2072, %v2076
        %2078 = vrot.lane.b32.xlu0 %v1652, 48
        %v2079 = vpop.permute.xlu0 %2078
        %v2082 = vsel %vm586, %v2077, 0
        %2084 = vmatprep.subr.mxu0 0.0
        %2085 = vmatpush1.msra.mxu0 %v2079
        %2086 = vmatprep.subr.mxu0 0.0
        %2087 = vmatpush1.msra.mxu0 0.0
        %2088 = vmatprep.subr.mxu0 0.0
        %2089 = vmatpush1.msra.mxu0 0.0
        %2090 = vmatprep.subr.mxu0 0.0
        %2091 = vmatpush1.msra.mxu0 0.0
        %2092 = vmatprep.subr.mxu0 0.0
        %2093 = vmatpush1.msra.mxu0 0.0
        %2094 = vmatprep.subr.mxu0 0.0
        %2095 = vmatpush1.msra.mxu0 0.0
        %2096 = vmatprep.subr.mxu0 0.0
        %2097 = vmatpush1.msra.mxu0 0.0
        %2098 = vmatprep.subr.mxu0 0.0
        %2099 = vmatpush1.msra.mxu0 0.0
        %2100 = vmatprep.subr.mxu0 0.0
        %2101 = vmatpush1.msra.mxu0 0.0
        %2102 = vmatprep.subr.mxu0 0.0
        %2103 = vmatpush1.msra.mxu0 0.0
        %2104 = vmatprep.subr.mxu0 0.0
        %2105 = vmatpush1.msra.mxu0 0.0
        %2106 = vmatprep.subr.mxu0 0.0
        %2107 = vmatpush1.msra.mxu0 0.0
        %2108 = vmatprep.subr.mxu0 0.0
        %2109 = vmatpush1.msra.mxu0 0.0
        %2110 = vmatprep.subr.mxu0 0.0
        %2111 = vmatpush1.msra.mxu0 0.0
        %2112 = vmatprep.subr.mxu0 0.0
        %2113 = vmatpush1.msra.mxu0 0.0
        %2114 = vmatprep.subr.mxu0 0.0
        %2115 = vmatpush1.msra.mxu0 0.0
        %2116 = vmatprep.subr.mxu0 0.0
        %2117 = vmatpush1.msra.mxu0 0.0
        %2118 = vmatprep.subr.mxu0 0.0
        %2119 = vmatpush1.msra.mxu0 0.0
        %2120 = vmatprep.subr.mxu0 0.0
        %2121 = vmatpush1.msra.mxu0 0.0
        %2122 = vmatprep.subr.mxu0 0.0
        %2123 = vmatpush1.msra.mxu0 0.0
        %2124 = vmatprep.subr.mxu0 0.0
        %2125 = vmatpush1.msra.mxu0 0.0
        %2126 = vmatprep.subr.mxu0 0.0
        %2127 = vmatpush1.msra.mxu0 0.0
        %2128 = vmatprep.subr.mxu0 0.0
        %2129 = vmatpush1.msra.mxu0 0.0
        %2130 = vmatprep.subr.mxu0 0.0
        %2131 = vmatpush1.msra.mxu0 0.0
        %2132 = vmatprep.subr.mxu0 0.0
        %2133 = vmatpush1.msra.mxu0 0.0
        %2134 = vmatprep.subr.mxu0 0.0
        %2135 = vmatpush1.msra.mxu0 0.0
        %2136 = vmatprep.subr.mxu0 0.0
        %2137 = vmatpush1.msra.mxu0 0.0
        %2138 = vmatprep.subr.mxu0 0.0
        %2139 = vmatpush1.msra.mxu0 0.0
        %2140 = vmatprep.subr.mxu0 0.0
        %2141 = vmatpush1.msra.mxu0 0.0
        %2142 = vmatprep.subr.mxu0 0.0
        %2143 = vmatpush1.msra.mxu0 0.0
        %2144 = vmatprep.subr.mxu0 0.0
        %2145 = vmatpush1.msra.mxu0 0.0
        %2146 = vmatprep.subr.mxu0 0.0
        %2147 = vmatpush1.msra.mxu0 0.0
        %2148 = vmatprep.mubr.f32.mxu0 0.0
        %2149 = vmatmul.mubr.f32.gmra.mrb[0].mxu0 %v2082
        %v2150 = vpop.f32.mrb[0].mxu0
        %v2151 = vadd.f32 0.0, %v2150
        %v2152 = vpop.f32.mrb[0].mxu0
        %2153 = vdwg.mxu0
        %2154 = vrot.lane.b32.xlu0 %v1655, 104
        %v2155 = vpop.permute.xlu0 %2154
        %2156 = vrot.lane.b32.xlu0 %v1652, 72
        %v2157 = vpop.permute.xlu0 %2156
        %v2158 = vsel %vm586, %v2155, 0
        %v2160 = vsel %vm586, %v2157, 0
        %2162 = vmatprep.subr.mxu0 0.0
        %2163 = vmatpush1.xpose.msra.mxu0 %v2160
        %2164 = vmatprep.subr.mxu0 0.0
        %2165 = vmatpush1.xpose.msra.mxu0 0.0
        %2166 = vmatprep.subr.mxu0 0.0
        %2167 = vmatpush1.xpose.msra.mxu0 0.0
        %2168 = vmatprep.subr.mxu0 0.0
        %2169 = vmatpush1.xpose.msra.mxu0 0.0
        %2170 = vmatprep.subr.mxu0 0.0
        %2171 = vmatpush1.xpose.msra.mxu0 0.0
        %2172 = vmatprep.subr.mxu0 0.0
        %2173 = vmatpush1.xpose.msra.mxu0 0.0
        %2174 = vmatprep.subr.mxu0 0.0
        %2175 = vmatpush1.xpose.msra.mxu0 0.0
        %2176 = vmatprep.subr.mxu0 0.0
        %2177 = vmatpush1.xpose.msra.mxu0 0.0
        %2178 = vmatprep.subr.mxu0 0.0
        %2179 = vmatpush1.xpose.msra.mxu0 0.0
        %2180 = vmatprep.subr.mxu0 0.0
        %2181 = vmatpush1.xpose.msra.mxu0 0.0
        %2182 = vmatprep.subr.mxu0 0.0
        %2183 = vmatpush1.xpose.msra.mxu0 0.0
        %2184 = vmatprep.subr.mxu0 0.0
        %2185 = vmatpush1.xpose.msra.mxu0 0.0
        %2186 = vmatprep.subr.mxu0 0.0
        %2187 = vmatpush1.xpose.msra.mxu0 0.0
        %2188 = vmatprep.subr.mxu0 0.0
        %2189 = vmatpush1.xpose.msra.mxu0 0.0
        %2190 = vmatprep.subr.mxu0 0.0
        %2191 = vmatpush1.xpose.msra.mxu0 0.0
        %2192 = vmatprep.subr.mxu0 0.0
        %2193 = vmatpush1.xpose.msra.mxu0 0.0
        %2194 = vmatprep.subr.mxu0 0.0
        %2195 = vmatpush1.xpose.msra.mxu0 0.0
        %2196 = vmatprep.subr.mxu0 0.0
        %2197 = vmatpush1.xpose.msra.mxu0 0.0
        %2198 = vmatprep.subr.mxu0 0.0
        %2199 = vmatpush1.xpose.msra.mxu0 0.0
        %2200 = vmatprep.subr.mxu0 0.0
        %2201 = vmatpush1.xpose.msra.mxu0 0.0
        %2202 = vmatprep.subr.mxu0 0.0
        %2203 = vmatpush1.xpose.msra.mxu0 0.0
        %2204 = vmatprep.subr.mxu0 0.0
        %2205 = vmatpush1.xpose.msra.mxu0 0.0
        %2206 = vmatprep.subr.mxu0 0.0
        %2207 = vmatpush1.xpose.msra.mxu0 0.0
        %2208 = vmatprep.subr.mxu0 0.0
        %2209 = vmatpush1.xpose.msra.mxu0 0.0
        %2210 = vmatprep.subr.mxu0 0.0
        %2211 = vmatpush1.xpose.msra.mxu0 0.0
        %2212 = vmatprep.subr.mxu0 0.0
        %2213 = vmatpush1.xpose.msra.mxu0 0.0
        %2214 = vmatprep.subr.mxu0 0.0
        %2215 = vmatpush1.xpose.msra.mxu0 0.0
        %2216 = vmatprep.subr.mxu0 0.0
        %2217 = vmatpush1.xpose.msra.mxu0 0.0
        %2218 = vmatprep.subr.mxu0 0.0
        %2219 = vmatpush1.xpose.msra.mxu0 0.0
        %2220 = vmatprep.subr.mxu0 0.0
        %2221 = vmatpush1.xpose.msra.mxu0 0.0
        %2222 = vmatprep.subr.mxu0 0.0
        %2223 = vmatpush1.xpose.msra.mxu0 0.0
        %2224 = vmatprep.subr.mxu0 0.0
        %2225 = vmatpush1.xpose.msra.mxu0 0.0
        %2226 = vmatprep.mubr.f32.mxu0 0.0
        %2227 = vmatmul.mubr.f32.gmra.mrb[0].mxu0 %v2158
        %v2228 = vpop.f32.mrb[0].mxu0
        %v2229 = vadd.f32 0.0, %v2228
        %v2230 = vpop.f32.mrb[0].mxu0
        %2231 = vdwg.mxu0
        %v2232 = vsel %vm479, %v2229, -1e+30
        %v2233 = vsel %vm586, %v2232, -inf
        %2234 = vmax.xlane.f32.xlu0 %v2233
        %v2235 = vpop.xlane.xlu0 %2234
        %v2236 = vsub.f32 %v2232, %v2235
        %v2237 = vmul.f32 %v2236, 1.442695
        %v2238 = vpow.pop %v2237
        %v2239 = vsel %vm586, %v2238, 0.0
        %2240 = vadd.xlane.f32.xlu0 %v2239
        %v2241 = vpop.xlane.xlu0 %2240
        %v2242 = vrcp.pop %v2241
        %v2243 = vmul.f32 %v2238, %v2242
        %2244 = vrot.lane.b32.xlu0 %v1652, 40
        %v2245 = vpop.permute.xlu0 %2244
        %v2248 = vsel %vm586, %v2243, 0
        %2250 = vmatprep.subr.mxu0 0.0
        %2251 = vmatpush1.msra.mxu0 %v2245
        %2252 = vmatprep.subr.mxu0 0.0
        %2253 = vmatpush1.msra.mxu0 0.0
        %2254 = vmatprep.subr.mxu0 0.0
        %2255 = vmatpush1.msra.mxu0 0.0
        %2256 = vmatprep.subr.mxu0 0.0
        %2257 = vmatpush1.msra.mxu0 0.0
        %2258 = vmatprep.subr.mxu0 0.0
        %2259 = vmatpush1.msra.mxu0 0.0
        %2260 = vmatprep.subr.mxu0 0.0
        %2261 = vmatpush1.msra.mxu0 0.0
        %2262 = vmatprep.subr.mxu0 0.0
        %2263 = vmatpush1.msra.mxu0 0.0
        %2264 = vmatprep.subr.mxu0 0.0
        %2265 = vmatpush1.msra.mxu0 0.0
        %2266 = vmatprep.subr.mxu0 0.0
        %2267 = vmatpush1.msra.mxu0 0.0
        %2268 = vmatprep.subr.mxu0 0.0
        %2269 = vmatpush1.msra.mxu0 0.0
        %2270 = vmatprep.subr.mxu0 0.0
        %2271 = vmatpush1.msra.mxu0 0.0
        %2272 = vmatprep.subr.mxu0 0.0
        %2273 = vmatpush1.msra.mxu0 0.0
        %2274 = vmatprep.subr.mxu0 0.0
        %2275 = vmatpush1.msra.mxu0 0.0
        %2276 = vmatprep.subr.mxu0 0.0
        %2277 = vmatpush1.msra.mxu0 0.0
        %2278 = vmatprep.subr.mxu0 0.0
        %2279 = vmatpush1.msra.mxu0 0.0
        %2280 = vmatprep.subr.mxu0 0.0
        %2281 = vmatpush1.msra.mxu0 0.0
        %2282 = vmatprep.subr.mxu0 0.0
        %2283 = vmatpush1.msra.mxu0 0.0
        %2284 = vmatprep.subr.mxu0 0.0
        %2285 = vmatpush1.msra.mxu0 0.0
        %2286 = vmatprep.subr.mxu0 0.0
        %2287 = vmatpush1.msra.mxu0 0.0
        %2288 = vmatprep.subr.mxu0 0.0
        %2289 = vmatpush1.msra.mxu0 0.0
        %2290 = vmatprep.subr.mxu0 0.0
        %2291 = vmatpush1.msra.mxu0 0.0
        %2292 = vmatprep.subr.mxu0 0.0
        %2293 = vmatpush1.msra.mxu0 0.0
        %2294 = vmatprep.subr.mxu0 0.0
        %2295 = vmatpush1.msra.mxu0 0.0
        %2296 = vmatprep.subr.mxu0 0.0
        %2297 = vmatpush1.msra.mxu0 0.0
        %2298 = vmatprep.subr.mxu0 0.0
        %2299 = vmatpush1.msra.mxu0 0.0
        %2300 = vmatprep.subr.mxu0 0.0
        %2301 = vmatpush1.msra.mxu0 0.0
        %2302 = vmatprep.subr.mxu0 0.0
        %2303 = vmatpush1.msra.mxu0 0.0
        %2304 = vmatprep.subr.mxu0 0.0
        %2305 = vmatpush1.msra.mxu0 0.0
        %2306 = vmatprep.subr.mxu0 0.0
        %2307 = vmatpush1.msra.mxu0 0.0
        %2308 = vmatprep.subr.mxu0 0.0
        %2309 = vmatpush1.msra.mxu0 0.0
        %2310 = vmatprep.subr.mxu0 0.0
        %2311 = vmatpush1.msra.mxu0 0.0
        %2312 = vmatprep.subr.mxu0 0.0
        %2313 = vmatpush1.msra.mxu0 0.0
        %2314 = vmatprep.mubr.f32.mxu0 0.0
        %2315 = vmatmul.mubr.f32.gmra.mrb[0].mxu0 %v2248
        %v2316 = vpop.f32.mrb[0].mxu0
        %v2317 = vadd.f32 0.0, %v2316
        %v2318 = vpop.f32.mrb[0].mxu0
        %2319 = vdwg.mxu0
        %2321 = vrot.lane.b32.xlu0 %v1985, 8
        %v2322 = vpop.permute.xlu0 %2321
        %2325 = vrot.lane.b32.xlu0 %v2151, 16
        %v2326 = vpop.permute.xlu0 %2325
        %2329 = vrot.lane.b32.xlu0 %v2317, 24
        %v2330 = vpop.permute.xlu0 %2329
        %v2332 = vsel %vm586, %v1819, %v2322
        %v2333 = vsel %vm1261, %v2332, %v2326
        %v2334 = vsel %vm1263, %v2333, %v2330
        %s2335 = scalar_lea.vmem %s6, 32
        %v2336 = vld [vmem:[%s2335] sm:$0xff]
        %v2337 = vld [vmem:[%s2335 + $0x8] sm:$0xff]
        %v2338 = vld [vmem:[%s2335 + $0x10] sm:$0xff]
        %v2339 = vld [vmem:[%s2335 + $0x18] sm:$0xff]
        %s2340 = scalar_lea.vmem %s7, 1
        %v2341 = vld [vmem:[%s2340] sm:$0x1]
        %v2343 = vlaneseq
        %v2344 = vshrl.u32 %v2343, 7
        %v2345 = vsub.s32 0, %v2344
        %v2346 = vrot.slane %v2341, %v2345
        %v2349 = vsel %vm482, %v2334, 0
        %2351 = vmatprep.subr.mxu0 0.0
        %2352 = vmatpush1.msra.mxu0 %v2336
        %2353 = vmatprep.subr.mxu0 0.0
        %2354 = vmatpush1.msra.mxu0 %v2337
        %2355 = vmatprep.subr.mxu0 0.0
        %2356 = vmatpush1.msra.mxu0 %v2338
        %2357 = vmatprep.subr.mxu0 0.0
        %2358 = vmatpush1.msra.mxu0 %v2339
        %2359 = vmatprep.subr.mxu0 0.0
        %2360 = vmatpush1.msra.mxu0 0.0
        %2361 = vmatprep.subr.mxu0 0.0
        %2362 = vmatpush1.msra.mxu0 0.0
        %2363 = vmatprep.subr.mxu0 0.0
        %2364 = vmatpush1.msra.mxu0 0.0
        %2365 = vmatprep.subr.mxu0 0.0
        %2366 = vmatpush1.msra.mxu0 0.0
        %2367 = vmatprep.subr.mxu0 0.0
        %2368 = vmatpush1.msra.mxu0 0.0
        %2369 = vmatprep.subr.mxu0 0.0
        %2370 = vmatpush1.msra.mxu0 0.0
        %2371 = vmatprep.subr.mxu0 0.0
        %2372 = vmatpush1.msra.mxu0 0.0
        %2373 = vmatprep.subr.mxu0 0.0
        %2374 = vmatpush1.msra.mxu0 0.0
        %2375 = vmatprep.subr.mxu0 0.0
        %2376 = vmatpush1.msra.mxu0 0.0
        %2377 = vmatprep.subr.mxu0 0.0
        %2378 = vmatpush1.msra.mxu0 0.0
        %2379 = vmatprep.subr.mxu0 0.0
        %2380 = vmatpush1.msra.mxu0 0.0
        %2381 = vmatprep.subr.mxu0 0.0
        %2382 = vmatpush1.msra.mxu0 0.0
        %2383 = vmatprep.subr.mxu0 0.0
        %2384 = vmatpush1.msra.mxu0 0.0
        %2385 = vmatprep.subr.mxu0 0.0
        %2386 = vmatpush1.msra.mxu0 0.0
        %2387 = vmatprep.subr.mxu0 0.0
        %2388 = vmatpush1.msra.mxu0 0.0
        %2389 = vmatprep.subr.mxu0 0.0
        %2390 = vmatpush1.msra.mxu0 0.0
        %2391 = vmatprep.subr.mxu0 0.0
        %2392 = vmatpush1.msra.mxu0 0.0
        %2393 = vmatprep.subr.mxu0 0.0
        %2394 = vmatpush1.msra.mxu0 0.0
        %2395 = vmatprep.subr.mxu0 0.0
        %2396 = vmatpush1.msra.mxu0 0.0
        %2397 = vmatprep.subr.mxu0 0.0
        %2398 = vmatpush1.msra.mxu0 0.0
        %2399 = vmatprep.subr.mxu0 0.0
        %2400 = vmatpush1.msra.mxu0 0.0
        %2401 = vmatprep.subr.mxu0 0.0
        %2402 = vmatpush1.msra.mxu0 0.0
        %2403 = vmatprep.subr.mxu0 0.0
        %2404 = vmatpush1.msra.mxu0 0.0
        %2405 = vmatprep.subr.mxu0 0.0
        %2406 = vmatpush1.msra.mxu0 0.0
        %2407 = vmatprep.subr.mxu0 0.0
        %2408 = vmatpush1.msra.mxu0 0.0
        %2409 = vmatprep.subr.mxu0 0.0
        %2410 = vmatpush1.msra.mxu0 0.0
        %2411 = vmatprep.subr.mxu0 0.0
        %2412 = vmatpush1.msra.mxu0 0.0
        %2413 = vmatprep.subr.mxu0 0.0
        %2414 = vmatpush1.msra.mxu0 0.0
        %2415 = vmatprep.mubr.f32.mxu0 0.0
        %2416 = vmatmul.mubr.f32.gmra.mrb[0].mxu0 %v2349
        %v2417 = vpop.f32.mrb[0].mxu0
        %v2418 = vadd.f32 %v2346, %v2417
        %v2419 = vpop.f32.mrb[0].mxu0
        %2420 = vdwg.mxu0
        %v2421 = vadd.f32 %v1550, %v2418
        %s2422 = scalar_lea.vmem %s3, 1
        %v2423 = vld [vmem:[%s2422] sm:$0x1]
        %v2424 = vmul.f32 %v2421, %v2421
        %v2425 = vsel %vm482, %v2424, 0.0
        %2426 = vadd.xlane.f32.xlu0 %v2425
        %v2427 = vpop.xlane.xlu0 %2426
        %v2428 = vmul.f32 %v2427, %v486
        %v2429 = vadd.f32 %v2428, 1e-08
        %v2430 = vrsqrt.pop %v2429
        %v2431 = vmul.f32 %v2421, %v2430
        %v2433 = vlaneseq
        %v2434 = vshrl.u32 %v2433, 7
        %v2435 = vsub.s32 0, %v2434
        %v2436 = vrot.slane %v2423, %v2435
        %v2438 = vmul.f32 %v2431, %v2436
        %s2439 = scalar_lea.vmem %s8, 32
        %v2440 = vld [vmem:[%s2439] sm:$0xff]
        %v2441 = vld [vmem:[%s2439 + $0x8] sm:$0xff]
        %v2442 = vld [vmem:[%s2439 + $0x10] sm:$0xff]
        %v2443 = vld [vmem:[%s2439 + $0x18] sm:$0xff]
        %s2444 = scalar_lea.vmem %s9, 1
        %v2445 = vld [vmem:[%s2444] sm:$0x1]
        %v2447 = vlaneseq
        %v2448 = vshrl.u32 %v2447, 7
        %v2449 = vsub.s32 0, %v2448
        %v2450 = vrot.slane %v2445, %v2449
        %v2453 = vsel %vm482, %v2438, 0
        %2455 = vmatprep.subr.mxu0 0.0
        %2456 = vmatpush1.msra.mxu0 %v2440
        %2457 = vmatprep.subr.mxu0 0.0
        %2458 = vmatpush1.msra.mxu0 %v2441
        %2459 = vmatprep.subr.mxu0 0.0
        %2460 = vmatpush1.msra.mxu0 %v2442
        %2461 = vmatprep.subr.mxu0 0.0
        %2462 = vmatpush1.msra.mxu0 %v2443
        %2463 = vmatprep.subr.mxu0 0.0
        %2464 = vmatpush1.msra.mxu0 0.0
        %2465 = vmatprep.subr.mxu0 0.0
        %2466 = vmatpush1.msra.mxu0 0.0
        %2467 = vmatprep.subr.mxu0 0.0
        %2468 = vmatpush1.msra.mxu0 0.0
        %2469 = vmatprep.subr.mxu0 0.0
        %2470 = vmatpush1.msra.mxu0 0.0
        %2471 = vmatprep.subr.mxu0 0.0
        %2472 = vmatpush1.msra.mxu0 0.0
        %2473 = vmatprep.subr.mxu0 0.0
        %2474 = vmatpush1.msra.mxu0 0.0
        %2475 = vmatprep.subr.mxu0 0.0
        %2476 = vmatpush1.msra.mxu0 0.0
        %2477 = vmatprep.subr.mxu0 0.0
        %2478 = vmatpush1.msra.mxu0 0.0
        %2479 = vmatprep.subr.mxu0 0.0
        %2480 = vmatpush1.msra.mxu0 0.0
        %2481 = vmatprep.subr.mxu0 0.0
        %2482 = vmatpush1.msra.mxu0 0.0
        %2483 = vmatprep.subr.mxu0 0.0
        %2484 = vmatpush1.msra.mxu0 0.0
        %2485 = vmatprep.subr.mxu0 0.0
        %2486 = vmatpush1.msra.mxu0 0.0
        %2487 = vmatprep.subr.mxu0 0.0
        %2488 = vmatpush1.msra.mxu0 0.0
        %2489 = vmatprep.subr.mxu0 0.0
        %2490 = vmatpush1.msra.mxu0 0.0
        %2491 = vmatprep.subr.mxu0 0.0
        %2492 = vmatpush1.msra.mxu0 0.0
        %2493 = vmatprep.subr.mxu0 0.0
        %2494 = vmatpush1.msra.mxu0 0.0
        %2495 = vmatprep.subr.mxu0 0.0
        %2496 = vmatpush1.msra.mxu0 0.0
        %2497 = vmatprep.subr.mxu0 0.0
        %2498 = vmatpush1.msra.mxu0 0.0
        %2499 = vmatprep.subr.mxu0 0.0
        %2500 = vmatpush1.msra.mxu0 0.0
        %2501 = vmatprep.subr.mxu0 0.0
        %2502 = vmatpush1.msra.mxu0 0.0
        %2503 = vmatprep.subr.mxu0 0.0
        %2504 = vmatpush1.msra.mxu0 0.0
        %2505 = vmatprep.subr.mxu0 0.0
        %2506 = vmatpush1.msra.mxu0 0.0
        %2507 = vmatprep.subr.mxu0 0.0
        %2508 = vmatpush1.msra.mxu0 0.0
        %2509 = vmatprep.subr.mxu0 0.0
        %2510 = vmatpush1.msra.mxu0 0.0
        %2511 = vmatprep.subr.mxu0 0.0
        %2512 = vmatpush1.msra.mxu0 0.0
        %2513 = vmatprep.subr.mxu0 0.0
        %2514 = vmatpush1.msra.mxu0 0.0
        %2515 = vmatprep.subr.mxu0 0.0
        %2516 = vmatpush1.msra.mxu0 0.0
        %2517 = vmatprep.subr.mxu0 0.0
        %2518 = vmatpush1.msra.mxu0 0.0
        %2519 = vmatprep.mubr.f32.mxu0 0.0
        %2520 = vmatmul.mubr.f32.gmra.mrb[0].mxu0 %v2453
        %v2521 = vpop.f32.mrb[0].mxu0
        %v2522 = vadd.f32 %v2450, %v2521
        %v2523 = vpop.f32.mrb[0].mxu0
        %2524 = vdwg.mxu0
        %v2525 = vxor.u32 %v2522, 2147483648
        %v2526 = vmul.f32 %v2525, 1.442695
        %v2527 = vpow.pop %v2526
        %v2528 = vadd.f32 %v2527, 1.0
        %v2529 = vrcp.pop %v2528
        %v2530 = vmul.f32 1.0, %v2529
        %2532 = vrot.lane.b32.xlu0 %v2530, 64
        %v2533 = vpop.permute.xlu0 %2532
        %v2535 = vmul.f32 %v2522, %v2533
        %s2536 = scalar_lea.vmem %s10, 64
        %v2537 = vld [vmem:[%s2536] sm:$0xff]
        %v2538 = vld [vmem:[%s2536 + $0x8] sm:$0xff]
        %v2539 = vld [vmem:[%s2536 + $0x10] sm:$0xff]
        %v2540 = vld [vmem:[%s2536 + $0x18] sm:$0xff]
        %v2541 = vld [vmem:[%s2536 + $0x20] sm:$0xff]
        %v2542 = vld [vmem:[%s2536 + $0x28] sm:$0xff]
        %v2543 = vld [vmem:[%s2536 + $0x30] sm:$0xff]
        %v2544 = vld [vmem:[%s2536 + $0x38] sm:$0xff]
        %s2545 = scalar_lea.vmem %s11, 1
        %v2546 = vld [vmem:[%s2545] sm:$0x1]
        %v2548 = vlaneseq
        %v2549 = vshrl.u32 %v2548, 7
        %v2550 = vsub.s32 0, %v2549
        %v2551 = vrot.slane %v2546, %v2550
        %v2554 = vsel %vm1476, %v2535, 0
        %2556 = vmatprep.subr.mxu0 0.0
        %2557 = vmatpush1.msra.mxu0 %v2537
        %2558 = vmatprep.subr.mxu0 0.0
        %2559 = vmatpush1.msra.mxu0 %v2538
        %2560 = vmatprep.subr.mxu0 0.0
        %2561 = vmatpush1.msra.mxu0 %v2539
        %2562 = vmatprep.subr.mxu0 0.0
        %2563 = vmatpush1.msra.mxu0 %v2540
        %2564 = vmatprep.subr.mxu0 0.0
        %2565 = vmatpush1.msra.mxu0 %v2541
        %2566 = vmatprep.subr.mxu0 0.0
        %2567 = vmatpush1.msra.mxu0 %v2542
        %2568 = vmatprep.subr.mxu0 0.0
        %2569 = vmatpush1.msra.mxu0 %v2543
        %2570 = vmatprep.subr.mxu0 0.0
        %2571 = vmatpush1.msra.mxu0 %v2544
        %2572 = vmatprep.subr.mxu0 0.0
        %2573 = vmatpush1.msra.mxu0 0.0
        %2574 = vmatprep.subr.mxu0 0.0
        %2575 = vmatpush1.msra.mxu0 0.0
        %2576 = vmatprep.subr.mxu0 0.0
        %2577 = vmatpush1.msra.mxu0 0.0
        %2578 = vmatprep.subr.mxu0 0.0
        %2579 = vmatpush1.msra.mxu0 0.0
        %2580 = vmatprep.subr.mxu0 0.0
        %2581 = vmatpush1.msra.mxu0 0.0
        %2582 = vmatprep.subr.mxu0 0.0
        %2583 = vmatpush1.msra.mxu0 0.0
        %2584 = vmatprep.subr.mxu0 0.0
        %2585 = vmatpush1.msra.mxu0 0.0
        %2586 = vmatprep.subr.mxu0 0.0
        %2587 = vmatpush1.msra.mxu0 0.0
        %2588 = vmatprep.subr.mxu0 0.0
        %2589 = vmatpush1.msra.mxu0 0.0
        %2590 = vmatprep.subr.mxu0 0.0
        %2591 = vmatpush1.msra.mxu0 0.0
        %2592 = vmatprep.subr.mxu0 0.0
        %2593 = vmatpush1.msra.mxu0 0.0
        %2594 = vmatprep.subr.mxu0 0.0
        %2595 = vmatpush1.msra.mxu0 0.0
        %2596 = vmatprep.subr.mxu0 0.0
        %2597 = vmatpush1.msra.mxu0 0.0
        %2598 = vmatprep.subr.mxu0 0.0
        %2599 = vmatpush1.msra.mxu0 0.0
        %2600 = vmatprep.subr.mxu0 0.0
        %2601 = vmatpush1.msra.mxu0 0.0
        %2602 = vmatprep.subr.mxu0 0.0
        %2603 = vmatpush1.msra.mxu0 0.0
        %2604 = vmatprep.subr.mxu0 0.0
        %2605 = vmatpush1.msra.mxu0 0.0
        %2606 = vmatprep.subr.mxu0 0.0
        %2607 = vmatpush1.msra.mxu0 0.0
        %2608 = vmatprep.subr.mxu0 0.0
        %2609 = vmatpush1.msra.mxu0 0.0
        %2610 = vmatprep.subr.mxu0 0.0
        %2611 = vmatpush1.msra.mxu0 0.0
        %2612 = vmatprep.subr.mxu0 0.0
        %2613 = vmatpush1.msra.mxu0 0.0
        %2614 = vmatprep.subr.mxu0 0.0
        %2615 = vmatpush1.msra.mxu0 0.0
        %2616 = vmatprep.subr.mxu0 0.0
        %2617 = vmatpush1.msra.mxu0 0.0
        %2618 = vmatprep.subr.mxu0 0.0
        %2619 = vmatpush1.msra.mxu0 0.0
        %2620 = vmatprep.mubr.f32.mxu0 0.0
        %2621 = vmatmul.mubr.f32.gmra.mrb[0].mxu0 %v2554
        %v2622 = vpop.f32.mrb[0].mxu0
        %v2623 = vadd.f32 %v2551, %v2622
        %v2624 = vpop.f32.mrb[0].mxu0
        %2625 = vdwg.mxu0
        %v2626 = vadd.f32 %v2421, %v2623
        %v2627 = vld [vmem:[%s12] sm:$0x1]
        %v2628 = vmul.f32 %v2626, %v2626
        %v2629 = vsel %vm482, %v2628, 0.0
        %2630 = vadd.xlane.f32.xlu0 %v2629
        %v2631 = vpop.xlane.xlu0 %2630
        %v2632 = vmul.f32 %v2631, %v486
        %v2633 = vadd.f32 %v2632, 1e-08
        %v2634 = vrsqrt.pop %v2633
        %v2635 = vmul.f32 %v2626, %v2634
        %v2637 = vlaneseq
        %v2638 = vshrl.u32 %v2637, 7
        %v2639 = vsub.s32 0, %v2638
        %v2640 = vrot.slane %v2627, %v2639
        %v2642 = vmul.f32 %v2635, %v2640
        %s2643 = scalar_lea.vmem %s469, 8 [#allocation4]
        %2644 = vst.msk [vmem:[%s2643] sm:$0xff] %vm482, %v2642
        %v2645 = vld [vmem:[%s1] sm:$0xff]
        %v2646 = vld [vmem:[%s1 + $0x8] sm:$0xff]
        %v2647 = vld [vmem:[%s1 + $0x10] sm:$0xff]
        %v2648 = vld [vmem:[%s1 + $0x18] sm:$0xff]
        %v2649 = vld [vmem:[%s1 + $0x20] sm:$0xff]
        %v2650 = vld [vmem:[%s1 + $0x28] sm:$0xff]
        %v2651 = vld [vmem:[%s1 + $0x30] sm:$0xff]
        %v2652 = vld [vmem:[%s1 + $0x38] sm:$0xff]
        %v2653 = vld [vmem:[%s1 + $0x40] sm:$0xff]
        %v2654 = vld [vmem:[%s1 + $0x48] sm:$0xff]
        %v2655 = vld [vmem:[%s1 + $0x50] sm:$0xff]
        %v2656 = vld [vmem:[%s1 + $0x58] sm:$0xff]
        %v2657 = vld [vmem:[%s1 + $0x60] sm:$0xff]
        %v2658 = vld [vmem:[%s1 + $0x68] sm:$0xff]
        %v2659 = vld [vmem:[%s1 + $0x70] sm:$0xff]
        %v2660 = vld [vmem:[%s1 + $0x78] sm:$0xff]
        %v2662 = vsel %vm482, %v2642, 0
        %v2665 = vsel %vm482, %v2645, 0
        %v2668 = vsel %vm482, %v2646, 0
        %v2671 = vsel %vm482, %v2647, 0
        %v2674 = vsel %vm482, %v2648, 0
        %v2677 = vsel %vm482, %v2649, 0
        %v2680 = vsel %vm482, %v2650, 0
        %v2683 = vsel %vm482, %v2651, 0
        %v2686 = vsel %vm482, %v2652, 0
        %v2689 = vsel %vm482, %v2653, 0
        %v2692 = vsel %vm482, %v2654, 0
        %v2695 = vsel %vm482, %v2655, 0
        %v2698 = vsel %vm482, %v2656, 0
        %v2701 = vsel %vm482, %v2657, 0
        %v2704 = vsel %vm482, %v2658, 0
        %v2707 = vsel %vm482, %v2659, 0
        %v2710 = vsel %vm482, %v2660, 0
        %2712 = vmatprep.subr.mxu0 0.0
        %2713 = vmatpush1.xpose.msra.mxu0 %v2665
        %2714 = vmatprep.subr.mxu0 0.0
        %2715 = vmatpush1.xpose.msra.mxu0 %v2668
        %2716 = vmatprep.subr.mxu0 0.0
        %2717 = vmatpush1.xpose.msra.mxu0 %v2671
        %2718 = vmatprep.subr.mxu0 0.0
        %2719 = vmatpush1.xpose.msra.mxu0 %v2674
        %2720 = vmatprep.subr.mxu0 0.0
        %2721 = vmatpush1.xpose.msra.mxu0 %v2677
        %2722 = vmatprep.subr.mxu0 0.0
        %2723 = vmatpush1.xpose.msra.mxu0 %v2680
        %2724 = vmatprep.subr.mxu0 0.0
        %2725 = vmatpush1.xpose.msra.mxu0 %v2683
        %2726 = vmatprep.subr.mxu0 0.0
        %2727 = vmatpush1.xpose.msra.mxu0 %v2686
        %2728 = vmatprep.subr.mxu0 0.0
        %2729 = vmatpush1.xpose.msra.mxu0 %v2689
        %2730 = vmatprep.subr.mxu0 0.0
        %2731 = vmatpush1.xpose.msra.mxu0 %v2692
        %2732 = vmatprep.subr.mxu0 0.0
        %2733 = vmatpush1.xpose.msra.mxu0 %v2695
        %2734 = vmatprep.subr.mxu0 0.0
        %2735 = vmatpush1.xpose.msra.mxu0 %v2698
        %2736 = vmatprep.subr.mxu0 0.0
        %2737 = vmatpush1.xpose.msra.mxu0 %v2701
        %2738 = vmatprep.subr.mxu0 0.0
        %2739 = vmatpush1.xpose.msra.mxu0 %v2704
        %2740 = vmatprep.subr.mxu0 0.0
        %2741 = vmatpush1.xpose.msra.mxu0 %v2707
        %2742 = vmatprep.subr.mxu0 0.0
        %2743 = vmatpush1.xpose.msra.mxu0 %v2710
        %2744 = vmatprep.subr.mxu0 0.0
        %2745 = vmatpush1.xpose.msra.mxu0 0.0
        %2746 = vmatprep.subr.mxu0 0.0
        %2747 = vmatpush1.xpose.msra.mxu0 0.0
        %2748 = vmatprep.subr.mxu0 0.0
        %2749 = vmatpush1.xpose.msra.mxu0 0.0
        %2750 = vmatprep.subr.mxu0 0.0
        %2751 = vmatpush1.xpose.msra.mxu0 0.0
        %2752 = vmatprep.subr.mxu0 0.0
        %2753 = vmatpush1.xpose.msra.mxu0 0.0
        %2754 = vmatprep.subr.mxu0 0.0
        %2755 = vmatpush1.xpose.msra.mxu0 0.0
        %2756 = vmatprep.subr.mxu0 0.0
        %2757 = vmatpush1.xpose.msra.mxu0 0.0
        %2758 = vmatprep.subr.mxu0 0.0
        %2759 = vmatpush1.xpose.msra.mxu0 0.0
        %2760 = vmatprep.subr.mxu0 0.0
        %2761 = vmatpush1.xpose.msra.mxu0 0.0
        %2762 = vmatprep.subr.mxu0 0.0
        %2763 = vmatpush1.xpose.msra.mxu0 0.0
        %2764 = vmatprep.subr.mxu0 0.0
        %2765 = vmatpush1.xpose.msra.mxu0 0.0
        %2766 = vmatprep.subr.mxu0 0.0
        %2767 = vmatpush1.xpose.msra.mxu0 0.0
        %2768 = vmatprep.subr.mxu0 0.0
        %2769 = vmatpush1.xpose.msra.mxu0 0.0
        %2770 = vmatprep.subr.mxu0 0.0
        %2771 = vmatpush1.xpose.msra.mxu0 0.0
        %2772 = vmatprep.subr.mxu0 0.0
        %2773 = vmatpush1.xpose.msra.mxu0 0.0
        %2774 = vmatprep.subr.mxu0 0.0
        %2775 = vmatpush1.xpose.msra.mxu0 0.0
        %2776 = vmatprep.mubr.f32.mxu0 0.0
        %2777 = vmatmul.mubr.f32.gmra.mrb[0].mxu0 %v2662
        %v2778 = vpop.f32.mrb[0].mxu0
        %v2779 = vadd.f32 0.0, %v2778
        %v2780 = vpop.f32.mrb[0].mxu0
        %2781 = vdwg.mxu0
        %2782 = vst [vmem:[%s462] sm:$0xff] %v2779
        %s2783 = sand.u32 %s318, 1
        %s2784 = scalar_lea.sflag [#allocation3], %s2783
        %s2785 = sand.u32 %s318, 1
        %s2786 = smul.addr %s2785, 8
        %s2787 = scalar_lea.vmem [#allocation2], %s2786
        %s2788 = sand.u32 %s344, 1
        %s2789 = scalar_lea.sflag [#allocation5], %s2788
        %s2790 = sand.u32 %s344, 1
        %s2791 = smul.addr %s2790, 16
        %s2792 = scalar_lea.vmem [#allocation4], %s2791
        // Predicated region
        $region73: #{tpu_custom_call.1} parent=71 // pred_check
          %p2793 = pneg %p328
        $region74: #{tpu_custom_call.1} parent=71 // pred_check_branch
          %2795 = sbr.rel (%p2793) target = $region76
        $region75: #{tpu_custom_call.1} parent=71 // pred_region
          %s2797 = ssub.s32 128, 128
          %2798 = vsyncadd %s2784, %s2797
          %s2799 = smul.addr %s32, 128
          %s2800 = scalar_lea.hbm %s13, %s2799
          %s2802 = sshll.u32 %s2787, 4
          %s2803 = int_to_ptr.vmem [resolvable:$true] %s2802
          %2805 = dma.vmem_to_hbm [thread:$0]  %s2803, 128, %s2800, %s2784
        $region76: #{tpu_custom_call.1} parent=71 // pred_fallthru
          _
        // Predicated region
        $region77: #{tpu_custom_call.1} parent=71 // pred_check
          %p2806 = pneg %p354
        $region78: #{tpu_custom_call.1} parent=71 // pred_check_branch
          %2808 = sbr.rel (%p2806) target = $region80
        $region79: #{tpu_custom_call.1} parent=71 // pred_region
          %s2810 = ssub.s32 256, 256
          %2811 = vsyncadd %s2789, %s2810
          %s2812 = smul.addr %s32, 128
          %s2813 = scalar_lea.hbm %s14, %s2812
          %s2814 = sshll.u32 %s2792, 4
          %s2815 = int_to_ptr.vmem [resolvable:$true] %s2814
          %2820 = dma.vmem_to_hbm [thread:$0]  %s2815, 256, %s2813, %s2789, 128, 256, 8
        $region80: #{tpu_custom_call.1} parent=71 // pred_fallthru
          _
      $region72: #{tpu_custom_call.1} parent=5 // pred_fallthru
        _
      %p2821 = scmp.le.s32.totalorder 2, %s27
      // Predicated region
      $region81: #{tpu_custom_call.1} parent=5 // pred_check
        %p2822 = pneg %p2821
      $region82: #{tpu_custom_call.1} parent=5 // pred_check_branch
        %2824 = sbr.rel (%p2822) target = $region84
      $region83: #{tpu_custom_call.1} parent=5 // pred_region
        %s2825 = ssub.s32 %s27, 2
        // Predicated region
        $region85: #{tpu_custom_call.1} parent=83 // pred_check
          %p2826 = pneg %p334
        $region86: #{tpu_custom_call.1} parent=83 // pred_check_branch
          %2828 = sbr.rel (%p2826) target = $region88
        $region87: #{tpu_custom_call.1} parent=83 // pred_region
          %s2829 = sand.u32 %s319, 1
          %s2830 = scalar_lea.sflag [#allocation3], %s2829
          %s2831 = sand.u32 %s319, 1
          %s2832 = smul.addr %s2831, 8
          %s2833 = scalar_lea.vmem [#allocation2], %s2832
          %2834 = dma.done %s2830, 128
        $region88: #{tpu_custom_call.1} parent=83 // pred_fallthru
          _
        // Predicated region
        $region89: #{tpu_custom_call.1} parent=83 // pred_check
          %p2835 = pneg %p360
        $region90: #{tpu_custom_call.1} parent=83 // pred_check_branch
          %2837 = sbr.rel (%p2835) target = $region92
        $region91: #{tpu_custom_call.1} parent=83 // pred_region
          %s2838 = sand.u32 %s345, 1
          %s2839 = scalar_lea.sflag [#allocation5], %s2838
          %s2840 = sand.u32 %s345, 1
          %s2841 = smul.addr %s2840, 16
          %s2842 = scalar_lea.vmem [#allocation4], %s2841
          %2843 = dma.done %s2839, 256
        $region92: #{tpu_custom_call.1} parent=83 // pred_fallthru
          _
      $region84: #{tpu_custom_call.1} parent=5 // pred_fallthru
        _
    $region6: #{tpu_custom_call.1} parent=1 // loop_footer
      %s31 = sadd.s32 1, %s27
    $region7: #{tpu_custom_call.1} parent=1 // loop_footer_branch
      %26 = sbr.rel target = $region3
    $region8: #{tpu_custom_call.1} parent=1 // loop_exit
      _
    %2844 = vsyncpa [#allocation3], 1
    %s2845 = scalar_lea.sflag [#allocation3], 1
    %2846 = vsyncpa %s2845, 1
    %2847 = vsyncpa [#allocation5], 1
    %s2848 = scalar_lea.sflag [#allocation5], 1
    %2849 = vsyncpa %s2848, 1

</llo_original>
